<compile_context>
chip_gen: v7x
topology: tpu7x:2x2x1
jax: 0.10.0
libtpu: 0.0.40
codegen_flags: <defaults>
</compile_context>

<pallas_src>
import functools
import math

import jax
import jax.numpy as jnp
from jax.experimental import pallas as pl
from jax.experimental.pallas import tpu as pltpu

# ---------------- scaled-down config (torch original in comments) -------------
PATCH = 2                       # torch: 14
GRID = 4                        # torch: 27
IMG = PATCH * GRID              # torch: 378
CH = 3                          # RGB
EMBED_LEN = GRID * GRID         # torch: 729
EMBED_DIM = 64                  # torch: 1152
NUM_HEADS = 4                   # torch: 16
HEAD_DIM = EMBED_DIM // NUM_HEADS
MLP_HIDDEN = 128                # torch: 4304
DEPTH = 2                       # torch: 27
PATCH_DIM = CH * PATCH * PATCH  # torch: 588
MODEL_DIM = 64                  # torch: 2048
PROJ_HIDDEN = 4 * MODEL_DIM     # torch: 8192
LN_EPS = 1e-5                   # nn.LayerNorm default

ACT_DTYPE = jnp.bfloat16        # residual stream dtype between kernels
K_CHUNK = 128                   # lane-aligned hidden-dim tile for MLP/projection
VMEM_LIMIT = 48 * 1024 * 1024   # > v5e/v6e scoped defaults, < v7x 64 MiB physical
# TODO(synk): at full dims MLP_HIDDEN=4304 is not a multiple of 128; chunk it as
# 8-aligned tiles (e.g. 1076) or pad the hidden dim when porting full weights.


def _cparams(dims):
    return pltpu.CompilerParams(dimension_semantics=dims,
                                vmem_limit_bytes=VMEM_LIMIT)


# ------------------------------ in-kernel helpers ------------------------------
def _ln_f32(x, g, b):
    mean = jnp.mean(x, axis=-1, keepdims=True)
    xc = x - mean
    var = jnp.mean(xc * xc, axis=-1, keepdims=True)
    return xc * jax.lax.rsqrt(var + LN_EPS) * g + b


def _gelu_tanh(y):
    c = math.sqrt(2.0 / math.pi)
    return 0.5 * y * (1.0 + jnp.tanh(c * (y + 0.044715 * y * y * y)))


# ------------------------------ Pallas kernels --------------------------------
def _patch_embed_kernel(x_ref, w_ref, b_ref, pos_ref, o_ref):
    """o = patches @ W + b + pos_embed  (fused)."""
    x = x_ref[0].astype(jnp.bfloat16)                       # (N, PATCH_DIM)
    y = jnp.dot(x, w_ref[...], preferred_element_type=jnp.float32)
    o_ref[0] = (y + b_ref[...] + pos_ref[...]).astype(o_ref.dtype)


def _attn_block_kernel(x_ref, g_ref, b_ref, wq_ref, wk_ref, wv_ref,
                       bq_ref, bk_ref, bv_ref, wp_ref, bp_ref, o_ref,
                       *, num_heads, head_dim):
    """o = x + proj(SDPA(LN(x)))  — whole attention half-block, all heads.

    1/sqrt(head_dim) is pre-folded into wq/bq.  Heads are handled with
    head-leading batched einsums; the output projection is one (N,D)@(D,D)
    matmul (no per-head accumulator passes).
    """
    x = x_ref[0].astype(jnp.float32)                        # (N, D) residual in f32
    n = x.shape[0]
    xn = _ln_f32(x, g_ref[...], b_ref[...]).astype(jnp.bfloat16)

    def qkv_proj(w_ref_, b_ref_):
        y = jnp.dot(xn, w_ref_[...], preferred_element_type=jnp.float32) + b_ref_[...]
        # (N, D) -> (H, N, hd), head-leading for batched attention.
        return jnp.transpose(y.astype(jnp.bfloat16).reshape(n, num_heads, head_dim),
                             (1, 0, 2))

    q = qkv_proj(wq_ref, bq_ref)                            # (H, N, hd), scale folded
    k = qkv_proj(wk_ref, bk_ref)
    v = qkv_proj(wv_ref, bv_ref)

    s = jnp.einsum('hqd,hkd->hqk', q, k,
                   preferred_element_type=jnp.float32)      # (H, N, N)
    m = jnp.max(s, axis=-1, keepdims=True)
    p = jnp.exp(s - m)
    # approx reciprocal: rows sum to 1 +/- ~2^-12 (deliberate inference-time
    # deviation from the exact-division PyTorch softmax).
    p = p * pl.reciprocal(jnp.sum(p, axis=-1, keepdims=True), approx=True)
    o = jnp.einsum('hqk,hkd->hqd', p.astype(jnp.bfloat16), v,
                   preferred_element_type=jnp.float32)      # (H, N, hd)
    o = jnp.transpose(o, (1, 0, 2)).reshape(n, num_heads * head_dim)

    out = x + bp_ref[...] + jnp.dot(o.astype(jnp.bfloat16), wp_ref[...],
                                    preferred_element_type=jnp.float32)
    o_ref[0] = out.astype(o_ref.dtype)


def _ln_mlp_kernel(x_ref, g_ref, b_ref, w1_ref, b1_ref, w2_ref, b2_ref, o_ref,
                   xn_sc, acc_sc, *, residual):
    """o = [x +] fc2(gelu_tanh(fc1(LN(x)))), K-tiled over the hidden dim.

    Grid = (batch, hidden_chunks).  LN(x) is computed once (chunk 0) and cached
    in VMEM scratch; the fc2 contraction accumulates into an f32 scratch that
    is written out on the last chunk (lane-dense store).
    """
    kc = pl.program_id(1)

    @pl.when(kc == 0)
    def _():
        x = x_ref[0].astype(jnp.float32)
        xn_sc[...] = _ln_f32(x, g_ref[...], b_ref[...])
        init = jnp.zeros_like(acc_sc) + b2_ref[...]
        if residual:
            init = init + x
        acc_sc[...] = init

    h = jnp.dot(xn_sc[...].astype(jnp.bfloat16), w1_ref[...],
                preferred_element_type=jnp.float32) + b1_ref[...]
    h = _gelu_tanh(h)
    acc_sc[...] += jnp.dot(h.astype(jnp.bfloat16), w2_ref[...],
                           preferred_element_type=jnp.float32)

    @pl.when(kc == pl.num_programs(1) - 1)
    def _():
        o_ref[0] = acc_sc[...].astype(o_ref.dtype)


# ------------------------------ kernel wrappers --------------------------------
def patch_embed(x_patches, w, b, pos):
    B, N, P = x_patches.shape
    D = w.shape[1]
    return pl.pallas_call(
        _patch_embed_kernel,
        out_shape=jax.ShapeDtypeStruct((B, N, D), ACT_DTYPE),
        grid=(B,),
        in_specs=[
            pl.BlockSpec((1, N, P), lambda i: (i, 0, 0)),
            pl.BlockSpec((P, D), lambda i: (0, 0)),
            pl.BlockSpec((1, D), lambda i: (0, 0)),
            pl.BlockSpec((N, D), lambda i: (0, 0)),
        ],
        out_specs=pl.BlockSpec((1, N, D), lambda i: (i, 0, 0)),
        compiler_params=_cparams(("parallel",)),
    )(x_patches, w, b, pos)


def attn_block(x, p):
    B, N, D = x.shape
    kern = functools.partial(_attn_block_kernel, num_heads=NUM_HEADS,
                             head_dim=HEAD_DIM)

    def full2(shape):
        return pl.BlockSpec(shape, lambda i: (0, 0))

    return pl.pallas_call(
        kern,
        out_shape=jax.ShapeDtypeStruct((B, N, D), ACT_DTYPE),
        grid=(B,),
        in_specs=[
            pl.BlockSpec((1, N, D), lambda i: (i, 0, 0)),
            full2((1, D)), full2((1, D)),                     # ln1 gamma/beta
            full2((D, D)), full2((D, D)), full2((D, D)),      # wq, wk, wv
            full2((1, D)), full2((1, D)), full2((1, D)),      # bq, bk, bv
            full2((D, D)), full2((1, D)),                     # proj w, b
        ],
        out_specs=pl.BlockSpec((1, N, D), lambda i: (i, 0, 0)),
        compiler_params=_cparams(("parallel",)),
    )(x, p["ln1_g"], p["ln1_b"], p["wq"], p["wk"], p["wv"],
      p["bq"], p["bk"], p["bv"], p["proj_w"], p["proj_b"])


def ln_mlp(x, g, b, w1, b1, w2, b2, *, residual, out_dtype, k_chunk=K_CHUNK):
    B, N, Din = x.shape
    H = w1.shape[1]
    Dout = w2.shape[1]
    k_chunk = min(k_chunk, H)
    assert H % k_chunk == 0, (H, k_chunk)
    KC = H // k_chunk
    kern = functools.partial(_ln_mlp_kernel, residual=residual)
    return pl.pallas_call(
        kern,
        out_shape=jax.ShapeDtypeStruct((B, N, Dout), out_dtype),
        grid=(B, KC),
        in_specs=[
            pl.BlockSpec((1, N, Din), lambda i, k: (i, 0, 0)),
            pl.BlockSpec((1, Din), lambda i, k: (0, 0)),
            pl.BlockSpec((1, Din), lambda i, k: (0, 0)),
            pl.BlockSpec((Din, k_chunk), lambda i, k: (0, k)),
            pl.BlockSpec((1, k_chunk), lambda i, k: (0, k)),
            pl.BlockSpec((k_chunk, Dout), lambda i, k: (k, 0)),
            pl.BlockSpec((1, Dout), lambda i, k: (0, 0)),
        ],
        out_specs=pl.BlockSpec((1, N, Dout), lambda i, k: (i, 0, 0)),
        scratch_shapes=[pltpu.VMEM((N, Din), jnp.float32),    # cached LN(x)
                        pltpu.VMEM((N, Dout), jnp.float32)],  # f32 accumulator
        compiler_params=_cparams(("parallel", "arbitrary")),
    )(x, g, b, w1, b1, w2, b2)


# ------------------------------ model modules ---------------------------------
def patchify(x_nchw):
    """LinearPatchEmbedding's reshape/permute — pure layout, kept in XLA."""
    B, C, H, W = x_nchw.shape
    h, w = H // PATCH, W // PATCH
    x = x_nchw.reshape(B, C, h, PATCH, w, PATCH)
    x = x.transpose(0, 2, 4, 1, 3, 5)                # b, h, w, c, p1, p2
    return x.reshape(B, h * w, C * PATCH * PATCH)


def vision_encoder(images, params):
    # images: (B, C, IMG, IMG). Every image matches the tile size, so
    # create_patches() returns [], the bilinear resize is the identity and the
    # "reshaped patch features" branch degenerates to the full-image features,
    # i.e. final_features = concat(feats, feats) (folded into w1_eff at init).
    # TODO(synk): multi-tile path (create_patches + adaptive_avg_pool2d for
    # 756-px inputs) and PIL/bicubic preprocessing are host-side and not ported.
    vp = params["vit"]

    x = patchify(images)                                       # (B, N, PATCH_DIM)
    x = patch_embed(x, vp["patch_w"], vp["patch_b"], vp["pos_embed"])

    for bp in vp["blocks"]:
        x = attn_block(x, bp)                                  # LN1+attn+proj+res
        x = ln_mlp(x, bp["ln2_g"], bp["ln2_b"],                # LN2+MLP+res
                   bp["fc1_w"], bp["fc1_b"], bp["fc2_w"], bp["fc2_b"],
                   residual=True, out_dtype=ACT_DTYPE)

    pj = params["proj"]
    out = ln_mlp(x, vp["ln_g"], vp["ln_b"],                    # final LN + proj MLP
                 pj["fc1_w_eff"], pj["fc1_b"], pj["fc2_w"], pj["fc2_b"],
                 residual=False, out_dtype=jnp.float32)
    return out                                                  # (B, N, MODEL_DIM)


# ------------------------------ parameter init --------------------------------
def init_params(key):
    """Parameters in kernel-ready layout.  All parameter-prep folds are done
    here (host side, once, outside jit):
      * qkv weight split into wq/wk/wv; 1/sqrt(head_dim) folded into wq/bq.
      * projection fc1 concat([f,f]) fold: w1_eff = fc1_w[:D] + fc1_w[D:].
    Weights stored bf16 (matmul operands); biases / LN params / pos-embed f32.
    """
    def dense(k, fan_in, fan_out):
        k1, k2 = jax.random.split(k)
        w = jax.random.normal(k1, (fan_in, fan_out), jnp.float32) / math.sqrt(fan_in)
        b = jax.random.normal(k2, (fan_out,), jnp.float32) * 0.02
        return w, b

    keys = iter(jax.random.split(key, 16 + 8 * DEPTH))
    D = EMBED_DIM
    scale = 1.0 / math.sqrt(HEAD_DIM)

    patch_w, patch_b = dense(next(keys), PATCH_DIM, D)
    pos_embed = jax.random.normal(next(keys), (EMBED_LEN, D), jnp.float32) * 0.02

    blocks = []
    for _ in range(DEPTH):
        qkv_w, qkv_b = dense(next(keys), D, 3 * D)
        proj_w, proj_b = dense(next(keys), D, D)
        fc1_w, fc1_b = dense(next(keys), D, MLP_HIDDEN)
        fc2_w, fc2_b = dense(next(keys), MLP_HIDDEN, D)
        blocks.append(dict(
            wq=(qkv_w[:, 0:D] * scale).astype(jnp.bfloat16),
            wk=qkv_w[:, D:2 * D].astype(jnp.bfloat16),
            wv=qkv_w[:, 2 * D:3 * D].astype(jnp.bfloat16),
            bq=(qkv_b[0:D] * scale).reshape(1, D),
            bk=qkv_b[D:2 * D].reshape(1, D),
            bv=qkv_b[2 * D:3 * D].reshape(1, D),
            proj_w=proj_w.astype(jnp.bfloat16), proj_b=proj_b.reshape(1, D),
            fc1_w=fc1_w.astype(jnp.bfloat16), fc1_b=fc1_b.reshape(1, MLP_HIDDEN),
            fc2_w=fc2_w.astype(jnp.bfloat16), fc2_b=fc2_b.reshape(1, D),
            ln1_g=jnp.ones((1, D), jnp.float32), ln1_b=jnp.zeros((1, D), jnp.float32),
            ln2_g=jnp.ones((1, D), jnp.float32), ln2_b=jnp.zeros((1, D), jnp.float32),
        ))

    vit = dict(
        patch_w=patch_w.astype(jnp.bfloat16), patch_b=patch_b.reshape(1, D),
        pos_embed=pos_embed, blocks=blocks,
        ln_g=jnp.ones((1, D), jnp.float32), ln_b=jnp.zeros((1, D), jnp.float32),
    )

    p_fc1_w, p_fc1_b = dense(next(keys), 2 * D, PROJ_HIDDEN)
    p_fc2_w, p_fc2_b = dense(next(keys), PROJ_HIDDEN, MODEL_DIM)
    w1_eff = (p_fc1_w[:D] + p_fc1_w[D:]).astype(jnp.bfloat16)   # concat fold
    proj = dict(fc1_w_eff=w1_eff, fc1_b=p_fc1_b.reshape(1, PROJ_HIDDEN),
                fc2_w=p_fc2_w.astype(jnp.bfloat16),
                fc2_b=p_fc2_b.reshape(1, MODEL_DIM))

    return dict(vit=vit, proj=proj)


# ----------------------------------- main --------------------------------------
if __name__ == "__main__":
    key = jax.random.PRNGKey(0)
    k_img, k_par = jax.random.split(key)

    B = 2
    images = jax.random.normal(k_img, (B, CH, IMG, IMG), jnp.float32)  # NCHW
    params = init_params(k_par)

    out = jax.jit(vision_encoder)(images, params)
    out = jax.block_until_ready(out)

    assert out.shape == (B, EMBED_LEN, MODEL_DIM), out.shape
    assert bool(jnp.all(jnp.isfinite(out)))
    print("KERNEL_OK")
</pallas_src>

<mosaic_0001>
module attributes {stable_mosaic.version = 11 : i64} {
  func.func @_patch_embed_kernel(%arg0: i32, %arg1: memref<1x16x12xf32, #tpu.memory_space<vmem>>, %arg2: memref<12x64xbf16, #tpu.memory_space<vmem>>, %arg3: memref<1x64xf32, #tpu.memory_space<vmem>>, %arg4: memref<16x64xf32, #tpu.memory_space<vmem>>, %arg5: memref<1x16x64xbf16, #tpu.memory_space<vmem>>) attributes {dimension_semantics = [#tpu.dimension_semantics<parallel>], iteration_bounds = array<i64: 2>, scalar_prefetch = 0 : i64, scratch_operands = 0 : i64, tpu.core_type = #tpu.core_type<tc>, window_params = [{transform_indices = @transform_0, window_bounds = array<i64: 1, 16, 12>}, {pipeline_mode = #tpu.pipeline_mode<synchronous>, transform_indices = @transform_1, window_bounds = array<i64: 12, 64>}, {pipeline_mode = #tpu.pipeline_mode<synchronous>, transform_indices = @transform_2, window_bounds = array<i64: 1, 64>}, {pipeline_mode = #tpu.pipeline_mode<synchronous>, transform_indices = @transform_3, window_bounds = array<i64: 16, 64>}, {transform_indices = @transform_4, window_bounds = array<i64: 1, 16, 64>}]} {
    %c0 = arith.constant 0 : index
    %c0_0 = arith.constant 0 : index
    %c0_1 = arith.constant 0 : index
    %0 = vector.load %arg1[%c0, %c0_0, %c0_1] : memref<1x16x12xf32, #tpu.memory_space<vmem>>, vector<1x16x12xf32>
    %1 = vector.shape_cast %0 : vector<1x16x12xf32> to vector<16x12xf32>
    %2 = arith.truncf %1 : vector<16x12xf32> to vector<16x12xbf16>
    %c0_2 = arith.constant 0 : index
    %c0_3 = arith.constant 0 : index
    %3 = vector.load %arg2[%c0_2, %c0_3] : memref<12x64xbf16, #tpu.memory_space<vmem>>, vector<12x64xbf16>
    %cst = arith.constant dense<0.000000e+00> : vector<16x64xf32>
    %4 = tpu.matmul %2, %3, %cst {dimension_numbers = #tpu.dot_dimension_numbers<[1], [0], [0], [1], [0, 0, 1, 1], [], []>} : vector<16x12xbf16>, vector<12x64xbf16>, vector<16x64xf32> -> vector<16x64xf32>
    %c0_4 = arith.constant 0 : index
    %c0_5 = arith.constant 0 : index
    %5 = vector.load %arg3[%c0_4, %c0_5] : memref<1x64xf32, #tpu.memory_space<vmem>>, vector<1x64xf32>
    %6 = vector.broadcast %5 : vector<1x64xf32> to vector<16x64xf32>
    %7 = arith.addf %4, %6 : vector<16x64xf32>
    %c0_6 = arith.constant 0 : index
    %c0_7 = arith.constant 0 : index
    %8 = vector.load %arg4[%c0_6, %c0_7] : memref<16x64xf32, #tpu.memory_space<vmem>>, vector<16x64xf32>
    %9 = arith.addf %7, %8 : vector<16x64xf32>
    %10 = arith.truncf %9 : vector<16x64xf32> to vector<16x64xbf16>
    %c0_8 = arith.constant 0 : index
    %c0_9 = arith.constant 0 : index
    %c0_10 = arith.constant 0 : index
    %11 = vector.load %arg5[%c0_8, %c0_9, %c0_10] : memref<1x16x64xbf16, #tpu.memory_space<vmem>>, vector<1x16x64xbf16>
    %12 = vector.shape_cast %11 : vector<1x16x64xbf16> to vector<16x64xbf16>
    %13 = vector.shape_cast %10 : vector<16x64xbf16> to vector<1x16x64xbf16>
    tpu.vector_store %arg5[%c0_8, %c0_9, %c0_10], %13 {strides = array<i32>} : memref<1x16x64xbf16, #tpu.memory_space<vmem>>, vector<1x16x64xbf16>,
    return
  }
  func.func @transform_0(%arg0: i32) -> (i32, i32, i32) {
    %c0_i32 = arith.constant 0 : i32
    %c0_i32_0 = arith.constant 0 : i32
    %c0_i32_1 = arith.constant 0 : i32
    return %arg0, %c0_i32, %c0_i32_0 : i32, i32, i32
  }
  func.func @transform_1(%arg0: i32) -> (i32, i32) {
    %c0_i32 = arith.constant 0 : i32
    %c0_i32_0 = arith.constant 0 : i32
    %c0_i32_1 = arith.constant 0 : i32
    return %c0_i32, %c0_i32_0 : i32, i32
  }
  func.func @transform_2(%arg0: i32) -> (i32, i32) {
    %c0_i32 = arith.constant 0 : i32
    %c0_i32_0 = arith.constant 0 : i32
    %c0_i32_1 = arith.constant 0 : i32
    return %c0_i32, %c0_i32_0 : i32, i32
  }
  func.func @transform_3(%arg0: i32) -> (i32, i32) {
    %c0_i32 = arith.constant 0 : i32
    %c0_i32_0 = arith.constant 0 : i32
    %c0_i32_1 = arith.constant 0 : i32
    return %c0_i32, %c0_i32_0 : i32, i32
  }
  func.func @transform_4(%arg0: i32) -> (i32, i32, i32) {
    %c0_i32 = arith.constant 0 : i32
    %c0_i32_0 = arith.constant 0 : i32
    %c0_i32_1 = arith.constant 0 : i32
    return %arg0, %c0_i32, %c0_i32_0 : i32, i32, i32
  }
}

module attributes {stable_mosaic.version = 11 : i64} {
  func.func @_ln_mlp_kernel(%arg0: i32, %arg1: i32, %arg2: memref<1x16x64xbf16, #tpu.memory_space<vmem>>, %arg3: memref<1x64xf32, #tpu.memory_space<vmem>>, %arg4: memref<1x64xf32, #tpu.memory_space<vmem>>, %arg5: memref<64x128xbf16, #tpu.memory_space<vmem>>, %arg6: memref<1x128xf32, #tpu.memory_space<vmem>>, %arg7: memref<128x64xbf16, #tpu.memory_space<vmem>>, %arg8: memref<1x64xf32, #tpu.memory_space<vmem>>, %arg9: memref<1x16x64xbf16, #tpu.memory_space<vmem>>, %arg10: memref<16x64xf32, #tpu.memory_space<vmem>>, %arg11: memref<16x64xf32, #tpu.memory_space<vmem>>) attributes {dimension_semantics = [#tpu.dimension_semantics<parallel>, #tpu.dimension_semantics<arbitrary>], iteration_bounds = array<i64: 2, 1>, scalar_prefetch = 0 : i64, scratch_operands = 2 : i64, tpu.core_type = #tpu.core_type<tc>, window_params = [{transform_indices = @transform_0, window_bounds = array<i64: 1, 16, 64>}, {pipeline_mode = #tpu.pipeline_mode<synchronous>, transform_indices = @transform_1, window_bounds = array<i64: 1, 64>}, {pipeline_mode = #tpu.pipeline_mode<synchronous>, transform_indices = @transform_2, window_bounds = array<i64: 1, 64>}, {transform_indices = @transform_3, window_bounds = array<i64: 64, 128>}, {transform_indices = @transform_4, window_bounds = array<i64: 1, 128>}, {transform_indices = @transform_5, window_bounds = array<i64: 128, 64>}, {pipeline_mode = #tpu.pipeline_mode<synchronous>, transform_indices = @transform_6, window_bounds = array<i64: 1, 64>}, {transform_indices = @transform_7, window_bounds = array<i64: 1, 16, 64>}]} {
    %c0_i32 = arith.constant 0 : i32
    %0 = arith.cmpi eq, %arg1, %c0_i32 : i32
    %1 = arith.extui %0 : i1 to i32
    %c0_i32_0 = arith.constant 0 : i32
    %2 = arith.cmpi ne, %1, %c0_i32_0 : i32
    scf.if %2 {
      %c0_19 = arith.constant 0 : index
      %c0_20 = arith.constant 0 : index
      %c0_21 = arith.constant 0 : index
      %32 = vector.load %arg2[%c0_19, %c0_20, %c0_21] : memref<1x16x64xbf16, #tpu.memory_space<vmem>>, vector<1x16x64xbf16>
      %33 = vector.shape_cast %32 : vector<1x16x64xbf16> to vector<16x64xbf16>
      %34 = arith.extf %33 : vector<16x64xbf16> to vector<16x64xf32>
      %c0_22 = arith.constant 0 : index
      %c0_23 = arith.constant 0 : index
      %35 = vector.load %arg3[%c0_22, %c0_23] : memref<1x64xf32, #tpu.memory_space<vmem>>, vector<1x64xf32>
      %c0_24 = arith.constant 0 : index
      %c0_25 = arith.constant 0 : index
      %36 = vector.load %arg4[%c0_24, %c0_25] : memref<1x64xf32, #tpu.memory_space<vmem>>, vector<1x64xf32>
      %cst_26 = arith.constant dense<0.000000e+00> : vector<16xf32>
      %37 = vector.multi_reduction <add>, %34, %cst_26 [1] : vector<16x64xf32> to vector<16xf32>
      %38 = vector.shape_cast %37 : vector<16xf32> to vector<16x1xf32>
      %cst_27 = arith.constant 6.400000e+01 : f32
      %39 = vector.broadcast %cst_27 : f32 to vector<16x1xf32>
      %40 = arith.divf %38, %39 : vector<16x1xf32>
      %41 = vector.broadcast %40 : vector<16x1xf32> to vector<16x64xf32>
      %42 = arith.subf %34, %41 : vector<16x64xf32>
      %43 = arith.mulf %42, %42 : vector<16x64xf32>
      %cst_28 = arith.constant dense<0.000000e+00> : vector<16xf32>
      %44 = vector.multi_reduction <add>, %43, %cst_28 [1] : vector<16x64xf32> to vector<16xf32>
      %45 = vector.shape_cast %44 : vector<16xf32> to vector<16x1xf32>
      %cst_29 = arith.constant 6.400000e+01 : f32
      %46 = vector.broadcast %cst_29 : f32 to vector<16x1xf32>
      %47 = arith.divf %45, %46 : vector<16x1xf32>
      %cst_30 = arith.constant 9.99999974E-6 : f32
      %48 = vector.broadcast %cst_30 : f32 to vector<16x1xf32>
      %49 = arith.addf %47, %48 : vector<16x1xf32>
      %50 = math.rsqrt %49 : vector<16x1xf32>
      %51 = vector.broadcast %50 : vector<16x1xf32> to vector<16x64xf32>
      %52 = arith.mulf %42, %51 : vector<16x64xf32>
      %53 = vector.broadcast %35 : vector<1x64xf32> to vector<16x64xf32>
      %54 = arith.mulf %52, %53 : vector<16x64xf32>
      %55 = vector.broadcast %36 : vector<1x64xf32> to vector<16x64xf32>
      %56 = arith.addf %54, %55 : vector<16x64xf32>
      %c0_31 = arith.constant 0 : index
      %c0_32 = arith.constant 0 : index
      %57 = vector.load %arg10[%c0_31, %c0_32] : memref<16x64xf32, #tpu.memory_space<vmem>>, vector<16x64xf32>
      tpu.vector_store %arg10[%c0_31, %c0_32], %56 {strides = array<i32>} : memref<16x64xf32, #tpu.memory_space<vmem>>, vector<16x64xf32>,
      %cst_33 = arith.constant 0.000000e+00 : f32
      %58 = vector.broadcast %cst_33 : f32 to vector<16x64xf32>
      %c0_34 = arith.constant 0 : index
      %c0_35 = arith.constant 0 : index
      %59 = vector.load %arg8[%c0_34, %c0_35] : memref<1x64xf32, #tpu.memory_space<vmem>>, vector<1x64xf32>
      %60 = vector.broadcast %59 : vector<1x64xf32> to vector<16x64xf32>
      %61 = arith.addf %58, %60 : vector<16x64xf32>
      %62 = arith.addf %61, %34 : vector<16x64xf32>
      %c0_36 = arith.constant 0 : index
      %c0_37 = arith.constant 0 : index
      %63 = vector.load %arg11[%c0_36, %c0_37] : memref<16x64xf32, #tpu.memory_space<vmem>>, vector<16x64xf32>
      tpu.vector_store %arg11[%c0_36, %c0_37], %62 {strides = array<i32>} : memref<16x64xf32, #tpu.memory_space<vmem>>, vector<16x64xf32>,
    } else {
    }
    %c0 = arith.constant 0 : index
    %c0_1 = arith.constant 0 : index
    %3 = vector.load %arg10[%c0, %c0_1] : memref<16x64xf32, #tpu.memory_space<vmem>>, vector<16x64xf32>
    %4 = arith.truncf %3 : vector<16x64xf32> to vector<16x64xbf16>
    %c0_2 = arith.constant 0 : index
    %c0_3 = arith.constant 0 : index
    %5 = vector.load %arg5[%c0_2, %c0_3] : memref<64x128xbf16, #tpu.memory_space<vmem>>, vector<64x128xbf16>
    %cst = arith.constant dense<0.000000e+00> : vector<16x128xf32>
    %6 = tpu.matmul %4, %5, %cst {dimension_numbers = #tpu.dot_dimension_numbers<[1], [0], [0], [1], [0, 0, 1, 1], [], []>} : vector<16x64xbf16>, vector<64x128xbf16>, vector<16x128xf32> -> vector<16x128xf32>
    %c0_4 = arith.constant 0 : index
    %c0_5 = arith.constant 0 : index
    %7 = vector.load %arg6[%c0_4, %c0_5] : memref<1x128xf32, #tpu.memory_space<vmem>>, vector<1x128xf32>
    %8 = vector.broadcast %7 : vector<1x128xf32> to vector<16x128xf32>
    %9 = arith.addf %6, %8 : vector<16x128xf32>
    %cst_6 = arith.constant 5.000000e-01 : f32
    %10 = vector.broadcast %cst_6 : f32 to vector<16x128xf32>
    %11 = arith.mulf %10, %9 : vector<16x128xf32>
    %cst_7 = arith.constant 4.471500e-02 : f32
    %12 = vector.broadcast %cst_7 : f32 to vector<16x128xf32>
    %13 = arith.mulf %12, %9 : vector<16x128xf32>
    %14 = arith.mulf %13, %9 : vector<16x128xf32>
    %15 = arith.mulf %14, %9 : vector<16x128xf32>
    %16 = arith.addf %9, %15 : vector<16x128xf32>
    %cst_8 = arith.constant 0.797884583 : f32
    %17 = vector.broadcast %cst_8 : f32 to vector<16x128xf32>
    %18 = arith.mulf %17, %16 : vector<16x128xf32>
    %19 = math.tanh %18 : vector<16x128xf32>
    %cst_9 = arith.constant 1.000000e+00 : f32
    %20 = vector.broadcast %cst_9 : f32 to vector<16x128xf32>
    %21 = arith.addf %20, %19 : vector<16x128xf32>
    %22 = arith.mulf %11, %21 : vector<16x128xf32>
    %c0_10 = arith.constant 0 : index
    %c0_11 = arith.constant 0 : index
    %23 = vector.load %arg11[%c0_10, %c0_11] : memref<16x64xf32, #tpu.memory_space<vmem>>, vector<16x64xf32>
    %24 = arith.truncf %22 : vector<16x128xf32> to vector<16x128xbf16>
    %c0_12 = arith.constant 0 : index
    %c0_13 = arith.constant 0 : index
    %25 = vector.load %arg7[%c0_12, %c0_13] : memref<128x64xbf16, #tpu.memory_space<vmem>>, vector<128x64xbf16>
    %cst_14 = arith.constant dense<0.000000e+00> : vector<16x64xf32>
    %26 = tpu.matmul %24, %25, %cst_14 {dimension_numbers = #tpu.dot_dimension_numbers<[1], [0], [0], [1], [0, 0, 1, 1], [], []>} : vector<16x128xbf16>, vector<128x64xbf16>, vector<16x64xf32> -> vector<16x64xf32>
    %27 = arith.addf %23, %26 : vector<16x64xf32>
    %c0_15 = arith.constant 0 : index
    %c0_16 = arith.constant 0 : index
    %28 = vector.load %arg11[%c0_15, %c0_16] : memref<16x64xf32, #tpu.memory_space<vmem>>, vector<16x64xf32>
    tpu.vector_store %arg11[%c0_15, %c0_16], %27 {strides = array<i32>} : memref<16x64xf32, #tpu.memory_space<vmem>>, vector<16x64xf32>,
    %c0_i32_17 = arith.constant 0 : i32
    %29 = arith.cmpi eq, %arg1, %c0_i32_17 : i32
    %30 = arith.extui %29 : i1 to i32
    %c0_i32_18 = arith.constant 0 : i32
    %31 = arith.cmpi ne, %30, %c0_i32_18 : i32
    scf.if %31 {
      %c0_19 = arith.constant 0 : index
      %c0_20 = arith.constant 0 : index
      %32 = vector.load %arg11[%c0_19, %c0_20] : memref<16x64xf32, #tpu.memory_space<vmem>>, vector<16x64xf32>
      %33 = arith.truncf %32 : vector<16x64xf32> to vector<16x64xbf16>
      %c0_21 = arith.constant 0 : index
      %c0_22 = arith.constant 0 : index
      %c0_23 = arith.constant 0 : index
      %34 = vector.load %arg9[%c0_21, %c0_22, %c0_23] : memref<1x16x64xbf16, #tpu.memory_space<vmem>>, vector<1x16x64xbf16>
      %35 = vector.shape_cast %34 : vector<1x16x64xbf16> to vector<16x64xbf16>
      %36 = vector.shape_cast %33 : vector<16x64xbf16> to vector<1x16x64xbf16>
      tpu.vector_store %arg9[%c0_21, %c0_22, %c0_23], %36 {strides = array<i32>} : memref<1x16x64xbf16, #tpu.memory_space<vmem>>, vector<1x16x64xbf16>,
    } else {
    }
    return
  }
  func.func @transform_0(%arg0: i32, %arg1: i32) -> (i32, i32, i32) {
    %c0_i32 = arith.constant 0 : i32
    %c0_i32_0 = arith.constant 0 : i32
    %c0_i32_1 = arith.constant 0 : i32
    return %arg0, %c0_i32, %c0_i32_0 : i32, i32, i32
  }
  func.func @transform_1(%arg0: i32, %arg1: i32) -> (i32, i32) {
    %c0_i32 = arith.constant 0 : i32
    %c0_i32_0 = arith.constant 0 : i32
    %c0_i32_1 = arith.constant 0 : i32
    return %c0_i32, %c0_i32_0 : i32, i32
  }
  func.func @transform_2(%arg0: i32, %arg1: i32) -> (i32, i32) {
    %c0_i32 = arith.constant 0 : i32
    %c0_i32_0 = arith.constant 0 : i32
    %c0_i32_1 = arith.constant 0 : i32
    return %c0_i32, %c0_i32_0 : i32, i32
  }
  func.func @transform_3(%arg0: i32, %arg1: i32) -> (i32, i32) {
    %c0_i32 = arith.constant 0 : i32
    %c0_i32_0 = arith.constant 0 : i32
    return %c0_i32, %arg1 : i32, i32
  }
  func.func @transform_4(%arg0: i32, %arg1: i32) -> (i32, i32) {
    %c0_i32 = arith.constant 0 : i32
    %c0_i32_0 = arith.constant 0 : i32
    return %c0_i32, %arg1 : i32, i32
  }
  func.func @transform_5(%arg0: i32, %arg1: i32) -> (i32, i32) {
    %c0_i32 = arith.constant 0 : i32
    %c0_i32_0 = arith.constant 0 : i32
    return %arg1, %c0_i32 : i32, i32
  }
  func.func @transform_6(%arg0: i32, %arg1: i32) -> (i32, i32) {
    %c0_i32 = arith.constant 0 : i32
    %c0_i32_0 = arith.constant 0 : i32
    %c0_i32_1 = arith.constant 0 : i32
    return %c0_i32, %c0_i32_0 : i32, i32
  }
  func.func @transform_7(%arg0: i32, %arg1: i32) -> (i32, i32, i32) {
    %c0_i32 = arith.constant 0 : i32
    %c0_i32_0 = arith.constant 0 : i32
    %c0_i32_1 = arith.constant 0 : i32
    return %arg0, %c0_i32, %c0_i32_0 : i32, i32, i32
  }
}

module attributes {stable_mosaic.version = 11 : i64} {
  func.func @_attn_block_kernel(%arg0: i32, %arg1: memref<1x16x64xbf16, #tpu.memory_space<vmem>>, %arg2: memref<1x64xf32, #tpu.memory_space<vmem>>, %arg3: memref<1x64xf32, #tpu.memory_space<vmem>>, %arg4: memref<64x64xbf16, #tpu.memory_space<vmem>>, %arg5: memref<64x64xbf16, #tpu.memory_space<vmem>>, %arg6: memref<64x64xbf16, #tpu.memory_space<vmem>>, %arg7: memref<1x64xf32, #tpu.memory_space<vmem>>, %arg8: memref<1x64xf32, #tpu.memory_space<vmem>>, %arg9: memref<1x64xf32, #tpu.memory_space<vmem>>, %arg10: memref<64x64xbf16, #tpu.memory_space<vmem>>, %arg11: memref<1x64xf32, #tpu.memory_space<vmem>>, %arg12: memref<1x16x64xbf16, #tpu.memory_space<vmem>>) attributes {dimension_semantics = [#tpu.dimension_semantics<parallel>], iteration_bounds = array<i64: 2>, scalar_prefetch = 0 : i64, scratch_operands = 0 : i64, tpu.core_type = #tpu.core_type<tc>, window_params = [{transform_indices = @transform_0, window_bounds = array<i64: 1, 16, 64>}, {pipeline_mode = #tpu.pipeline_mode<synchronous>, transform_indices = @transform_1, window_bounds = array<i64: 1, 64>}, {pipeline_mode = #tpu.pipeline_mode<synchronous>, transform_indices = @transform_2, window_bounds = array<i64: 1, 64>}, {pipeline_mode = #tpu.pipeline_mode<synchronous>, transform_indices = @transform_3, window_bounds = array<i64: 64, 64>}, {pipeline_mode = #tpu.pipeline_mode<synchronous>, transform_indices = @transform_4, window_bounds = array<i64: 64, 64>}, {pipeline_mode = #tpu.pipeline_mode<synchronous>, transform_indices = @transform_5, window_bounds = array<i64: 64, 64>}, {pipeline_mode = #tpu.pipeline_mode<synchronous>, transform_indices = @transform_6, window_bounds = array<i64: 1, 64>}, {pipeline_mode = #tpu.pipeline_mode<synchronous>, transform_indices = @transform_7, window_bounds = array<i64: 1, 64>}, {pipeline_mode = #tpu.pipeline_mode<synchronous>, transform_indices = @transform_8, window_bounds = array<i64: 1, 64>}, {pipeline_mode = #tpu.pipeline_mode<synchronous>, transform_indices = @transform_9, window_bounds = array<i64: 64, 64>}, {pipeline_mode = #tpu.pipeline_mode<synchronous>, transform_indices = @transform_10, window_bounds = array<i64: 1, 64>}, {transform_indices = @transform_11, window_bounds = array<i64: 1, 16, 64>}]} {
    %c0 = arith.constant 0 : index
    %c0_0 = arith.constant 0 : index
    %c0_1 = arith.constant 0 : index
    %0 = vector.load %arg1[%c0, %c0_0, %c0_1] : memref<1x16x64xbf16, #tpu.memory_space<vmem>>, vector<1x16x64xbf16>
    %1 = vector.shape_cast %0 : vector<1x16x64xbf16> to vector<16x64xbf16>
    %2 = arith.extf %1 : vector<16x64xbf16> to vector<16x64xf32>
    %c0_2 = arith.constant 0 : index
    %c0_3 = arith.constant 0 : index
    %3 = vector.load %arg2[%c0_2, %c0_3] : memref<1x64xf32, #tpu.memory_space<vmem>>, vector<1x64xf32>
    %c0_4 = arith.constant 0 : index
    %c0_5 = arith.constant 0 : index
    %4 = vector.load %arg3[%c0_4, %c0_5] : memref<1x64xf32, #tpu.memory_space<vmem>>, vector<1x64xf32>
    %cst = arith.constant dense<0.000000e+00> : vector<16xf32>
    %5 = vector.multi_reduction <add>, %2, %cst [1] : vector<16x64xf32> to vector<16xf32>
    %6 = vector.shape_cast %5 : vector<16xf32> to vector<16x1xf32>
    %cst_6 = arith.constant 6.400000e+01 : f32
    %7 = vector.broadcast %cst_6 : f32 to vector<16x1xf32>
    %8 = arith.divf %6, %7 : vector<16x1xf32>
    %9 = vector.broadcast %8 : vector<16x1xf32> to vector<16x64xf32>
    %10 = arith.subf %2, %9 : vector<16x64xf32>
    %11 = arith.mulf %10, %10 : vector<16x64xf32>
    %cst_7 = arith.constant dense<0.000000e+00> : vector<16xf32>
    %12 = vector.multi_reduction <add>, %11, %cst_7 [1] : vector<16x64xf32> to vector<16xf32>
    %13 = vector.shape_cast %12 : vector<16xf32> to vector<16x1xf32>
    %cst_8 = arith.constant 6.400000e+01 : f32
    %14 = vector.broadcast %cst_8 : f32 to vector<16x1xf32>
    %15 = arith.divf %13, %14 : vector<16x1xf32>
    %cst_9 = arith.constant 9.99999974E-6 : f32
    %16 = vector.broadcast %cst_9 : f32 to vector<16x1xf32>
    %17 = arith.addf %15, %16 : vector<16x1xf32>
    %18 = math.rsqrt %17 : vector<16x1xf32>
    %19 = vector.broadcast %18 : vector<16x1xf32> to vector<16x64xf32>
    %20 = arith.mulf %10, %19 : vector<16x64xf32>
    %21 = vector.broadcast %3 : vector<1x64xf32> to vector<16x64xf32>
    %22 = arith.mulf %20, %21 : vector<16x64xf32>
    %23 = vector.broadcast %4 : vector<1x64xf32> to vector<16x64xf32>
    %24 = arith.addf %22, %23 : vector<16x64xf32>
    %25 = arith.truncf %24 : vector<16x64xf32> to vector<16x64xbf16>
    %c0_10 = arith.constant 0 : index
    %c0_11 = arith.constant 0 : index
    %26 = vector.load %arg4[%c0_10, %c0_11] : memref<64x64xbf16, #tpu.memory_space<vmem>>, vector<64x64xbf16>
    %cst_12 = arith.constant dense<0.000000e+00> : vector<16x64xf32>
    %27 = tpu.matmul %25, %26, %cst_12 {dimension_numbers = #tpu.dot_dimension_numbers<[1], [0], [0], [1], [0, 0, 1, 1], [], []>} : vector<16x64xbf16>, vector<64x64xbf16>, vector<16x64xf32> -> vector<16x64xf32>
    %c0_13 = arith.constant 0 : index
    %c0_14 = arith.constant 0 : index
    %28 = vector.load %arg7[%c0_13, %c0_14] : memref<1x64xf32, #tpu.memory_space<vmem>>, vector<1x64xf32>
    %29 = vector.broadcast %28 : vector<1x64xf32> to vector<16x64xf32>
    %30 = arith.addf %27, %29 : vector<16x64xf32>
    %31 = arith.truncf %30 : vector<16x64xf32> to vector<16x64xbf16>
    %32 = vector.shape_cast %31 : vector<16x64xbf16> to vector<16x4x16xbf16>
    %33 = tpu.transpose %32, [1, 0, 2] : vector<16x4x16xbf16> -> vector<4x16x16xbf16>
    %c0_15 = arith.constant 0 : index
    %c0_16 = arith.constant 0 : index
    %34 = vector.load %arg5[%c0_15, %c0_16] : memref<64x64xbf16, #tpu.memory_space<vmem>>, vector<64x64xbf16>
    %cst_17 = arith.constant dense<0.000000e+00> : vector<16x64xf32>
    %35 = tpu.matmul %25, %34, %cst_17 {dimension_numbers = #tpu.dot_dimension_numbers<[1], [0], [0], [1], [0, 0, 1, 1], [], []>} : vector<16x64xbf16>, vector<64x64xbf16>, vector<16x64xf32> -> vector<16x64xf32>
    %c0_18 = arith.constant 0 : index
    %c0_19 = arith.constant 0 : index
    %36 = vector.load %arg8[%c0_18, %c0_19] : memref<1x64xf32, #tpu.memory_space<vmem>>, vector<1x64xf32>
    %37 = vector.broadcast %36 : vector<1x64xf32> to vector<16x64xf32>
    %38 = arith.addf %35, %37 : vector<16x64xf32>
    %39 = arith.truncf %38 : vector<16x64xf32> to vector<16x64xbf16>
    %40 = vector.shape_cast %39 : vector<16x64xbf16> to vector<16x4x16xbf16>
    %41 = tpu.transpose %40, [1, 0, 2] : vector<16x4x16xbf16> -> vector<4x16x16xbf16>
    %c0_20 = arith.constant 0 : index
    %c0_21 = arith.constant 0 : index
    %42 = vector.load %arg6[%c0_20, %c0_21] : memref<64x64xbf16, #tpu.memory_space<vmem>>, vector<64x64xbf16>
    %cst_22 = arith.constant dense<0.000000e+00> : vector<16x64xf32>
    %43 = tpu.matmul %25, %42, %cst_22 {dimension_numbers = #tpu.dot_dimension_numbers<[1], [0], [0], [1], [0, 0, 1, 1], [], []>} : vector<16x64xbf16>, vector<64x64xbf16>, vector<16x64xf32> -> vector<16x64xf32>
    %c0_23 = arith.constant 0 : index
    %c0_24 = arith.constant 0 : index
    %44 = vector.load %arg9[%c0_23, %c0_24] : memref<1x64xf32, #tpu.memory_space<vmem>>, vector<1x64xf32>
    %45 = vector.broadcast %44 : vector<1x64xf32> to vector<16x64xf32>
    %46 = arith.addf %43, %45 : vector<16x64xf32>
    %47 = arith.truncf %46 : vector<16x64xf32> to vector<16x64xbf16>
    %48 = vector.shape_cast %47 : vector<16x64xbf16> to vector<16x4x16xbf16>
    %49 = tpu.transpose %48, [1, 0, 2] : vector<16x4x16xbf16> -> vector<4x16x16xbf16>
    "tpu.trace_start"() <{level = 10 : i32, message = "hqd,hkd->hqk"}> : () -> ()
    %cst_25 = arith.constant dense<0.000000e+00> : vector<4x16x16xf32>
    %50 = tpu.matmul %33, %41, %cst_25 {dimension_numbers = #tpu.dot_dimension_numbers<[2], [2], [1], [1], [0, 0, 0, 1, 1, 1], [0], [0]>} : vector<4x16x16xbf16>, vector<4x16x16xbf16>, vector<4x16x16xf32> -> vector<4x16x16xf32>
    "tpu.trace_stop"() : () -> ()
    %cst_26 = arith.constant dense<0xFF800000> : vector<4x16xf32>
    %51 = vector.multi_reduction <maximumf>, %50, %cst_26 [2] : vector<4x16x16xf32> to vector<4x16xf32>
    %52 = vector.shape_cast %51 : vector<4x16xf32> to vector<4x16x1xf32>
    %53 = vector.broadcast %52 : vector<4x16x1xf32> to vector<4x16x16xf32>
    %54 = arith.subf %50, %53 : vector<4x16x16xf32>
    %55 = math.exp %54 : vector<4x16x16xf32>
    %cst_27 = arith.constant dense<0.000000e+00> : vector<4x16xf32>
    %56 = vector.multi_reduction <add>, %55, %cst_27 [2] : vector<4x16x16xf32> to vector<4x16xf32>
    %57 = vector.shape_cast %56 : vector<4x16xf32> to vector<4x16x1xf32>
    %58 = tpu.reciprocal %57 {approx = true} : vector<4x16x1xf32> -> vector<4x16x1xf32>
    %59 = vector.broadcast %58 : vector<4x16x1xf32> to vector<4x16x16xf32>
    %60 = arith.mulf %55, %59 : vector<4x16x16xf32>
    %61 = arith.truncf %60 : vector<4x16x16xf32> to vector<4x16x16xbf16>
    "tpu.trace_start"() <{level = 10 : i32, message = "hqk,hkd->hqd"}> : () -> ()
    %cst_28 = arith.constant dense<0.000000e+00> : vector<4x16x16xf32>
    %62 = tpu.matmul %61, %49, %cst_28 {dimension_numbers = #tpu.dot_dimension_numbers<[2], [1], [1], [2], [0, 0, 0, 1, 1, 2], [0], [0]>} : vector<4x16x16xbf16>, vector<4x16x16xbf16>, vector<4x16x16xf32> -> vector<4x16x16xf32>
    "tpu.trace_stop"() : () -> ()
    %63 = tpu.transpose %62, [1, 0, 2] : vector<4x16x16xf32> -> vector<16x4x16xf32>
    %64 = vector.shape_cast %63 : vector<16x4x16xf32> to vector<16x64xf32>
    %c0_29 = arith.constant 0 : index
    %c0_30 = arith.constant 0 : index
    %65 = vector.load %arg11[%c0_29, %c0_30] : memref<1x64xf32, #tpu.memory_space<vmem>>, vector<1x64xf32>
    %66 = vector.broadcast %65 : vector<1x64xf32> to vector<16x64xf32>
    %67 = arith.addf %2, %66 : vector<16x64xf32>
    %68 = arith.truncf %64 : vector<16x64xf32> to vector<16x64xbf16>
    %c0_31 = arith.constant 0 : index
    %c0_32 = arith.constant 0 : index
    %69 = vector.load %arg10[%c0_31, %c0_32] : memref<64x64xbf16, #tpu.memory_space<vmem>>, vector<64x64xbf16>
    %cst_33 = arith.constant dense<0.000000e+00> : vector<16x64xf32>
    %70 = tpu.matmul %68, %69, %cst_33 {dimension_numbers = #tpu.dot_dimension_numbers<[1], [0], [0], [1], [0, 0, 1, 1], [], []>} : vector<16x64xbf16>, vector<64x64xbf16>, vector<16x64xf32> -> vector<16x64xf32>
    %71 = arith.addf %67, %70 : vector<16x64xf32>
    %72 = arith.truncf %71 : vector<16x64xf32> to vector<16x64xbf16>
    %c0_34 = arith.constant 0 : index
    %c0_35 = arith.constant 0 : index
    %c0_36 = arith.constant 0 : index
    %73 = vector.load %arg12[%c0_34, %c0_35, %c0_36] : memref<1x16x64xbf16, #tpu.memory_space<vmem>>, vector<1x16x64xbf16>
    %74 = vector.shape_cast %73 : vector<1x16x64xbf16> to vector<16x64xbf16>
    %75 = vector.shape_cast %72 : vector<16x64xbf16> to vector<1x16x64xbf16>
    tpu.vector_store %arg12[%c0_34, %c0_35, %c0_36], %75 {strides = array<i32>} : memref<1x16x64xbf16, #tpu.memory_space<vmem>>, vector<1x16x64xbf16>,
    return
  }
  func.func @transform_0(%arg0: i32) -> (i32, i32, i32) {
    %c0_i32 = arith.constant 0 : i32
    %c0_i32_0 = arith.constant 0 : i32
    %c0_i32_1 = arith.constant 0 : i32
    return %arg0, %c0_i32, %c0_i32_0 : i32, i32, i32
  }
  func.func @transform_1(%arg0: i32) -> (i32, i32) {
    %c0_i32 = arith.constant 0 : i32
    %c0_i32_0 = arith.constant 0 : i32
    %c0_i32_1 = arith.constant 0 : i32
    return %c0_i32, %c0_i32_0 : i32, i32
  }
  func.func @transform_2(%arg0: i32) -> (i32, i32) {
    %c0_i32 = arith.constant 0 : i32
    %c0_i32_0 = arith.constant 0 : i32
    %c0_i32_1 = arith.constant 0 : i32
    return %c0_i32, %c0_i32_0 : i32, i32
  }
  func.func @transform_3(%arg0: i32) -> (i32, i32) {
    %c0_i32 = arith.constant 0 : i32
    %c0_i32_0 = arith.constant 0 : i32
    %c0_i32_1 = arith.constant 0 : i32
    return %c0_i32, %c0_i32_0 : i32, i32
  }
  func.func @transform_4(%arg0: i32) -> (i32, i32) {
    %c0_i32 = arith.constant 0 : i32
    %c0_i32_0 = arith.constant 0 : i32
    %c0_i32_1 = arith.constant 0 : i32
    return %c0_i32, %c0_i32_0 : i32, i32
  }
  func.func @transform_5(%arg0: i32) -> (i32, i32) {
    %c0_i32 = arith.constant 0 : i32
    %c0_i32_0 = arith.constant 0 : i32
    %c0_i32_1 = arith.constant 0 : i32
    return %c0_i32, %c0_i32_0 : i32, i32
  }
  func.func @transform_6(%arg0: i32) -> (i32, i32) {
    %c0_i32 = arith.constant 0 : i32
    %c0_i32_0 = arith.constant 0 : i32
    %c0_i32_1 = arith.constant 0 : i32
    return %c0_i32, %c0_i32_0 : i32, i32
  }
  func.func @transform_7(%arg0: i32) -> (i32, i32) {
    %c0_i32 = arith.constant 0 : i32
    %c0_i32_0 = arith.constant 0 : i32
    %c0_i32_1 = arith.constant 0 : i32
    return %c0_i32, %c0_i32_0 : i32, i32
  }
  func.func @transform_8(%arg0: i32) -> (i32, i32) {
    %c0_i32 = arith.constant 0 : i32
    %c0_i32_0 = arith.constant 0 : i32
    %c0_i32_1 = arith.constant 0 : i32
    return %c0_i32, %c0_i32_0 : i32, i32
  }
  func.func @transform_9(%arg0: i32) -> (i32, i32) {
    %c0_i32 = arith.constant 0 : i32
    %c0_i32_0 = arith.constant 0 : i32
    %c0_i32_1 = arith.constant 0 : i32
    return %c0_i32, %c0_i32_0 : i32, i32
  }
  func.func @transform_10(%arg0: i32) -> (i32, i32) {
    %c0_i32 = arith.constant 0 : i32
    %c0_i32_0 = arith.constant 0 : i32
    %c0_i32_1 = arith.constant 0 : i32
    return %c0_i32, %c0_i32_0 : i32, i32
  }
  func.func @transform_11(%arg0: i32) -> (i32, i32, i32) {
    %c0_i32 = arith.constant 0 : i32
    %c0_i32_0 = arith.constant 0 : i32
    %c0_i32_1 = arith.constant 0 : i32
    return %arg0, %c0_i32, %c0_i32_0 : i32, i32, i32
  }
}

module attributes {stable_mosaic.version = 11 : i64} {
  func.func @_ln_mlp_kernel(%arg0: i32, %arg1: i32, %arg2: memref<1x16x64xbf16, #tpu.memory_space<vmem>>, %arg3: memref<1x64xf32, #tpu.memory_space<vmem>>, %arg4: memref<1x64xf32, #tpu.memory_space<vmem>>, %arg5: memref<64x128xbf16, #tpu.memory_space<vmem>>, %arg6: memref<1x128xf32, #tpu.memory_space<vmem>>, %arg7: memref<128x64xbf16, #tpu.memory_space<vmem>>, %arg8: memref<1x64xf32, #tpu.memory_space<vmem>>, %arg9: memref<1x16x64xf32, #tpu.memory_space<vmem>>, %arg10: memref<16x64xf32, #tpu.memory_space<vmem>>, %arg11: memref<16x64xf32, #tpu.memory_space<vmem>>) attributes {dimension_semantics = [#tpu.dimension_semantics<parallel>, #tpu.dimension_semantics<arbitrary>], iteration_bounds = array<i64: 2, 2>, scalar_prefetch = 0 : i64, scratch_operands = 2 : i64, tpu.core_type = #tpu.core_type<tc>, window_params = [{transform_indices = @transform_0, window_bounds = array<i64: 1, 16, 64>}, {pipeline_mode = #tpu.pipeline_mode<synchronous>, transform_indices = @transform_1, window_bounds = array<i64: 1, 64>}, {pipeline_mode = #tpu.pipeline_mode<synchronous>, transform_indices = @transform_2, window_bounds = array<i64: 1, 64>}, {transform_indices = @transform_3, window_bounds = array<i64: 64, 128>}, {transform_indices = @transform_4, window_bounds = array<i64: 1, 128>}, {transform_indices = @transform_5, window_bounds = array<i64: 128, 64>}, {pipeline_mode = #tpu.pipeline_mode<synchronous>, transform_indices = @transform_6, window_bounds = array<i64: 1, 64>}, {transform_indices = @transform_7, window_bounds = array<i64: 1, 16, 64>}]} {
    %c0_i32 = arith.constant 0 : i32
    %0 = arith.cmpi eq, %arg1, %c0_i32 : i32
    %1 = arith.extui %0 : i1 to i32
    %c0_i32_0 = arith.constant 0 : i32
    %2 = arith.cmpi ne, %1, %c0_i32_0 : i32
    scf.if %2 {
      %c0_18 = arith.constant 0 : index
      %c0_19 = arith.constant 0 : index
      %c0_20 = arith.constant 0 : index
      %32 = vector.load %arg2[%c0_18, %c0_19, %c0_20] : memref<1x16x64xbf16, #tpu.memory_space<vmem>>, vector<1x16x64xbf16>
      %33 = vector.shape_cast %32 : vector<1x16x64xbf16> to vector<16x64xbf16>
      %34 = arith.extf %33 : vector<16x64xbf16> to vector<16x64xf32>
      %c0_21 = arith.constant 0 : index
      %c0_22 = arith.constant 0 : index
      %35 = vector.load %arg3[%c0_21, %c0_22] : memref<1x64xf32, #tpu.memory_space<vmem>>, vector<1x64xf32>
      %c0_23 = arith.constant 0 : index
      %c0_24 = arith.constant 0 : index
      %36 = vector.load %arg4[%c0_23, %c0_24] : memref<1x64xf32, #tpu.memory_space<vmem>>, vector<1x64xf32>
      %cst_25 = arith.constant dense<0.000000e+00> : vector<16xf32>
      %37 = vector.multi_reduction <add>, %34, %cst_25 [1] : vector<16x64xf32> to vector<16xf32>
      %38 = vector.shape_cast %37 : vector<16xf32> to vector<16x1xf32>
      %cst_26 = arith.constant 6.400000e+01 : f32
      %39 = vector.broadcast %cst_26 : f32 to vector<16x1xf32>
      %40 = arith.divf %38, %39 : vector<16x1xf32>
      %41 = vector.broadcast %40 : vector<16x1xf32> to vector<16x64xf32>
      %42 = arith.subf %34, %41 : vector<16x64xf32>
      %43 = arith.mulf %42, %42 : vector<16x64xf32>
      %cst_27 = arith.constant dense<0.000000e+00> : vector<16xf32>
      %44 = vector.multi_reduction <add>, %43, %cst_27 [1] : vector<16x64xf32> to vector<16xf32>
      %45 = vector.shape_cast %44 : vector<16xf32> to vector<16x1xf32>
      %cst_28 = arith.constant 6.400000e+01 : f32
      %46 = vector.broadcast %cst_28 : f32 to vector<16x1xf32>
      %47 = arith.divf %45, %46 : vector<16x1xf32>
      %cst_29 = arith.constant 9.99999974E-6 : f32
      %48 = vector.broadcast %cst_29 : f32 to vector<16x1xf32>
      %49 = arith.addf %47, %48 : vector<16x1xf32>
      %50 = math.rsqrt %49 : vector<16x1xf32>
      %51 = vector.broadcast %50 : vector<16x1xf32> to vector<16x64xf32>
      %52 = arith.mulf %42, %51 : vector<16x64xf32>
      %53 = vector.broadcast %35 : vector<1x64xf32> to vector<16x64xf32>
      %54 = arith.mulf %52, %53 : vector<16x64xf32>
      %55 = vector.broadcast %36 : vector<1x64xf32> to vector<16x64xf32>
      %56 = arith.addf %54, %55 : vector<16x64xf32>
      %c0_30 = arith.constant 0 : index
      %c0_31 = arith.constant 0 : index
      %57 = vector.load %arg10[%c0_30, %c0_31] : memref<16x64xf32, #tpu.memory_space<vmem>>, vector<16x64xf32>
      tpu.vector_store %arg10[%c0_30, %c0_31], %56 {strides = array<i32>} : memref<16x64xf32, #tpu.memory_space<vmem>>, vector<16x64xf32>,
      %cst_32 = arith.constant 0.000000e+00 : f32
      %58 = vector.broadcast %cst_32 : f32 to vector<16x64xf32>
      %c0_33 = arith.constant 0 : index
      %c0_34 = arith.constant 0 : index
      %59 = vector.load %arg8[%c0_33, %c0_34] : memref<1x64xf32, #tpu.memory_space<vmem>>, vector<1x64xf32>
      %60 = vector.broadcast %59 : vector<1x64xf32> to vector<16x64xf32>
      %61 = arith.addf %58, %60 : vector<16x64xf32>
      %c0_35 = arith.constant 0 : index
      %c0_36 = arith.constant 0 : index
      %62 = vector.load %arg11[%c0_35, %c0_36] : memref<16x64xf32, #tpu.memory_space<vmem>>, vector<16x64xf32>
      tpu.vector_store %arg11[%c0_35, %c0_36], %61 {strides = array<i32>} : memref<16x64xf32, #tpu.memory_space<vmem>>, vector<16x64xf32>,
    } else {
    }
    %c0 = arith.constant 0 : index
    %c0_1 = arith.constant 0 : index
    %3 = vector.load %arg10[%c0, %c0_1] : memref<16x64xf32, #tpu.memory_space<vmem>>, vector<16x64xf32>
    %4 = arith.truncf %3 : vector<16x64xf32> to vector<16x64xbf16>
    %c0_2 = arith.constant 0 : index
    %c0_3 = arith.constant 0 : index
    %5 = vector.load %arg5[%c0_2, %c0_3] : memref<64x128xbf16, #tpu.memory_space<vmem>>, vector<64x128xbf16>
    %cst = arith.constant dense<0.000000e+00> : vector<16x128xf32>
    %6 = tpu.matmul %4, %5, %cst {dimension_numbers = #tpu.dot_dimension_numbers<[1], [0], [0], [1], [0, 0, 1, 1], [], []>} : vector<16x64xbf16>, vector<64x128xbf16>, vector<16x128xf32> -> vector<16x128xf32>
    %c0_4 = arith.constant 0 : index
    %c0_5 = arith.constant 0 : index
    %7 = vector.load %arg6[%c0_4, %c0_5] : memref<1x128xf32, #tpu.memory_space<vmem>>, vector<1x128xf32>
    %8 = vector.broadcast %7 : vector<1x128xf32> to vector<16x128xf32>
    %9 = arith.addf %6, %8 : vector<16x128xf32>
    %cst_6 = arith.constant 5.000000e-01 : f32
    %10 = vector.broadcast %cst_6 : f32 to vector<16x128xf32>
    %11 = arith.mulf %10, %9 : vector<16x128xf32>
    %cst_7 = arith.constant 4.471500e-02 : f32
    %12 = vector.broadcast %cst_7 : f32 to vector<16x128xf32>
    %13 = arith.mulf %12, %9 : vector<16x128xf32>
    %14 = arith.mulf %13, %9 : vector<16x128xf32>
    %15 = arith.mulf %14, %9 : vector<16x128xf32>
    %16 = arith.addf %9, %15 : vector<16x128xf32>
    %cst_8 = arith.constant 0.797884583 : f32
    %17 = vector.broadcast %cst_8 : f32 to vector<16x128xf32>
    %18 = arith.mulf %17, %16 : vector<16x128xf32>
    %19 = math.tanh %18 : vector<16x128xf32>
    %cst_9 = arith.constant 1.000000e+00 : f32
    %20 = vector.broadcast %cst_9 : f32 to vector<16x128xf32>
    %21 = arith.addf %20, %19 : vector<16x128xf32>
    %22 = arith.mulf %11, %21 : vector<16x128xf32>
    %c0_10 = arith.constant 0 : index
    %c0_11 = arith.constant 0 : index
    %23 = vector.load %arg11[%c0_10, %c0_11] : memref<16x64xf32, #tpu.memory_space<vmem>>, vector<16x64xf32>
    %24 = arith.truncf %22 : vector<16x128xf32> to vector<16x128xbf16>
    %c0_12 = arith.constant 0 : index
    %c0_13 = arith.constant 0 : index
    %25 = vector.load %arg7[%c0_12, %c0_13] : memref<128x64xbf16, #tpu.memory_space<vmem>>, vector<128x64xbf16>
    %cst_14 = arith.constant dense<0.000000e+00> : vector<16x64xf32>
    %26 = tpu.matmul %24, %25, %cst_14 {dimension_numbers = #tpu.dot_dimension_numbers<[1], [0], [0], [1], [0, 0, 1, 1], [], []>} : vector<16x128xbf16>, vector<128x64xbf16>, vector<16x64xf32> -> vector<16x64xf32>
    %27 = arith.addf %23, %26 : vector<16x64xf32>
    %c0_15 = arith.constant 0 : index
    %c0_16 = arith.constant 0 : index
    %28 = vector.load %arg11[%c0_15, %c0_16] : memref<16x64xf32, #tpu.memory_space<vmem>>, vector<16x64xf32>
    tpu.vector_store %arg11[%c0_15, %c0_16], %27 {strides = array<i32>} : memref<16x64xf32, #tpu.memory_space<vmem>>, vector<16x64xf32>,
    %c1_i32 = arith.constant 1 : i32
    %29 = arith.cmpi eq, %arg1, %c1_i32 : i32
    %30 = arith.extui %29 : i1 to i32
    %c0_i32_17 = arith.constant 0 : i32
    %31 = arith.cmpi ne, %30, %c0_i32_17 : i32
    scf.if %31 {
      %c0_18 = arith.constant 0 : index
      %c0_19 = arith.constant 0 : index
      %32 = vector.load %arg11[%c0_18, %c0_19] : memref<16x64xf32, #tpu.memory_space<vmem>>, vector<16x64xf32>
      %c0_20 = arith.constant 0 : index
      %c0_21 = arith.constant 0 : index
      %c0_22 = arith.constant 0 : index
      %33 = vector.load %arg9[%c0_20, %c0_21, %c0_22] : memref<1x16x64xf32, #tpu.memory_space<vmem>>, vector<1x16x64xf32>
      %34 = vector.shape_cast %33 : vector<1x16x64xf32> to vector<16x64xf32>
      %35 = vector.shape_cast %32 : vector<16x64xf32> to vector<1x16x64xf32>
      tpu.vector_store %arg9[%c0_20, %c0_21, %c0_22], %35 {strides = array<i32>} : memref<1x16x64xf32, #tpu.memory_space<vmem>>, vector<1x16x64xf32>,
    } else {
    }
    return
  }
  func.func @transform_0(%arg0: i32, %arg1: i32) -> (i32, i32, i32) {
    %c0_i32 = arith.constant 0 : i32
    %c0_i32_0 = arith.constant 0 : i32
    %c0_i32_1 = arith.constant 0 : i32
    return %arg0, %c0_i32, %c0_i32_0 : i32, i32, i32
  }
  func.func @transform_1(%arg0: i32, %arg1: i32) -> (i32, i32) {
    %c0_i32 = arith.constant 0 : i32
    %c0_i32_0 = arith.constant 0 : i32
    %c0_i32_1 = arith.constant 0 : i32
    return %c0_i32, %c0_i32_0 : i32, i32
  }
  func.func @transform_2(%arg0: i32, %arg1: i32) -> (i32, i32) {
    %c0_i32 = arith.constant 0 : i32
    %c0_i32_0 = arith.constant 0 : i32
    %c0_i32_1 = arith.constant 0 : i32
    return %c0_i32, %c0_i32_0 : i32, i32
  }
  func.func @transform_3(%arg0: i32, %arg1: i32) -> (i32, i32) {
    %c0_i32 = arith.constant 0 : i32
    %c0_i32_0 = arith.constant 0 : i32
    return %c0_i32, %arg1 : i32, i32
  }
  func.func @transform_4(%arg0: i32, %arg1: i32) -> (i32, i32) {
    %c0_i32 = arith.constant 0 : i32
    %c0_i32_0 = arith.constant 0 : i32
    return %c0_i32, %arg1 : i32, i32
  }
  func.func @transform_5(%arg0: i32, %arg1: i32) -> (i32, i32) {
    %c0_i32 = arith.constant 0 : i32
    %c0_i32_0 = arith.constant 0 : i32
    return %arg1, %c0_i32 : i32, i32
  }
  func.func @transform_6(%arg0: i32, %arg1: i32) -> (i32, i32) {
    %c0_i32 = arith.constant 0 : i32
    %c0_i32_0 = arith.constant 0 : i32
    %c0_i32_1 = arith.constant 0 : i32
    return %c0_i32, %c0_i32_0 : i32, i32
  }
  func.func @transform_7(%arg0: i32, %arg1: i32) -> (i32, i32, i32) {
    %c0_i32 = arith.constant 0 : i32
    %c0_i32_0 = arith.constant 0 : i32
    %c0_i32_1 = arith.constant 0 : i32
    return %arg0, %c0_i32, %c0_i32_0 : i32, i32, i32
  }
}

</mosaic_0001>

<llo_original>
// kernel: vision_encoder.6
$region0: #{vision_encoder.6}
  #allocation0 [shape = 'u32[]', space=smem, size = 0x4, offset = 0x4, fixed_abs, tag = 'smem constant byte address 0x4 - core index']
  #allocation1 [shape = 'u32[144,128]{1,0:T(1,128)}', space=vmem, size = 0x12000, scoped, tag = 'internal scratch']
  %s0 = inlined_call_operand.vmem [shape: f32[2,16,12], index: 0, kind: input, shape index: {}]
  %s1 = inlined_call_operand.vmem [shape: bf16[12,64], index: 1, kind: input, shape index: {}]
  %s2 = inlined_call_operand.vmem [shape: f32[1,64], index: 2, kind: input, shape index: {}]
  %s3 = inlined_call_operand.vmem [shape: f32[16,64], index: 3, kind: input, shape index: {}]
  %s4 = inlined_call_operand.vmem [shape: bf16[2,16,64], index: 4, kind: output, shape index: {}]
  %s5 = sld [smem:[#allocation0]]
  $region49: #{vision_encoder.6} parent=0
    _
  %s7 = ssub.s32 1, %s5
  %s8 = scalar_select 0, %s7, %s5
  loop: start=0, step=1, limit=4
  $region2: #{vision_encoder.6} parent=0 // loop_pre_header
    _
  $region3: #{vision_encoder.6} parent=0 // loop_header
    %s10 = sphi 0, %s14
    %p11 = scmp.ge.s32.totalorder %s10, 4
    %s20 = sphi 0, %s22
    %s23 = sphi 0, %s20
    %s24 = sphi 0, %s23
    %s40 = sphi 0, %s24
    %s44 = sphi 0, %s44
    %s46 = sphi 0, %s44
    %s47 = sphi 0, %s46
    %s61 = sphi 0, %s47
    %s65 = sphi 0, %s65
    %s67 = sphi 0, %s65
    %s68 = sphi 0, %s67
    %s82 = sphi 0, %s68
    %s86 = sphi 0, %s86
    %s88 = sphi 0, %s86
    %s89 = sphi 0, %s88
    %s103 = sphi 0, %s89
    %s109 = sphi 0, %s111
    %s112 = sphi 0, %s109
    %s113 = sphi 0, %s112
    %s129 = sphi 0, %s113
  $region4: #{vision_encoder.6} parent=0 // loop_header_branch
    %13 = sbr.rel (%p11) target = $region8
  $region5: #{vision_encoder.6} parent=0 // loop_body
    %s15 = ssub.s32 %s10, 1
    %s16 = ssub.s32 %s10, 2
    %s17 = sadd.s32 %s10, 1
    %s18 = ssub.s32 %s10, %s17
    %p19 = scmp.eq.s32.totalorder %s18, 0
    %s21 = sadd.s32 %s20, 1
    %s22 = scalar_select %p19, %s20, %s21
    %p25 = pneg %p19
    %p26 = scmp.eq.s32.totalorder %s10, 1
    %p27 = por %p25, %p26
    %p28 = scmp.ne.s32.totalorder %s20, %s23
    %p29 = scmp.eq.s32.totalorder %s10, 0
    %p30 = por %p28, %p29
    %p31 = scmp.ne.s32.totalorder %s20, %s23
    %p32 = scmp.eq.s32.totalorder %s15, 1
    %p33 = por %p31, %p32
    %p34 = scmp.ne.s32.totalorder %s23, %s24
    %p35 = scmp.eq.s32.totalorder %s15, 0
    %p36 = por %p34, %p35
    %p37 = scmp.ne.s32.totalorder %s23, %s24
    %p38 = scmp.eq.s32.totalorder %s16, 1
    %p39 = por %p37, %p38
    %p41 = scmp.ne.s32.totalorder %s24, %s40
    %p42 = scmp.eq.s32.totalorder %s16, 0
    %p43 = por %p41, %p42
    %s45 = sadd.s32 %s44, 1
    %p48 = scmp.eq.s32.totalorder %s10, 1
    %p49 = scmp.ne.s32.totalorder %s44, %s46
    %p50 = scmp.eq.s32.totalorder %s10, 0
    %p51 = por %p49, %p50
    %p52 = scmp.ne.s32.totalorder %s44, %s46
    %p53 = scmp.eq.s32.totalorder %s15, 1
    %p54 = por %p52, %p53
    %p55 = scmp.ne.s32.totalorder %s46, %s47
    %p56 = scmp.eq.s32.totalorder %s15, 0
    %p57 = por %p55, %p56
    %p58 = scmp.ne.s32.totalorder %s46, %s47
    %p59 = scmp.eq.s32.totalorder %s16, 1
    %p60 = por %p58, %p59
    %p62 = scmp.ne.s32.totalorder %s47, %s61
    %p63 = scmp.eq.s32.totalorder %s16, 0
    %p64 = por %p62, %p63
    %s66 = sadd.s32 %s65, 1
    %p69 = scmp.eq.s32.totalorder %s10, 1
    %p70 = scmp.ne.s32.totalorder %s65, %s67
    %p71 = scmp.eq.s32.totalorder %s10, 0
    %p72 = por %p70, %p71
    %p73 = scmp.ne.s32.totalorder %s65, %s67
    %p74 = scmp.eq.s32.totalorder %s15, 1
    %p75 = por %p73, %p74
    %p76 = scmp.ne.s32.totalorder %s67, %s68
    %p77 = scmp.eq.s32.totalorder %s15, 0
    %p78 = por %p76, %p77
    %p79 = scmp.ne.s32.totalorder %s67, %s68
    %p80 = scmp.eq.s32.totalorder %s16, 1
    %p81 = por %p79, %p80
    %p83 = scmp.ne.s32.totalorder %s68, %s82
    %p84 = scmp.eq.s32.totalorder %s16, 0
    %p85 = por %p83, %p84
    %s87 = sadd.s32 %s86, 1
    %p90 = scmp.eq.s32.totalorder %s10, 1
    %p91 = scmp.ne.s32.totalorder %s86, %s88
    %p92 = scmp.eq.s32.totalorder %s10, 0
    %p93 = por %p91, %p92
    %p94 = scmp.ne.s32.totalorder %s86, %s88
    %p95 = scmp.eq.s32.totalorder %s15, 1
    %p96 = por %p94, %p95
    %p97 = scmp.ne.s32.totalorder %s88, %s89
    %p98 = scmp.eq.s32.totalorder %s15, 0
    %p99 = por %p97, %p98
    %p100 = scmp.ne.s32.totalorder %s88, %s89
    %p101 = scmp.eq.s32.totalorder %s16, 1
    %p102 = por %p100, %p101
    %p104 = scmp.ne.s32.totalorder %s89, %s103
    %p105 = scmp.eq.s32.totalorder %s16, 0
    %p106 = por %p104, %p105
    %s107 = ssub.s32 %s10, %s17
    %p108 = scmp.eq.s32.totalorder %s107, 0
    %s110 = sadd.s32 %s109, 1
    %s111 = scalar_select %p108, %s109, %s110
    %p114 = pneg %p108
    %p115 = scmp.eq.s32.totalorder %s10, 1
    %p116 = por %p114, %p115
    %p117 = scmp.ne.s32.totalorder %s109, %s112
    %p118 = scmp.eq.s32.totalorder %s10, 0
    %p119 = por %p117, %p118
    %p120 = scmp.ne.s32.totalorder %s109, %s112
    %p121 = scmp.eq.s32.totalorder %s15, 1
    %p122 = por %p120, %p121
    %p123 = scmp.ne.s32.totalorder %s112, %s113
    %p124 = scmp.eq.s32.totalorder %s15, 0
    %p125 = por %p123, %p124
    %p126 = scmp.ne.s32.totalorder %s112, %s113
    %p127 = scmp.eq.s32.totalorder %s16, 1
    %p128 = por %p126, %p127
    %p130 = scmp.ne.s32.totalorder %s113, %s129
    %p131 = scmp.eq.s32.totalorder %s16, 0
    %p132 = por %p130, %p131
    %p133 = scmp.le.s32.totalorder 1, %s10
    %p134 = scmp.lt.s32.totalorder %s10, 3
    %p135 = pnand %p133, %p134
    %p136 = pneg %p135
    // Predicated region
    $region9: #{vision_encoder.6} parent=5 // pred_check
      _
    $region10: #{vision_encoder.6} parent=5 // pred_check_branch
      %138 = sbr.rel (%p135) target = $region12
    $region11: #{vision_encoder.6} parent=5 // pred_region
      %s139 = ssub.s32 %s10, 1
      // Predicated region
      $region13: #{vision_encoder.6} parent=11 // pred_check
        %p140 = pneg %p57
      $region14: #{vision_encoder.6} parent=11 // pred_check_branch
        %142 = sbr.rel (%p140) target = $region16
      $region15: #{vision_encoder.6} parent=11 // pred_region
        _
      $region16: #{vision_encoder.6} parent=11 // pred_fallthru
        _
      // Predicated region
      $region17: #{vision_encoder.6} parent=11 // pred_check
        %p143 = pneg %p78
      $region18: #{vision_encoder.6} parent=11 // pred_check_branch
        %145 = sbr.rel (%p143) target = $region20
      $region19: #{vision_encoder.6} parent=11 // pred_region
        _
      $region20: #{vision_encoder.6} parent=11 // pred_fallthru
        _
      // Predicated region
      $region21: #{vision_encoder.6} parent=11 // pred_check
        %p146 = pneg %p99
      $region22: #{vision_encoder.6} parent=11 // pred_check_branch
        %148 = sbr.rel (%p146) target = $region24
      $region23: #{vision_encoder.6} parent=11 // pred_region
        _
      $region24: #{vision_encoder.6} parent=11 // pred_fallthru
        _
    $region12: #{vision_encoder.6} parent=5 // pred_fallthru
      _
    %p149 = scmp.lt.s32.totalorder %s10, 2
    // Predicated region
    $region25: #{vision_encoder.6} parent=5 // pred_check
      %p150 = pneg %p149
    $region26: #{vision_encoder.6} parent=5 // pred_check_branch
      %152 = sbr.rel (%p150) target = $region28
    $region27: #{vision_encoder.6} parent=5 // pred_region
      // Predicated region
      $region29: #{vision_encoder.6} parent=27 // pred_check
        %p153 = pneg %p30
      $region30: #{vision_encoder.6} parent=27 // pred_check_branch
        %155 = sbr.rel (%p153) target = $region32
      $region31: #{vision_encoder.6} parent=27 // pred_region
        %p156 = scmp.lt.s32.totalorder %s10, 1
        %s157 = scalar_select %p156, %s10, 1
        %s158 = smul.addr %s157, 2
        %s159 = smul.addr %s158, 8
        %s160 = scalar_lea.vmem %s0, %s159
      $region32: #{vision_encoder.6} parent=27 // pred_fallthru
        _
    $region28: #{vision_encoder.6} parent=5 // pred_fallthru
      _
    %p161 = scmp.le.s32.totalorder 1, %s10
    %p162 = scmp.lt.s32.totalorder %s10, 3
    %p163 = pnand %p161, %p162
    %p164 = pneg %p163
    // Predicated region
    $region33: #{vision_encoder.6} parent=5 // pred_check
      _
    $region34: #{vision_encoder.6} parent=5 // pred_check_branch
      %166 = sbr.rel (%p163) target = $region36
    $region35: #{vision_encoder.6} parent=5 // pred_region
      %s167 = ssub.s32 %s10, 1
      %p168 = scmp.lt.s32.totalorder %s15, 1
      %s169 = scalar_select %p168, %s15, 1
      %s170 = smul.addr %s169, 2
      %s171 = smul.addr %s170, 8
      %s172 = scalar_lea.vmem %s0, %s171
      %p173 = pneg %p36
      %p174 = pneg %p33
      %p175 = pneg %p57
      %p176 = pneg %p54
      %p177 = pneg %p78
      %p178 = pneg %p75
      %p179 = pneg %p99
      %p180 = pneg %p96
      %p181 = pneg %p125
      %p182 = pneg %p122
      %p183 = scmp.lt.s32.totalorder %s15, 1
      %s184 = scalar_select %p183, %s15, 1
      %s185 = smul.addr %s184, 2
      %s186 = smul.addr %s185, 4
      %s187 = scalar_lea.vmem %s4, %s186
      %p188 = scmp.lt.s32.totalorder %s15, 1
      %s189 = scalar_select %p188, %s15, 1
      %s190 = smul.addr %s189, 2
      %s191 = smul.addr %s190, 8
      %s192 = scalar_lea.vmem %s0, %s191
      %p193 = scmp.lt.s32.totalorder %s15, 1
      %s194 = scalar_select %p193, %s15, 1
      %s195 = smul.addr %s194, 2
      %s196 = smul.addr %s195, 4
      %s197 = scalar_lea.vmem %s4, %s196
      %v199 = vld [vmem:[%s192] sm:$0xff]
      %v200 = vld [vmem:[%s192 + $0x8] sm:$0xff]
      %v201 = vpack.c.bf16 %v200, %v199
      %v202 = vld [vmem:[%s1] sm:$0xf]
      %v203 = vld [vmem:[%s1 + $0x4] sm:$0x3]
      %v204 = vld [vmem:[%s2] sm:$0x1]
      %v206 = vlaneseq
      %v207 = vshrl.u32 %v206, 7
      %v208 = vsub.s32 0, %v207
      %v209 = vrot.slane %v204, %v208
      %v213 = vunpack.c.l.b16 %v202
      %v214 = vunpack.c.l.b16 %v203
      %v215 = vpack.c.b16 %v214, %v213
      %vm216 = vcmask 97280
      %v218 = vsel %vm216, %v201, 0
      %vm220 = vcmask 1045504
      %v222 = vsel %vm220, %v215, 0
      %224 = vmatprep.subr.bf16.mxu0 0
      %225 = vmatpush1.bf16.msra.mxu0 %v222
      %226 = vmatprep.subr.bf16.mxu0 0
      %227 = vmatpush1.bf16.msra.mxu0 0
      %228 = vmatprep.subr.bf16.mxu0 0
      %229 = vmatpush1.bf16.msra.mxu0 0
      %230 = vmatprep.subr.bf16.mxu0 0
      %231 = vmatpush1.bf16.msra.mxu0 0
      %232 = vmatprep.subr.bf16.mxu0 0
      %233 = vmatpush1.bf16.msra.mxu0 0
      %234 = vmatprep.subr.bf16.mxu0 0
      %235 = vmatpush1.bf16.msra.mxu0 0
      %236 = vmatprep.subr.bf16.mxu0 0
      %237 = vmatpush1.bf16.msra.mxu0 0
      %238 = vmatprep.subr.bf16.mxu0 0
      %239 = vmatpush1.bf16.msra.mxu0 0
      %240 = vmatprep.subr.bf16.mxu0 0
      %241 = vmatpush1.bf16.msra.mxu0 0
      %242 = vmatprep.subr.bf16.mxu0 0
      %243 = vmatpush1.bf16.msra.mxu0 0
      %244 = vmatprep.subr.bf16.mxu0 0
      %245 = vmatpush1.bf16.msra.mxu0 0
      %246 = vmatprep.subr.bf16.mxu0 0
      %247 = vmatpush1.bf16.msra.mxu0 0
      %248 = vmatprep.subr.bf16.mxu0 0
      %249 = vmatpush1.bf16.msra.mxu0 0
      %250 = vmatprep.subr.bf16.mxu0 0
      %251 = vmatpush1.bf16.msra.mxu0 0
      %252 = vmatprep.subr.bf16.mxu0 0
      %253 = vmatpush1.bf16.msra.mxu0 0
      %254 = vmatprep.subr.bf16.mxu0 0
      %255 = vmatpush1.bf16.msra.mxu0 0
      %256 = vmatprep.mubr.bf16.mxu0 0
      %257 = vmatmul.mubr.bf16.gmra.mrb[0].mxu0 %v218
      %v258 = vpop.f32.mrb[0].mxu0
      %v259 = vadd.f32 %v209, %v258
      %v260 = vpop.f32.mrb[0].mxu0
      %v261 = vpop.f32.mrb[0].mxu0
      %v262 = vadd.f32 %v209, %v261
      %v263 = vpop.f32.mrb[0].mxu0
      %264 = vdwg.mxu0
      %v265 = vld [vmem:[%s3] sm:$0xff]
      %v266 = vld [vmem:[%s3 + $0x8] sm:$0xff]
      %v267 = vadd.f32 %v259, %v265
      %v268 = vadd.f32 %v262, %v266
      %v269 = vpack.c.bf16 %v268, %v267
      %v271 = vunpack.c.l.b16 %v269
      %v272 = vunpack.c.h.b16 %v269
      %v273 = vpack.c.b16 %v271, %v271
      %v274 = vpack.c.b16 %v272, %v272
      %vm277 = vcmask 519168
      %278 = vst.msk [vmem:[%s197] sm:$0xf] %vm277, %v273
      %279 = vst.msk [vmem:[%s197 + $0x4] sm:$0xf] %vm277, %v274
      %p280 = scmp.lt.s32.totalorder %s15, 1
      %s281 = scalar_select %p280, %s15, 1
      %s282 = smul.addr %s281, 2
      %s283 = smul.addr %s282, 4
      %s284 = scalar_lea.vmem %s4, %s283
      // Predicated region
      $region37: #{vision_encoder.6} parent=35 // pred_check
        %p285 = pneg %p122
      $region38: #{vision_encoder.6} parent=35 // pred_check_branch
        %287 = sbr.rel (%p285) target = $region40
      $region39: #{vision_encoder.6} parent=35 // pred_region
        _
      $region40: #{vision_encoder.6} parent=35 // pred_fallthru
        _
    $region36: #{vision_encoder.6} parent=5 // pred_fallthru
      _
    %p288 = scmp.le.s32.totalorder 2, %s10
    // Predicated region
    $region41: #{vision_encoder.6} parent=5 // pred_check
      %p289 = pneg %p288
    $region42: #{vision_encoder.6} parent=5 // pred_check_branch
      %291 = sbr.rel (%p289) target = $region44
    $region43: #{vision_encoder.6} parent=5 // pred_region
      %s292 = ssub.s32 %s10, 2
      // Predicated region
      $region45: #{vision_encoder.6} parent=43 // pred_check
        %p293 = pneg %p128
      $region46: #{vision_encoder.6} parent=43 // pred_check_branch
        %295 = sbr.rel (%p293) target = $region48
      $region47: #{vision_encoder.6} parent=43 // pred_region
        %p296 = scmp.lt.s32.totalorder %s16, 1
        %s297 = scalar_select %p296, %s16, 1
        %s298 = smul.addr %s297, 2
        %s299 = smul.addr %s298, 4
        %s300 = scalar_lea.vmem %s4, %s299
      $region48: #{vision_encoder.6} parent=43 // pred_fallthru
        _
    $region44: #{vision_encoder.6} parent=5 // pred_fallthru
      _
  $region6: #{vision_encoder.6} parent=0 // loop_footer
    %s14 = sadd.s32 1, %s10
  $region7: #{vision_encoder.6} parent=0 // loop_footer_branch
    %9 = sbr.rel target = $region3
  $region8: #{vision_encoder.6} parent=0 // loop_exit
    _

// kernel: vision_encoder.8
$region0: #{vision_encoder.8}
  #allocation0 [shape = 'u32[]', space=smem, size = 0x4, offset = 0x4, fixed_abs, tag = 'smem constant byte address 0x4 - core index']
  #allocation1 [shape = 'u32[144,128]{1,0:T(1,128)}', space=vmem, size = 0x12000, scoped, tag = 'internal scratch']
  #allocation2 [shape = 'f32[16,64]{1,0:T(8,128)}', space=vmem, size = 0x2000, scoped, tag = 'scratch operand']
  #allocation3 [shape = 'f32[16,64]{1,0:T(8,128)}', space=vmem, size = 0x2000, scoped, tag = 'scratch operand']
  %s0 = inlined_call_operand.vmem [shape: bf16[2,16,64], index: 0, kind: input, shape index: {}]
  %s1 = inlined_call_operand.vmem [shape: f32[1,64], index: 1, kind: input, shape index: {}]
  %s2 = inlined_call_operand.vmem [shape: f32[1,64], index: 2, kind: input, shape index: {}]
  %s3 = inlined_call_operand.vmem [shape: bf16[64,128], index: 3, kind: input, shape index: {}]
  %s4 = inlined_call_operand.vmem [shape: f32[1,128], index: 4, kind: input, shape index: {}]
  %s5 = inlined_call_operand.vmem [shape: bf16[128,64], index: 5, kind: input, shape index: {}]
  %s6 = inlined_call_operand.vmem [shape: f32[1,64], index: 6, kind: input, shape index: {}]
  %s7 = inlined_call_operand.vmem [shape: bf16[2,16,64], index: 7, kind: output, shape index: {}]
  %s8 = sld [smem:[#allocation0]]
  $region69: #{vision_encoder.8} parent=0
    _
  %s10 = ssub.s32 1, %s8
  %s11 = scalar_select 0, %s10, %s8
  loop: start=0, step=1, limit=4
  $region2: #{vision_encoder.8} parent=0 // loop_pre_header
    _
  $region3: #{vision_encoder.8} parent=0 // loop_header
    %s13 = sphi 0, %s17
    %p14 = scmp.ge.s32.totalorder %s13, 4
    %s20 = sphi 0, %s32
    %s21 = sphi 0, %s28
    %s22 = sphi 0, %s20
    %s23 = sphi 0, %s21
    %s24 = sphi 0, %s22
    %s25 = sphi 0, %s23
    %s35 = sphi 0, %s37
    %s38 = sphi 0, %s35
    %s39 = sphi 0, %s38
    %s55 = sphi 0, %s39
    %s59 = sphi 0, %s59
    %s61 = sphi 0, %s59
    %s62 = sphi 0, %s61
    %s76 = sphi 0, %s62
    %s80 = sphi 0, %s80
    %s82 = sphi 0, %s80
    %s83 = sphi 0, %s82
    %s97 = sphi 0, %s83
    %s103 = sphi 0, %s105
    %s106 = sphi 0, %s103
    %s107 = sphi 0, %s106
    %s123 = sphi 0, %s107
    %s129 = sphi 0, %s131
    %s132 = sphi 0, %s129
    %s133 = sphi 0, %s132
    %s149 = sphi 0, %s133
    %s155 = sphi 0, %s157
    %s158 = sphi 0, %s155
    %s159 = sphi 0, %s158
    %s175 = sphi 0, %s159
    %s179 = sphi 0, %s179
    %s181 = sphi 0, %s179
    %s182 = sphi 0, %s181
    %s196 = sphi 0, %s182
    %s202 = sphi 0, %s204
    %s205 = sphi 0, %s202
    %s206 = sphi 0, %s205
    %s222 = sphi 0, %s206
  $region4: #{vision_encoder.8} parent=0 // loop_header_branch
    %16 = sbr.rel (%p14) target = $region8
  $region5: #{vision_encoder.8} parent=0 // loop_body
    %s18 = ssub.s32 %s13, 1
    %s19 = ssub.s32 %s13, 2
    %s26 = sadd.s32 1, %s21
    %p27 = scmp.ge.s32.totalorder %s26, 1
    %s28 = scalar_select %p27, 0, %s26
    %s29 = sadd.s32 1, %s20
    %s30 = scalar_select %p27, %s29, %s20
    %p31 = scmp.ge.s32.totalorder %s30, 2
    %s32 = scalar_select %p31, 0, %s30
    %s33 = ssub.s32 %s20, %s32
    %p34 = scmp.eq.s32.totalorder %s33, 0
    %s36 = sadd.s32 %s35, 1
    %s37 = scalar_select %p34, %s35, %s36
    %p40 = pneg %p34
    %p41 = scmp.eq.s32.totalorder %s13, 1
    %p42 = por %p40, %p41
    %p43 = scmp.ne.s32.totalorder %s35, %s38
    %p44 = scmp.eq.s32.totalorder %s13, 0
    %p45 = por %p43, %p44
    %p46 = scmp.ne.s32.totalorder %s35, %s38
    %p47 = scmp.eq.s32.totalorder %s18, 1
    %p48 = por %p46, %p47
    %p49 = scmp.ne.s32.totalorder %s38, %s39
    %p50 = scmp.eq.s32.totalorder %s18, 0
    %p51 = por %p49, %p50
    %p52 = scmp.ne.s32.totalorder %s38, %s39
    %p53 = scmp.eq.s32.totalorder %s19, 1
    %p54 = por %p52, %p53
    %p56 = scmp.ne.s32.totalorder %s39, %s55
    %p57 = scmp.eq.s32.totalorder %s19, 0
    %p58 = por %p56, %p57
    %s60 = sadd.s32 %s59, 1
    %p63 = scmp.eq.s32.totalorder %s13, 1
    %p64 = scmp.ne.s32.totalorder %s59, %s61
    %p65 = scmp.eq.s32.totalorder %s13, 0
    %p66 = por %p64, %p65
    %p67 = scmp.ne.s32.totalorder %s59, %s61
    %p68 = scmp.eq.s32.totalorder %s18, 1
    %p69 = por %p67, %p68
    %p70 = scmp.ne.s32.totalorder %s61, %s62
    %p71 = scmp.eq.s32.totalorder %s18, 0
    %p72 = por %p70, %p71
    %p73 = scmp.ne.s32.totalorder %s61, %s62
    %p74 = scmp.eq.s32.totalorder %s19, 1
    %p75 = por %p73, %p74
    %p77 = scmp.ne.s32.totalorder %s62, %s76
    %p78 = scmp.eq.s32.totalorder %s19, 0
    %p79 = por %p77, %p78
    %s81 = sadd.s32 %s80, 1
    %p84 = scmp.eq.s32.totalorder %s13, 1
    %p85 = scmp.ne.s32.totalorder %s80, %s82
    %p86 = scmp.eq.s32.totalorder %s13, 0
    %p87 = por %p85, %p86
    %p88 = scmp.ne.s32.totalorder %s80, %s82
    %p89 = scmp.eq.s32.totalorder %s18, 1
    %p90 = por %p88, %p89
    %p91 = scmp.ne.s32.totalorder %s82, %s83
    %p92 = scmp.eq.s32.totalorder %s18, 0
    %p93 = por %p91, %p92
    %p94 = scmp.ne.s32.totalorder %s82, %s83
    %p95 = scmp.eq.s32.totalorder %s19, 1
    %p96 = por %p94, %p95
    %p98 = scmp.ne.s32.totalorder %s83, %s97
    %p99 = scmp.eq.s32.totalorder %s19, 0
    %p100 = por %p98, %p99
    %s101 = ssub.s32 %s21, %s28
    %p102 = scmp.eq.s32.totalorder %s101, 0
    %s104 = sadd.s32 %s103, 1
    %s105 = scalar_select %p102, %s103, %s104
    %p108 = pneg %p102
    %p109 = scmp.eq.s32.totalorder %s13, 1
    %p110 = por %p108, %p109
    %p111 = scmp.ne.s32.totalorder %s103, %s106
    %p112 = scmp.eq.s32.totalorder %s13, 0
    %p113 = por %p111, %p112
    %p114 = scmp.ne.s32.totalorder %s103, %s106
    %p115 = scmp.eq.s32.totalorder %s18, 1
    %p116 = por %p114, %p115
    %p117 = scmp.ne.s32.totalorder %s106, %s107
    %p118 = scmp.eq.s32.totalorder %s18, 0
    %p119 = por %p117, %p118
    %p120 = scmp.ne.s32.totalorder %s106, %s107
    %p121 = scmp.eq.s32.totalorder %s19, 1
    %p122 = por %p120, %p121
    %p124 = scmp.ne.s32.totalorder %s107, %s123
    %p125 = scmp.eq.s32.totalorder %s19, 0
    %p126 = por %p124, %p125
    %s127 = ssub.s32 %s21, %s28
    %p128 = scmp.eq.s32.totalorder %s127, 0
    %s130 = sadd.s32 %s129, 1
    %s131 = scalar_select %p128, %s129, %s130
    %p134 = pneg %p128
    %p135 = scmp.eq.s32.totalorder %s13, 1
    %p136 = por %p134, %p135
    %p137 = scmp.ne.s32.totalorder %s129, %s132
    %p138 = scmp.eq.s32.totalorder %s13, 0
    %p139 = por %p137, %p138
    %p140 = scmp.ne.s32.totalorder %s129, %s132
    %p141 = scmp.eq.s32.totalorder %s18, 1
    %p142 = por %p140, %p141
    %p143 = scmp.ne.s32.totalorder %s132, %s133
    %p144 = scmp.eq.s32.totalorder %s18, 0
    %p145 = por %p143, %p144
    %p146 = scmp.ne.s32.totalorder %s132, %s133
    %p147 = scmp.eq.s32.totalorder %s19, 1
    %p148 = por %p146, %p147
    %p150 = scmp.ne.s32.totalorder %s133, %s149
    %p151 = scmp.eq.s32.totalorder %s19, 0
    %p152 = por %p150, %p151
    %s153 = ssub.s32 %s21, %s28
    %p154 = scmp.eq.s32.totalorder %s153, 0
    %s156 = sadd.s32 %s155, 1
    %s157 = scalar_select %p154, %s155, %s156
    %p160 = pneg %p154
    %p161 = scmp.eq.s32.totalorder %s13, 1
    %p162 = por %p160, %p161
    %p163 = scmp.ne.s32.totalorder %s155, %s158
    %p164 = scmp.eq.s32.totalorder %s13, 0
    %p165 = por %p163, %p164
    %p166 = scmp.ne.s32.totalorder %s155, %s158
    %p167 = scmp.eq.s32.totalorder %s18, 1
    %p168 = por %p166, %p167
    %p169 = scmp.ne.s32.totalorder %s158, %s159
    %p170 = scmp.eq.s32.totalorder %s18, 0
    %p171 = por %p169, %p170
    %p172 = scmp.ne.s32.totalorder %s158, %s159
    %p173 = scmp.eq.s32.totalorder %s19, 1
    %p174 = por %p172, %p173
    %p176 = scmp.ne.s32.totalorder %s159, %s175
    %p177 = scmp.eq.s32.totalorder %s19, 0
    %p178 = por %p176, %p177
    %s180 = sadd.s32 %s179, 1
    %p183 = scmp.eq.s32.totalorder %s13, 1
    %p184 = scmp.ne.s32.totalorder %s179, %s181
    %p185 = scmp.eq.s32.totalorder %s13, 0
    %p186 = por %p184, %p185
    %p187 = scmp.ne.s32.totalorder %s179, %s181
    %p188 = scmp.eq.s32.totalorder %s18, 1
    %p189 = por %p187, %p188
    %p190 = scmp.ne.s32.totalorder %s181, %s182
    %p191 = scmp.eq.s32.totalorder %s18, 0
    %p192 = por %p190, %p191
    %p193 = scmp.ne.s32.totalorder %s181, %s182
    %p194 = scmp.eq.s32.totalorder %s19, 1
    %p195 = por %p193, %p194
    %p197 = scmp.ne.s32.totalorder %s182, %s196
    %p198 = scmp.eq.s32.totalorder %s19, 0
    %p199 = por %p197, %p198
    %s200 = ssub.s32 %s20, %s32
    %p201 = scmp.eq.s32.totalorder %s200, 0
    %s203 = sadd.s32 %s202, 1
    %s204 = scalar_select %p201, %s202, %s203
    %p207 = pneg %p201
    %p208 = scmp.eq.s32.totalorder %s13, 1
    %p209 = por %p207, %p208
    %p210 = scmp.ne.s32.totalorder %s202, %s205
    %p211 = scmp.eq.s32.totalorder %s13, 0
    %p212 = por %p210, %p211
    %p213 = scmp.ne.s32.totalorder %s202, %s205
    %p214 = scmp.eq.s32.totalorder %s18, 1
    %p215 = por %p213, %p214
    %p216 = scmp.ne.s32.totalorder %s205, %s206
    %p217 = scmp.eq.s32.totalorder %s18, 0
    %p218 = por %p216, %p217
    %p219 = scmp.ne.s32.totalorder %s205, %s206
    %p220 = scmp.eq.s32.totalorder %s19, 1
    %p221 = por %p219, %p220
    %p223 = scmp.ne.s32.totalorder %s206, %s222
    %p224 = scmp.eq.s32.totalorder %s19, 0
    %p225 = por %p223, %p224
    %p226 = scmp.le.s32.totalorder 1, %s13
    %p227 = scmp.lt.s32.totalorder %s13, 3
    %p228 = pnand %p226, %p227
    %p229 = pneg %p228
    // Predicated region
    $region9: #{vision_encoder.8} parent=5 // pred_check
      _
    $region10: #{vision_encoder.8} parent=5 // pred_check_branch
      %231 = sbr.rel (%p228) target = $region12
    $region11: #{vision_encoder.8} parent=5 // pred_region
      %s232 = ssub.s32 %s13, 1
      // Predicated region
      $region13: #{vision_encoder.8} parent=11 // pred_check
        %p233 = pneg %p72
      $region14: #{vision_encoder.8} parent=11 // pred_check_branch
        %235 = sbr.rel (%p233) target = $region16
      $region15: #{vision_encoder.8} parent=11 // pred_region
        _
      $region16: #{vision_encoder.8} parent=11 // pred_fallthru
        _
      // Predicated region
      $region17: #{vision_encoder.8} parent=11 // pred_check
        %p236 = pneg %p93
      $region18: #{vision_encoder.8} parent=11 // pred_check_branch
        %238 = sbr.rel (%p236) target = $region20
      $region19: #{vision_encoder.8} parent=11 // pred_region
        _
      $region20: #{vision_encoder.8} parent=11 // pred_fallthru
        _
      // Predicated region
      $region21: #{vision_encoder.8} parent=11 // pred_check
        %p239 = pneg %p119
      $region22: #{vision_encoder.8} parent=11 // pred_check_branch
        %241 = sbr.rel (%p239) target = $region24
      $region23: #{vision_encoder.8} parent=11 // pred_region
        %p242 = scmp.lt.s32.totalorder %s23, 0
        %s243 = scalar_select %p242, %s23, 0
        %s244 = smul.addr %s243, 4
        %s245 = scalar_lea.vmem %s3, %s244
      $region24: #{vision_encoder.8} parent=11 // pred_fallthru
        _
      // Predicated region
      $region25: #{vision_encoder.8} parent=11 // pred_check
        %p246 = pneg %p145
      $region26: #{vision_encoder.8} parent=11 // pred_check_branch
        %248 = sbr.rel (%p246) target = $region28
      $region27: #{vision_encoder.8} parent=11 // pred_region
        %p249 = scmp.lt.s32.totalorder %s23, 0
        %s250 = scalar_select %p249, %s23, 0
        %s251 = scalar_lea.vmem %s4, %s250
      $region28: #{vision_encoder.8} parent=11 // pred_fallthru
        _
      // Predicated region
      $region29: #{vision_encoder.8} parent=11 // pred_check
        %p252 = pneg %p171
      $region30: #{vision_encoder.8} parent=11 // pred_check_branch
        %254 = sbr.rel (%p252) target = $region32
      $region31: #{vision_encoder.8} parent=11 // pred_region
        %s255 = smul.u32 16, %s23
        %p256 = scmp.lt.s32.totalorder %s255, 15
        %s257 = scalar_select %p256, %s255, 15
        %s258 = smul.addr %s257, 4
        %s259 = scalar_lea.vmem %s5, %s258
        %s260 = smul.u32 16, %s23
      $region32: #{vision_encoder.8} parent=11 // pred_fallthru
        _
      // Predicated region
      $region33: #{vision_encoder.8} parent=11 // pred_check
        %p261 = pneg %p192
      $region34: #{vision_encoder.8} parent=11 // pred_check_branch
        %263 = sbr.rel (%p261) target = $region36
      $region35: #{vision_encoder.8} parent=11 // pred_region
        _
      $region36: #{vision_encoder.8} parent=11 // pred_fallthru
        _
    $region12: #{vision_encoder.8} parent=5 // pred_fallthru
      _
    %p264 = scmp.lt.s32.totalorder %s13, 2
    // Predicated region
    $region37: #{vision_encoder.8} parent=5 // pred_check
      %p265 = pneg %p264
    $region38: #{vision_encoder.8} parent=5 // pred_check_branch
      %267 = sbr.rel (%p265) target = $region40
    $region39: #{vision_encoder.8} parent=5 // pred_region
      // Predicated region
      $region41: #{vision_encoder.8} parent=39 // pred_check
        %p268 = pneg %p45
      $region42: #{vision_encoder.8} parent=39 // pred_check_branch
        %270 = sbr.rel (%p268) target = $region44
      $region43: #{vision_encoder.8} parent=39 // pred_region
        %p271 = scmp.lt.s32.totalorder %s20, 1
        %s272 = scalar_select %p271, %s20, 1
        %s273 = smul.addr %s272, 2
        %s274 = smul.addr %s273, 4
        %s275 = scalar_lea.vmem %s0, %s274
      $region44: #{vision_encoder.8} parent=39 // pred_fallthru
        _
    $region40: #{vision_encoder.8} parent=5 // pred_fallthru
      _
    %p276 = scmp.le.s32.totalorder 1, %s13
    %p277 = scmp.lt.s32.totalorder %s13, 3
    %p278 = pnand %p276, %p277
    %p279 = pneg %p278
    // Predicated region
    $region45: #{vision_encoder.8} parent=5 // pred_check
      _
    $region46: #{vision_encoder.8} parent=5 // pred_check_branch
      %281 = sbr.rel (%p278) target = $region48
    $region47: #{vision_encoder.8} parent=5 // pred_region
      %s282 = ssub.s32 %s13, 1
      %p283 = scmp.lt.s32.totalorder %s22, 1
      %s284 = scalar_select %p283, %s22, 1
      %s285 = smul.addr %s284, 2
      %s286 = smul.addr %s285, 4
      %s287 = scalar_lea.vmem %s0, %s286
      %p288 = pneg %p51
      %p289 = pneg %p48
      %p290 = pneg %p72
      %p291 = pneg %p69
      %p292 = pneg %p93
      %p293 = pneg %p90
      %p294 = scmp.lt.s32.totalorder %s23, 0
      %s295 = scalar_select %p294, %s23, 0
      %s296 = smul.addr %s295, 4
      %s297 = scalar_lea.vmem %s3, %s296
      %p298 = pneg %p119
      %p299 = pneg %p116
      %p300 = scmp.lt.s32.totalorder %s23, 0
      %s301 = scalar_select %p300, %s23, 0
      %s302 = scalar_lea.vmem %s4, %s301
      %p303 = pneg %p145
      %p304 = pneg %p142
      %s305 = smul.u32 16, %s23
      %p306 = scmp.lt.s32.totalorder %s305, 15
      %s307 = scalar_select %p306, %s305, 15
      %s308 = smul.addr %s307, 4
      %s309 = scalar_lea.vmem %s5, %s308
      %p310 = pneg %p171
      %p311 = pneg %p168
      %p312 = pneg %p192
      %p313 = pneg %p189
      %p314 = pneg %p218
      %p315 = pneg %p215
      %p316 = scmp.lt.s32.totalorder %s22, 1
      %s317 = scalar_select %p316, %s22, 1
      %s318 = smul.addr %s317, 2
      %s319 = smul.addr %s318, 4
      %s320 = scalar_lea.vmem %s7, %s319
      %p321 = scmp.lt.s32.totalorder %s22, 1
      %s322 = scalar_select %p321, %s22, 1
      %s323 = smul.addr %s322, 2
      %s324 = smul.addr %s323, 4
      %s325 = scalar_lea.vmem %s0, %s324
      %p326 = scmp.lt.s32.totalorder %s23, 0
      %s327 = scalar_select %p326, %s23, 0
      %s328 = smul.addr %s327, 4
      %s329 = scalar_lea.vmem %s3, %s328
      %p330 = scmp.lt.s32.totalorder %s23, 0
      %s331 = scalar_select %p330, %s23, 0
      %s332 = scalar_lea.vmem %s4, %s331
      %s333 = smul.u32 16, %s23
      %p334 = scmp.lt.s32.totalorder %s333, 15
      %s335 = scalar_select %p334, %s333, 15
      %s336 = smul.addr %s335, 4
      %s337 = scalar_lea.vmem %s5, %s336
      %s338 = smul.u32 16, %s23
      %p339 = scmp.lt.s32.totalorder %s22, 1
      %s340 = scalar_select %p339, %s22, 1
      %s341 = smul.addr %s340, 2
      %s342 = smul.addr %s341, 4
      %s343 = scalar_lea.vmem %s7, %s342
      %p345 = scmp.eq.s32.totalorder %s23, 0
      // Predicated region
      $region49: #{vision_encoder.8} parent=47 // pred_check
        %p346 = pneg %p345
      $region50: #{vision_encoder.8} parent=47 // pred_check_branch
        %348 = sbr.rel (%p346) target = $region52
      $region51: #{vision_encoder.8} parent=47 // pred_region
        %v349 = vld [vmem:[%s325] sm:$0xf]
        %v350 = vld [vmem:[%s325 + $0x4] sm:$0xf]
        %v351 = vunpack.c.l.bf16 %v349
        %v352 = vunpack.c.l.bf16 %v350
        %v353 = vld [vmem:[%s1] sm:$0x1]
        %v354 = vld [vmem:[%s2] sm:$0x1]
        %vm355 = vcmask 523264
        %v356 = vsel %vm355, %v351, 0.0
        %357 = vadd.xlane.f32.xlu0 %v356
        %v358 = vpop.xlane.xlu0 %357
        %v359 = vsel %vm355, %v352, 0.0
        %360 = vadd.xlane.f32.xlu0 %v359
        %v361 = vpop.xlane.xlu0 %360
        %v362 = vrcp.pop 64.0
        %v363 = vmul.f32 %v358, %v362
        %v364 = vmul.f32 %v361, %v362
        %v365 = vsub.f32 %v351, %v363
        %v366 = vsub.f32 %v352, %v364
        %v367 = vmul.f32 %v365, %v365
        %v368 = vmul.f32 %v366, %v366
        %v369 = vsel %vm355, %v367, 0.0
        %370 = vadd.xlane.f32.xlu0 %v369
        %v371 = vpop.xlane.xlu0 %370
        %v372 = vsel %vm355, %v368, 0.0
        %373 = vadd.xlane.f32.xlu0 %v372
        %v374 = vpop.xlane.xlu0 %373
        %v375 = vmul.f32 %v371, %v362
        %v376 = vmul.f32 %v374, %v362
        %v377 = vadd.f32 %v375, 1e-05
        %v378 = vadd.f32 %v376, 1e-05
        %v379 = vrsqrt.pop %v377
        %v380 = vrsqrt.pop %v378
        %v381 = vmul.f32 %v365, %v379
        %v382 = vmul.f32 %v366, %v380
        %v384 = vlaneseq
        %v385 = vshrl.u32 %v384, 7
        %v386 = vsub.s32 0, %v385
        %v387 = vrot.slane %v353, %v386
        %v389 = vmul.f32 %v381, %v387
        %v390 = vmul.f32 %v382, %v387
        %v392 = vlaneseq
        %v393 = vshrl.u32 %v392, 7
        %v394 = vsub.s32 0, %v393
        %v395 = vrot.slane %v354, %v394
        %v397 = vadd.f32 %v389, %v395
        %v398 = vadd.f32 %v390, %v395
        %399 = vst.msk [vmem:[#allocation2] sm:$0xff] %vm355, %v397
        %400 = vst.msk [vmem:[#allocation2 + $0x8] sm:$0xff] %vm355, %v398
        %v401 = vld [vmem:[%s6] sm:$0x1]
        %v403 = vlaneseq
        %v404 = vshrl.u32 %v403, 7
        %v405 = vsub.s32 0, %v404
        %v406 = vrot.slane %v401, %v405
        %v408 = vadd.f32 %v406, 0.0
        %v409 = vadd.f32 %v408, %v351
        %v410 = vadd.f32 %v408, %v352
        %411 = vst.msk [vmem:[#allocation3] sm:$0xff] %vm355, %v409
        %412 = vst.msk [vmem:[#allocation3 + $0x8] sm:$0xff] %vm355, %v410
      $region52: #{vision_encoder.8} parent=47 // pred_fallthru
        _
      %v413 = vld [vmem:[#allocation2] sm:$0xff]
      %v414 = vld [vmem:[#allocation2 + $0x8] sm:$0xff]
      %v415 = vpack.c.bf16 %v414, %v413
      %v416 = vld [vmem:[%s329] sm:$0xf]
      %v417 = vld [vmem:[%s329 + $0x4] sm:$0xf]
      %v418 = vld [vmem:[%s329 + $0x8] sm:$0xf]
      %v419 = vld [vmem:[%s329 + $0xc] sm:$0xf]
      %v420 = vld [vmem:[%s329 + $0x10] sm:$0xf]
      %v421 = vld [vmem:[%s329 + $0x14] sm:$0xf]
      %v422 = vld [vmem:[%s329 + $0x18] sm:$0xf]
      %v423 = vld [vmem:[%s329 + $0x1c] sm:$0xf]
      %v424 = vld [vmem:[%s332] sm:$0x1]
      %v426 = vlaneseq
      %v427 = vshrl.u32 %v426, 7
      %v428 = vsub.s32 0, %v427
      %v429 = vrot.slane %v424, %v428
      %v439 = vunpack.c.l.b16 %v416
      %v440 = vunpack.c.l.b16 %v417
      %v441 = vunpack.c.l.b16 %v418
      %v442 = vunpack.c.l.b16 %v419
      %v443 = vunpack.c.l.b16 %v420
      %v444 = vunpack.c.l.b16 %v421
      %v445 = vunpack.c.l.b16 %v422
      %v446 = vunpack.c.l.b16 %v423
      %v447 = vpack.c.b16 %v440, %v439
      %v448 = vpack.c.b16 %v442, %v441
      %v449 = vpack.c.b16 %v444, %v443
      %v450 = vpack.c.b16 %v446, %v445
      %vm455 = vcmask 523264
      %v457 = vsel %vm455, %v415, 0
      %459 = vmatprep.subr.bf16.mxu0 0
      %460 = vmatpush1.bf16.msra.mxu0 %v447
      %461 = vmatprep.subr.bf16.mxu0 0
      %462 = vmatpush1.bf16.msra.mxu0 %v448
      %463 = vmatprep.subr.bf16.mxu0 0
      %464 = vmatpush1.bf16.msra.mxu0 %v449
      %465 = vmatprep.subr.bf16.mxu0 0
      %466 = vmatpush1.bf16.msra.mxu0 %v450
      %467 = vmatprep.subr.bf16.mxu0 0
      %468 = vmatpush1.bf16.msra.mxu0 0
      %469 = vmatprep.subr.bf16.mxu0 0
      %470 = vmatpush1.bf16.msra.mxu0 0
      %471 = vmatprep.subr.bf16.mxu0 0
      %472 = vmatpush1.bf16.msra.mxu0 0
      %473 = vmatprep.subr.bf16.mxu0 0
      %474 = vmatpush1.bf16.msra.mxu0 0
      %475 = vmatprep.subr.bf16.mxu0 0
      %476 = vmatpush1.bf16.msra.mxu0 0
      %477 = vmatprep.subr.bf16.mxu0 0
      %478 = vmatpush1.bf16.msra.mxu0 0
      %479 = vmatprep.subr.bf16.mxu0 0
      %480 = vmatpush1.bf16.msra.mxu0 0
      %481 = vmatprep.subr.bf16.mxu0 0
      %482 = vmatpush1.bf16.msra.mxu0 0
      %483 = vmatprep.subr.bf16.mxu0 0
      %484 = vmatpush1.bf16.msra.mxu0 0
      %485 = vmatprep.subr.bf16.mxu0 0
      %486 = vmatpush1.bf16.msra.mxu0 0
      %487 = vmatprep.subr.bf16.mxu0 0
      %488 = vmatpush1.bf16.msra.mxu0 0
      %489 = vmatprep.subr.bf16.mxu0 0
      %490 = vmatpush1.bf16.msra.mxu0 0
      %491 = vmatprep.mubr.bf16.mxu0 0
      %492 = vmatmul.mubr.bf16.gmra.mrb[0].mxu0 %v457
      %v493 = vpop.f32.mrb[0].mxu0
      %v494 = vadd.f32 %v429, %v493
      %v495 = vpop.f32.mrb[0].mxu0
      %v496 = vpop.f32.mrb[0].mxu0
      %v497 = vadd.f32 %v429, %v496
      %v498 = vpop.f32.mrb[0].mxu0
      %499 = vdwg.mxu0
      %v500 = vmul.f32 %v494, 0.5
      %v501 = vmul.f32 %v497, 0.5
      %v502 = vmul.f32 %v494, 0.044715
      %v503 = vmul.f32 %v497, 0.044715
      %v504 = vmul.f32 %v502, %v494
      %v505 = vmul.f32 %v503, %v497
      %v506 = vmul.f32 %v504, %v494
      %v507 = vmul.f32 %v505, %v497
      %v508 = vadd.f32 %v494, %v506
      %v509 = vadd.f32 %v497, %v507
      %v510 = vmul.f32 %v508, 0.7978846
      %v511 = vmul.f32 %v509, 0.7978846
      %v512 = vtanh.pop %v510
      %v513 = vtanh.pop %v511
      %v514 = vadd.f32 %v512, 1.0
      %v515 = vadd.f32 %v513, 1.0
      %v516 = vmul.f32 %v500, %v514
      %v517 = vmul.f32 %v501, %v515
      %v518 = vld [vmem:[#allocation3] sm:$0xff]
      %v519 = vld [vmem:[#allocation3 + $0x8] sm:$0xff]
      %v520 = vpack.c.bf16 %v517, %v516
      %v521 = vld [vmem:[%s337] sm:$0xf]
      %v522 = vld [vmem:[%s337 + $0x4] sm:$0xf]
      %v523 = vld [vmem:[%s337 + $0x8] sm:$0xf]
      %v524 = vld [vmem:[%s337 + $0xc] sm:$0xf]
      %v525 = vld [vmem:[%s337 + $0x10] sm:$0xf]
      %v526 = vld [vmem:[%s337 + $0x14] sm:$0xf]
      %v527 = vld [vmem:[%s337 + $0x18] sm:$0xf]
      %v528 = vld [vmem:[%s337 + $0x1c] sm:$0xf]
      %v529 = vld [vmem:[%s337 + $0x20] sm:$0xf]
      %v530 = vld [vmem:[%s337 + $0x24] sm:$0xf]
      %v531 = vld [vmem:[%s337 + $0x28] sm:$0xf]
      %v532 = vld [vmem:[%s337 + $0x2c] sm:$0xf]
      %v533 = vld [vmem:[%s337 + $0x30] sm:$0xf]
      %v534 = vld [vmem:[%s337 + $0x34] sm:$0xf]
      %v535 = vld [vmem:[%s337 + $0x38] sm:$0xf]
      %v536 = vld [vmem:[%s337 + $0x3c] sm:$0xf]
      %v553 = vunpack.c.l.b16 %v521
      %v554 = vunpack.c.l.b16 %v522
      %v555 = vunpack.c.l.b16 %v523
      %v556 = vunpack.c.l.b16 %v524
      %v557 = vunpack.c.l.b16 %v525
      %v558 = vunpack.c.l.b16 %v526
      %v559 = vunpack.c.l.b16 %v527
      %v560 = vunpack.c.l.b16 %v528
      %v561 = vunpack.c.l.b16 %v529
      %v562 = vunpack.c.l.b16 %v530
      %v563 = vunpack.c.l.b16 %v531
      %v564 = vunpack.c.l.b16 %v532
      %v565 = vunpack.c.l.b16 %v533
      %v566 = vunpack.c.l.b16 %v534
      %v567 = vunpack.c.l.b16 %v535
      %v568 = vunpack.c.l.b16 %v536
      %v569 = vpack.c.b16 %v554, %v553
      %v570 = vpack.c.b16 %v556, %v555
      %v571 = vpack.c.b16 %v558, %v557
      %v572 = vpack.c.b16 %v560, %v559
      %v573 = vpack.c.b16 %v562, %v561
      %v574 = vpack.c.b16 %v564, %v563
      %v575 = vpack.c.b16 %v566, %v565
      %v576 = vpack.c.b16 %v568, %v567
      %585 = vmatprep.subr.bf16.mxu0 0
      %586 = vmatpush1.bf16.msra.mxu0 %v569
      %587 = vmatprep.subr.bf16.mxu0 0
      %588 = vmatpush1.bf16.msra.mxu0 %v570
      %589 = vmatprep.subr.bf16.mxu0 0
      %590 = vmatpush1.bf16.msra.mxu0 %v571
      %591 = vmatprep.subr.bf16.mxu0 0
      %592 = vmatpush1.bf16.msra.mxu0 %v572
      %593 = vmatprep.subr.bf16.mxu0 0
      %594 = vmatpush1.bf16.msra.mxu0 %v573
      %595 = vmatprep.subr.bf16.mxu0 0
      %596 = vmatpush1.bf16.msra.mxu0 %v574
      %597 = vmatprep.subr.bf16.mxu0 0
      %598 = vmatpush1.bf16.msra.mxu0 %v575
      %599 = vmatprep.subr.bf16.mxu0 0
      %600 = vmatpush1.bf16.msra.mxu0 %v576
      %601 = vmatprep.subr.bf16.mxu0 0
      %602 = vmatpush1.bf16.msra.mxu0 0
      %603 = vmatprep.subr.bf16.mxu0 0
      %604 = vmatpush1.bf16.msra.mxu0 0
      %605 = vmatprep.subr.bf16.mxu0 0
      %606 = vmatpush1.bf16.msra.mxu0 0
      %607 = vmatprep.subr.bf16.mxu0 0
      %608 = vmatpush1.bf16.msra.mxu0 0
      %609 = vmatprep.subr.bf16.mxu0 0
      %610 = vmatpush1.bf16.msra.mxu0 0
      %611 = vmatprep.subr.bf16.mxu0 0
      %612 = vmatpush1.bf16.msra.mxu0 0
      %613 = vmatprep.subr.bf16.mxu0 0
      %614 = vmatpush1.bf16.msra.mxu0 0
      %615 = vmatprep.subr.bf16.mxu0 0
      %616 = vmatpush1.bf16.msra.mxu0 0
      %617 = vmatprep.mubr.bf16.mxu0 0
      %618 = vmatmul.mubr.bf16.gmra.mrb[0].mxu0 %v520
      %v619 = vpop.f32.mrb[0].mxu0
      %v620 = vadd.f32 0.0, %v619
      %v621 = vpop.f32.mrb[0].mxu0
      %v622 = vpop.f32.mrb[0].mxu0
      %v623 = vadd.f32 0.0, %v622
      %v624 = vpop.f32.mrb[0].mxu0
      %625 = vdwg.mxu0
      %v626 = vadd.f32 %v518, %v620
      %v627 = vadd.f32 %v519, %v623
      %628 = vst.msk [vmem:[#allocation3] sm:$0xff] %vm455, %v626
      %629 = vst.msk [vmem:[#allocation3 + $0x8] sm:$0xff] %vm455, %v627
      // Predicated region
      $region53: #{vision_encoder.8} parent=47 // pred_check
        %p630 = pneg %p345
      $region54: #{vision_encoder.8} parent=47 // pred_check_branch
        %632 = sbr.rel (%p630) target = $region56
      $region55: #{vision_encoder.8} parent=47 // pred_region
        %v633 = vld [vmem:[#allocation3] sm:$0xff]
        %v634 = vld [vmem:[#allocation3 + $0x8] sm:$0xff]
        %v635 = vpack.c.bf16 %v634, %v633
        %v637 = vunpack.c.l.b16 %v635
        %v638 = vunpack.c.h.b16 %v635
        %v639 = vpack.c.b16 %v637, %v637
        %v640 = vpack.c.b16 %v638, %v638
        %vm643 = vcmask 519168
        %644 = vst.msk [vmem:[%s343] sm:$0xf] %vm643, %v639
        %645 = vst.msk [vmem:[%s343 + $0x4] sm:$0xf] %vm643, %v640
      $region56: #{vision_encoder.8} parent=47 // pred_fallthru
        _
      %p646 = scmp.lt.s32.totalorder %s22, 1
      %s647 = scalar_select %p646, %s22, 1
      %s648 = smul.addr %s647, 2
      %s649 = smul.addr %s648, 4
      %s650 = scalar_lea.vmem %s7, %s649
      // Predicated region
      $region57: #{vision_encoder.8} parent=47 // pred_check
        %p651 = pneg %p215
      $region58: #{vision_encoder.8} parent=47 // pred_check_branch
        %653 = sbr.rel (%p651) target = $region60
      $region59: #{vision_encoder.8} parent=47 // pred_region
        _
      $region60: #{vision_encoder.8} parent=47 // pred_fallthru
        _
    $region48: #{vision_encoder.8} parent=5 // pred_fallthru
      _
    %p654 = scmp.le.s32.totalorder 2, %s13
    // Predicated region
    $region61: #{vision_encoder.8} parent=5 // pred_check
      %p655 = pneg %p654
    $region62: #{vision_encoder.8} parent=5 // pred_check_branch
      %657 = sbr.rel (%p655) target = $region64
    $region63: #{vision_encoder.8} parent=5 // pred_region
      %s658 = ssub.s32 %s13, 2
      // Predicated region
      $region65: #{vision_encoder.8} parent=63 // pred_check
        %p659 = pneg %p221
      $region66: #{vision_encoder.8} parent=63 // pred_check_branch
        %661 = sbr.rel (%p659) target = $region68
      $region67: #{vision_encoder.8} parent=63 // pred_region
        %p662 = scmp.lt.s32.totalorder %s24, 1
        %s663 = scalar_select %p662, %s24, 1
        %s664 = smul.addr %s663, 2
        %s665 = smul.addr %s664, 4
        %s666 = scalar_lea.vmem %s7, %s665
      $region68: #{vision_encoder.8} parent=63 // pred_fallthru
        _
    $region64: #{vision_encoder.8} parent=5 // pred_fallthru
      _
  $region6: #{vision_encoder.8} parent=0 // loop_footer
    %s17 = sadd.s32 1, %s13
  $region7: #{vision_encoder.8} parent=0 // loop_footer_branch
    %12 = sbr.rel target = $region3
  $region8: #{vision_encoder.8} parent=0 // loop_exit
    _

// kernel: vision_encoder.11
$region0: #{vision_encoder.11}
  #allocation0 [shape = 'u32[]', space=smem, size = 0x4, offset = 0x4, fixed_abs, tag = 'smem constant byte address 0x4 - core index']
  #allocation1 [shape = 'u32[144,128]{1,0:T(1,128)}', space=vmem, size = 0x12000, scoped, tag = 'internal scratch']
  #allocation2 [shape = 'f32[16,64]{1,0:T(8,128)}', space=vmem, size = 0x2000, scoped, tag = 'scratch operand']
  #allocation3 [shape = 'f32[16,64]{1,0:T(8,128)}', space=vmem, size = 0x2000, scoped, tag = 'scratch operand']
  %s0 = inlined_call_operand.vmem [shape: bf16[2,16,64], index: 0, kind: input, shape index: {}]
  %s1 = inlined_call_operand.vmem [shape: f32[1,64], index: 1, kind: input, shape index: {}]
  %s2 = inlined_call_operand.vmem [shape: f32[1,64], index: 2, kind: input, shape index: {}]
  %s3 = inlined_call_operand.vmem [shape: bf16[64,256], index: 3, kind: input, shape index: {}]
  %s4 = inlined_call_operand.vmem [shape: f32[1,256], index: 4, kind: input, shape index: {}]
  %s5 = inlined_call_operand.vmem [shape: bf16[256,64], index: 5, kind: input, shape index: {}]
  %s6 = inlined_call_operand.vmem [shape: f32[1,64], index: 6, kind: input, shape index: {}]
  %s7 = inlined_call_operand.hbm [shape: f32[2,16,64], index: 7, kind: output, shape index: {}]
  %s8 = sld [smem:[#allocation0]]
  $region110: #{vision_encoder.11} parent=0
    _
  %s10 = ssub.s32 1, %s8
  %s11 = scalar_select 0, %s10, %s8
  $region1: #{vision_encoder.11} parent=0
    #allocation4 [shape = 'u8[32768]{0}', space=vmem, size = 0x8000, scoped, tag = 'input window, operand 3']
    #allocation5 [shape = 'u8[16384]{0}', space=vmem, size = 0x4000, scoped, tag = 'output window, operand 0']
    #allocation6 [shape = 's32[2]{0}', space=sflag, size = 0x8, scoped, tag = 'scoped memory for vision_encoder.11']
    %12 = vsyncpa [#allocation6], 0
    %s13 = scalar_lea.sflag [#allocation6], 1
    %14 = vsyncpa %s13, 0
    loop: start=0, step=1, limit=6
    $region2: #{vision_encoder.11} parent=1 // loop_pre_header
      _
    $region3: #{vision_encoder.11} parent=1 // loop_header
      %s16 = sphi 0, %s20
      %p17 = scmp.ge.s32.totalorder %s16, 6
      %s23 = sphi 0, %s35
      %s24 = sphi 0, %s31
      %s25 = sphi 0, %s23
      %s26 = sphi 0, %s24
      %s27 = sphi 0, %s25
      %s28 = sphi 0, %s26
      %s38 = sphi 0, %s40
      %s41 = sphi 0, %s38
      %s42 = sphi 0, %s41
      %s58 = sphi 0, %s42
      %s62 = sphi 0, %s62
      %s64 = sphi 0, %s62
      %s65 = sphi 0, %s64
      %s79 = sphi 0, %s65
      %s83 = sphi 0, %s83
      %s85 = sphi 0, %s83
      %s86 = sphi 0, %s85
      %s100 = sphi 0, %s86
      %s106 = sphi 0, %s108
      %s109 = sphi 0, %s106
      %s110 = sphi 0, %s109
      %s126 = sphi 0, %s110
      %s132 = sphi 0, %s134
      %s135 = sphi 0, %s132
      %s136 = sphi 0, %s135
      %s152 = sphi 0, %s136
      %s158 = sphi 0, %s160
      %s161 = sphi 0, %s158
      %s162 = sphi 0, %s161
      %s178 = sphi 0, %s162
      %s182 = sphi 0, %s182
      %s184 = sphi 0, %s182
      %s185 = sphi 0, %s184
      %s199 = sphi 0, %s185
      %s205 = sphi 0, %s207
      %s208 = sphi 0, %s205
      %s209 = sphi 0, %s208
      %s225 = sphi 0, %s209
    $region4: #{vision_encoder.11} parent=1 // loop_header_branch
      %19 = sbr.rel (%p17) target = $region8
    $region5: #{vision_encoder.11} parent=1 // loop_body
      %s21 = ssub.s32 %s16, 1
      %s22 = ssub.s32 %s16, 2
      %s29 = sadd.s32 1, %s24
      %p30 = scmp.ge.s32.totalorder %s29, 2
      %s31 = scalar_select %p30, 0, %s29
      %s32 = sadd.s32 1, %s23
      %s33 = scalar_select %p30, %s32, %s23
      %p34 = scmp.ge.s32.totalorder %s33, 2
      %s35 = scalar_select %p34, 0, %s33
      %s36 = ssub.s32 %s23, %s35
      %p37 = scmp.eq.s32.totalorder %s36, 0
      %s39 = sadd.s32 %s38, 1
      %s40 = scalar_select %p37, %s38, %s39
      %p43 = pneg %p37
      %p44 = scmp.eq.s32.totalorder %s16, 3
      %p45 = por %p43, %p44
      %p46 = scmp.ne.s32.totalorder %s38, %s41
      %p47 = scmp.eq.s32.totalorder %s16, 0
      %p48 = por %p46, %p47
      %p49 = scmp.ne.s32.totalorder %s38, %s41
      %p50 = scmp.eq.s32.totalorder %s21, 3
      %p51 = por %p49, %p50
      %p52 = scmp.ne.s32.totalorder %s41, %s42
      %p53 = scmp.eq.s32.totalorder %s21, 0
      %p54 = por %p52, %p53
      %p55 = scmp.ne.s32.totalorder %s41, %s42
      %p56 = scmp.eq.s32.totalorder %s22, 3
      %p57 = por %p55, %p56
      %p59 = scmp.ne.s32.totalorder %s42, %s58
      %p60 = scmp.eq.s32.totalorder %s22, 0
      %p61 = por %p59, %p60
      %s63 = sadd.s32 %s62, 1
      %p66 = scmp.eq.s32.totalorder %s16, 3
      %p67 = scmp.ne.s32.totalorder %s62, %s64
      %p68 = scmp.eq.s32.totalorder %s16, 0
      %p69 = por %p67, %p68
      %p70 = scmp.ne.s32.totalorder %s62, %s64
      %p71 = scmp.eq.s32.totalorder %s21, 3
      %p72 = por %p70, %p71
      %p73 = scmp.ne.s32.totalorder %s64, %s65
      %p74 = scmp.eq.s32.totalorder %s21, 0
      %p75 = por %p73, %p74
      %p76 = scmp.ne.s32.totalorder %s64, %s65
      %p77 = scmp.eq.s32.totalorder %s22, 3
      %p78 = por %p76, %p77
      %p80 = scmp.ne.s32.totalorder %s65, %s79
      %p81 = scmp.eq.s32.totalorder %s22, 0
      %p82 = por %p80, %p81
      %s84 = sadd.s32 %s83, 1
      %p87 = scmp.eq.s32.totalorder %s16, 3
      %p88 = scmp.ne.s32.totalorder %s83, %s85
      %p89 = scmp.eq.s32.totalorder %s16, 0
      %p90 = por %p88, %p89
      %p91 = scmp.ne.s32.totalorder %s83, %s85
      %p92 = scmp.eq.s32.totalorder %s21, 3
      %p93 = por %p91, %p92
      %p94 = scmp.ne.s32.totalorder %s85, %s86
      %p95 = scmp.eq.s32.totalorder %s21, 0
      %p96 = por %p94, %p95
      %p97 = scmp.ne.s32.totalorder %s85, %s86
      %p98 = scmp.eq.s32.totalorder %s22, 3
      %p99 = por %p97, %p98
      %p101 = scmp.ne.s32.totalorder %s86, %s100
      %p102 = scmp.eq.s32.totalorder %s22, 0
      %p103 = por %p101, %p102
      %s104 = ssub.s32 %s24, %s31
      %p105 = scmp.eq.s32.totalorder %s104, 0
      %s107 = sadd.s32 %s106, 1
      %s108 = scalar_select %p105, %s106, %s107
      %p111 = pneg %p105
      %p112 = scmp.eq.s32.totalorder %s16, 3
      %p113 = por %p111, %p112
      %p114 = scmp.ne.s32.totalorder %s106, %s109
      %p115 = scmp.eq.s32.totalorder %s16, 0
      %p116 = por %p114, %p115
      %p117 = scmp.ne.s32.totalorder %s106, %s109
      %p118 = scmp.eq.s32.totalorder %s21, 3
      %p119 = por %p117, %p118
      %p120 = scmp.ne.s32.totalorder %s109, %s110
      %p121 = scmp.eq.s32.totalorder %s21, 0
      %p122 = por %p120, %p121
      %p123 = scmp.ne.s32.totalorder %s109, %s110
      %p124 = scmp.eq.s32.totalorder %s22, 3
      %p125 = por %p123, %p124
      %p127 = scmp.ne.s32.totalorder %s110, %s126
      %p128 = scmp.eq.s32.totalorder %s22, 0
      %p129 = por %p127, %p128
      %s130 = ssub.s32 %s24, %s31
      %p131 = scmp.eq.s32.totalorder %s130, 0
      %s133 = sadd.s32 %s132, 1
      %s134 = scalar_select %p131, %s132, %s133
      %p137 = pneg %p131
      %p138 = scmp.eq.s32.totalorder %s16, 3
      %p139 = por %p137, %p138
      %p140 = scmp.ne.s32.totalorder %s132, %s135
      %p141 = scmp.eq.s32.totalorder %s16, 0
      %p142 = por %p140, %p141
      %p143 = scmp.ne.s32.totalorder %s132, %s135
      %p144 = scmp.eq.s32.totalorder %s21, 3
      %p145 = por %p143, %p144
      %p146 = scmp.ne.s32.totalorder %s135, %s136
      %p147 = scmp.eq.s32.totalorder %s21, 0
      %p148 = por %p146, %p147
      %p149 = scmp.ne.s32.totalorder %s135, %s136
      %p150 = scmp.eq.s32.totalorder %s22, 3
      %p151 = por %p149, %p150
      %p153 = scmp.ne.s32.totalorder %s136, %s152
      %p154 = scmp.eq.s32.totalorder %s22, 0
      %p155 = por %p153, %p154
      %s156 = ssub.s32 %s24, %s31
      %p157 = scmp.eq.s32.totalorder %s156, 0
      %s159 = sadd.s32 %s158, 1
      %s160 = scalar_select %p157, %s158, %s159
      %p163 = pneg %p157
      %p164 = scmp.eq.s32.totalorder %s16, 3
      %p165 = por %p163, %p164
      %p166 = scmp.ne.s32.totalorder %s158, %s161
      %p167 = scmp.eq.s32.totalorder %s16, 0
      %p168 = por %p166, %p167
      %p169 = scmp.ne.s32.totalorder %s158, %s161
      %p170 = scmp.eq.s32.totalorder %s21, 3
      %p171 = por %p169, %p170
      %p172 = scmp.ne.s32.totalorder %s161, %s162
      %p173 = scmp.eq.s32.totalorder %s21, 0
      %p174 = por %p172, %p173
      %p175 = scmp.ne.s32.totalorder %s161, %s162
      %p176 = scmp.eq.s32.totalorder %s22, 3
      %p177 = por %p175, %p176
      %p179 = scmp.ne.s32.totalorder %s162, %s178
      %p180 = scmp.eq.s32.totalorder %s22, 0
      %p181 = por %p179, %p180
      %s183 = sadd.s32 %s182, 1
      %p186 = scmp.eq.s32.totalorder %s16, 3
      %p187 = scmp.ne.s32.totalorder %s182, %s184
      %p188 = scmp.eq.s32.totalorder %s16, 0
      %p189 = por %p187, %p188
      %p190 = scmp.ne.s32.totalorder %s182, %s184
      %p191 = scmp.eq.s32.totalorder %s21, 3
      %p192 = por %p190, %p191
      %p193 = scmp.ne.s32.totalorder %s184, %s185
      %p194 = scmp.eq.s32.totalorder %s21, 0
      %p195 = por %p193, %p194
      %p196 = scmp.ne.s32.totalorder %s184, %s185
      %p197 = scmp.eq.s32.totalorder %s22, 3
      %p198 = por %p196, %p197
      %p200 = scmp.ne.s32.totalorder %s185, %s199
      %p201 = scmp.eq.s32.totalorder %s22, 0
      %p202 = por %p200, %p201
      %s203 = ssub.s32 %s23, %s35
      %p204 = scmp.eq.s32.totalorder %s203, 0
      %s206 = sadd.s32 %s205, 1
      %s207 = scalar_select %p204, %s205, %s206
      %p210 = pneg %p204
      %p211 = scmp.eq.s32.totalorder %s16, 3
      %p212 = por %p210, %p211
      %p213 = scmp.ne.s32.totalorder %s205, %s208
      %p214 = scmp.eq.s32.totalorder %s16, 0
      %p215 = por %p213, %p214
      %p216 = scmp.ne.s32.totalorder %s205, %s208
      %p217 = scmp.eq.s32.totalorder %s21, 3
      %p218 = por %p216, %p217
      %p219 = scmp.ne.s32.totalorder %s208, %s209
      %p220 = scmp.eq.s32.totalorder %s21, 0
      %p221 = por %p219, %p220
      %p222 = scmp.ne.s32.totalorder %s208, %s209
      %p223 = scmp.eq.s32.totalorder %s22, 3
      %p224 = por %p222, %p223
      %p226 = scmp.ne.s32.totalorder %s209, %s225
      %p227 = scmp.eq.s32.totalorder %s22, 0
      %p228 = por %p226, %p227
      %p229 = scmp.le.s32.totalorder 1, %s16
      %p230 = scmp.lt.s32.totalorder %s16, 5
      %p231 = pnand %p229, %p230
      %p232 = pneg %p231
      // Predicated region
      $region9: #{vision_encoder.11} parent=5 // pred_check
        _
      $region10: #{vision_encoder.11} parent=5 // pred_check_branch
        %234 = sbr.rel (%p231) target = $region12
      $region11: #{vision_encoder.11} parent=5 // pred_region
        %s235 = ssub.s32 %s16, 1
        // Predicated region
        $region13: #{vision_encoder.11} parent=11 // pred_check
          %p236 = pneg %p75
        $region14: #{vision_encoder.11} parent=11 // pred_check_branch
          %238 = sbr.rel (%p236) target = $region16
        $region15: #{vision_encoder.11} parent=11 // pred_region
          _
        $region16: #{vision_encoder.11} parent=11 // pred_fallthru
          _
        // Predicated region
        $region17: #{vision_encoder.11} parent=11 // pred_check
          %p239 = pneg %p96
        $region18: #{vision_encoder.11} parent=11 // pred_check_branch
          %241 = sbr.rel (%p239) target = $region20
        $region19: #{vision_encoder.11} parent=11 // pred_region
          _
        $region20: #{vision_encoder.11} parent=11 // pred_fallthru
          _
        // Predicated region
        $region21: #{vision_encoder.11} parent=11 // pred_check
          %p242 = pneg %p195
        $region22: #{vision_encoder.11} parent=11 // pred_check_branch
          %244 = sbr.rel (%p242) target = $region24
        $region23: #{vision_encoder.11} parent=11 // pred_region
          _
        $region24: #{vision_encoder.11} parent=11 // pred_fallthru
          _
      $region12: #{vision_encoder.11} parent=5 // pred_fallthru
        _
      %p245 = scmp.lt.s32.totalorder %s16, 4
      // Predicated region
      $region25: #{vision_encoder.11} parent=5 // pred_check
        %p246 = pneg %p245
      $region26: #{vision_encoder.11} parent=5 // pred_check_branch
        %248 = sbr.rel (%p246) target = $region28
      $region27: #{vision_encoder.11} parent=5 // pred_region
        // Predicated region
        $region29: #{vision_encoder.11} parent=27 // pred_check
          %p249 = pneg %p48
        $region30: #{vision_encoder.11} parent=27 // pred_check_branch
          %251 = sbr.rel (%p249) target = $region32
        $region31: #{vision_encoder.11} parent=27 // pred_region
          %p252 = scmp.lt.s32.totalorder %s23, 1
          %s253 = scalar_select %p252, %s23, 1
          %s254 = smul.addr %s253, 2
          %s255 = smul.addr %s254, 4
          %s256 = scalar_lea.vmem %s0, %s255
        $region32: #{vision_encoder.11} parent=27 // pred_fallthru
          _
        // Predicated region
        $region33: #{vision_encoder.11} parent=27 // pred_check
          %p257 = pneg %p116
        $region34: #{vision_encoder.11} parent=27 // pred_check_branch
          %259 = sbr.rel (%p257) target = $region36
        $region35: #{vision_encoder.11} parent=27 // pred_region
          %s260 = sand.u32 %s106, 1
          %s261 = sand.u32 %s106, 1
          %s262 = smul.addr %s261, 32
          %s263 = scalar_lea.vmem [#allocation4], %s262
          %s264 = smul.addr %s24, 4
          %s265 = scalar_lea.vmem %s3, %s264
          // Predicated region
          $region37: #{vision_encoder.11} parent=35 // pred_check
            _
          $region38: #{vision_encoder.11} parent=35 // pred_check_branch
            %267 = sbr.rel (0) target = $region40
          $region39: #{vision_encoder.11} parent=35 // pred_region
            // Predicated region
            $region41: #{vision_encoder.11} parent=39 // pred_check
              _
            $region42: #{vision_encoder.11} parent=39 // pred_check_branch
              %269 = sbr.rel target = $region44
            $region43: #{vision_encoder.11} parent=39 // pred_region
              // Predicated region
              $region56: #{vision_encoder.11} parent=43 // pred_check
                _
              $region57: #{vision_encoder.11} parent=43 // pred_check_branch
                %298 = sbr.rel (0) target = $region59
              $region58: #{vision_encoder.11} parent=43 // pred_region
                loop: start=0, step=1, limit=1
                $region60: #{vision_encoder.11} parent=58 // loop_pre_header
                  _
                $region61: #{vision_encoder.11} parent=58 // loop_header
                  %s300 = sphi 0, %s304
                  %p301 = scmp.ge.s32.totalorder %s300, 1
                  %s305 = sphi %s265, %s265
                  %s306 = sphi %s263, %s263
                $region62: #{vision_encoder.11} parent=58 // loop_header_branch
                  %303 = sbr.rel (%p301) target = $region66
                $region63: #{vision_encoder.11} parent=58 // loop_body
                  _
                $region64: #{vision_encoder.11} parent=58 // loop_footer
                  %s304 = sadd.s32 1, %s300
                $region65: #{vision_encoder.11} parent=58 // loop_footer_branch
                  %299 = sbr.rel target = $region61
                $region66: #{vision_encoder.11} parent=58 // loop_exit
                  _
                loop: start=0, step=1, limit=1
                $region67: #{vision_encoder.11} parent=58 // loop_pre_header
                  _
                $region68: #{vision_encoder.11} parent=58 // loop_header
                  %s309 = sphi 0, %s313
                  %p310 = scmp.ge.s32.totalorder %s309, 1
                  %s314 = sphi %s265, %s265
                  %s315 = sphi %s263, %s263
                $region69: #{vision_encoder.11} parent=58 // loop_header_branch
                  %312 = sbr.rel (%p310) target = $region73
                $region70: #{vision_encoder.11} parent=58 // loop_body
                  %v316 = vld [vmem:[%s314] sm:$0xf]
                  %317 = vst [vmem:[%s315] sm:$0xf] %v316
                  %v318 = vld [vmem:[%s314 + $0x8] sm:$0xf]
                  %319 = vst [vmem:[%s315 + $0x4] sm:$0xf] %v318
                  %v320 = vld [vmem:[%s314 + $0x10] sm:$0xf]
                  %321 = vst [vmem:[%s315 + $0x8] sm:$0xf] %v320
                  %v322 = vld [vmem:[%s314 + $0x18] sm:$0xf]
                  %323 = vst [vmem:[%s315 + $0xc] sm:$0xf] %v322
                  %v324 = vld [vmem:[%s314 + $0x20] sm:$0xf]
                  %325 = vst [vmem:[%s315 + $0x10] sm:$0xf] %v324
                  %v326 = vld [vmem:[%s314 + $0x28] sm:$0xf]
                  %327 = vst [vmem:[%s315 + $0x14] sm:$0xf] %v326
                  %v328 = vld [vmem:[%s314 + $0x30] sm:$0xf]
                  %329 = vst [vmem:[%s315 + $0x18] sm:$0xf] %v328
                  %v330 = vld [vmem:[%s314 + $0x38] sm:$0xf]
                  %331 = vst [vmem:[%s315 + $0x1c] sm:$0xf] %v330
                $region71: #{vision_encoder.11} parent=58 // loop_footer
                  %s313 = sadd.s32 1, %s309
                $region72: #{vision_encoder.11} parent=58 // loop_footer_branch
                  %308 = sbr.rel target = $region68
                $region73: #{vision_encoder.11} parent=58 // loop_exit
                  _
              $region59: #{vision_encoder.11} parent=43 // pred_fallthru
                _
            $region44: #{vision_encoder.11} parent=39 // pred_fallthru
              _
            // Predicated region
            $region45: #{vision_encoder.11} parent=39 // pred_check
              _
            $region46: #{vision_encoder.11} parent=39 // pred_check_branch
              %271 = sbr.rel (0) target = $region48
            $region47: #{vision_encoder.11} parent=39 // pred_region
              loop: start=0, step=1, limit=1
              $region49: #{vision_encoder.11} parent=47 // loop_pre_header
                _
              $region50: #{vision_encoder.11} parent=47 // loop_header
                %s274 = sphi 0, %s278
                %p275 = scmp.ge.s32.totalorder %s274, 1
                %s279 = sphi %s265, %s265
                %s280 = sphi %s263, %s263
              $region51: #{vision_encoder.11} parent=47 // loop_header_branch
                %277 = sbr.rel (%p275) target = $region55
              $region52: #{vision_encoder.11} parent=47 // loop_body
                %v281 = vld [vmem:[%s279] sm:$0xf]
                %282 = vst [vmem:[%s280] sm:$0xf] %v281
                %v283 = vld [vmem:[%s279 + $0x8] sm:$0xf]
                %284 = vst [vmem:[%s280 + $0x4] sm:$0xf] %v283
                %v285 = vld [vmem:[%s279 + $0x10] sm:$0xf]
                %286 = vst [vmem:[%s280 + $0x8] sm:$0xf] %v285
                %v287 = vld [vmem:[%s279 + $0x18] sm:$0xf]
                %288 = vst [vmem:[%s280 + $0xc] sm:$0xf] %v287
                %v289 = vld [vmem:[%s279 + $0x20] sm:$0xf]
                %290 = vst [vmem:[%s280 + $0x10] sm:$0xf] %v289
                %v291 = vld [vmem:[%s279 + $0x28] sm:$0xf]
                %292 = vst [vmem:[%s280 + $0x14] sm:$0xf] %v291
                %v293 = vld [vmem:[%s279 + $0x30] sm:$0xf]
                %294 = vst [vmem:[%s280 + $0x18] sm:$0xf] %v293
                %v295 = vld [vmem:[%s279 + $0x38] sm:$0xf]
                %296 = vst [vmem:[%s280 + $0x1c] sm:$0xf] %v295
              $region53: #{vision_encoder.11} parent=47 // loop_footer
                %s278 = sadd.s32 1, %s274
              $region54: #{vision_encoder.11} parent=47 // loop_footer_branch
                %273 = sbr.rel target = $region50
              $region55: #{vision_encoder.11} parent=47 // loop_exit
                _
            $region48: #{vision_encoder.11} parent=39 // pred_fallthru
              _
          $region40: #{vision_encoder.11} parent=35 // pred_fallthru
            _
          %332 = vnop
        $region36: #{vision_encoder.11} parent=27 // pred_fallthru
          _
        // Predicated region
        $region74: #{vision_encoder.11} parent=27 // pred_check
          %p333 = pneg %p142
        $region75: #{vision_encoder.11} parent=27 // pred_check_branch
          %335 = sbr.rel (%p333) target = $region77
        $region76: #{vision_encoder.11} parent=27 // pred_region
          %p336 = scmp.lt.s32.totalorder %s24, 1
          %s337 = scalar_select %p336, %s24, 1
          %s338 = scalar_lea.vmem %s4, %s337
        $region77: #{vision_encoder.11} parent=27 // pred_fallthru
          _
        // Predicated region
        $region78: #{vision_encoder.11} parent=27 // pred_check
          %p339 = pneg %p168
        $region79: #{vision_encoder.11} parent=27 // pred_check_branch
          %341 = sbr.rel (%p339) target = $region81
        $region80: #{vision_encoder.11} parent=27 // pred_region
          %s342 = smul.u32 16, %s24
          %p343 = scmp.lt.s32.totalorder %s342, 31
          %s344 = scalar_select %p343, %s342, 31
          %s345 = smul.addr %s344, 4
          %s346 = scalar_lea.vmem %s5, %s345
          %s347 = smul.u32 16, %s24
        $region81: #{vision_encoder.11} parent=27 // pred_fallthru
          _
      $region28: #{vision_encoder.11} parent=5 // pred_fallthru
        _
      %p348 = scmp.le.s32.totalorder 1, %s16
      %p349 = scmp.lt.s32.totalorder %s16, 5
      %p350 = pnand %p348, %p349
      %p351 = pneg %p350
      // Predicated region
      $region82: #{vision_encoder.11} parent=5 // pred_check
        _
      $region83: #{vision_encoder.11} parent=5 // pred_check_branch
        %353 = sbr.rel (%p350) target = $region85
      $region84: #{vision_encoder.11} parent=5 // pred_region
        %s354 = ssub.s32 %s16, 1
        %s355 = sand.u32 %s109, 1
        %s356 = sand.u32 %s109, 1
        %s357 = smul.addr %s356, 32
        %s358 = scalar_lea.vmem [#allocation4], %s357
        // Predicated region
        $region86: #{vision_encoder.11} parent=84 // pred_check
          %p359 = pneg %p122
        $region87: #{vision_encoder.11} parent=84 // pred_check_branch
          %361 = sbr.rel (%p359) target = $region89
        $region88: #{vision_encoder.11} parent=84 // pred_region
          _
        $region89: #{vision_encoder.11} parent=84 // pred_fallthru
          _
        %p362 = scmp.lt.s32.totalorder %s25, 1
        %s363 = scalar_select %p362, %s25, 1
        %s364 = smul.addr %s363, 2
        %s365 = smul.addr %s364, 4
        %s366 = scalar_lea.vmem %s0, %s365
        %p367 = pneg %p54
        %p368 = pneg %p51
        %p369 = pneg %p75
        %p370 = pneg %p72
        %p371 = pneg %p96
        %p372 = pneg %p93
        %s373 = sand.u32 %s109, 1
        %s374 = sand.u32 %s109, 1
        %s375 = smul.addr %s374, 32
        %s376 = scalar_lea.vmem [#allocation4], %s375
        %p377 = pneg %p122
        %p378 = pneg %p119
        %p379 = scmp.lt.s32.totalorder %s26, 1
        %s380 = scalar_select %p379, %s26, 1
        %s381 = scalar_lea.vmem %s4, %s380
        %p382 = pneg %p148
        %p383 = pneg %p145
        %s384 = smul.u32 16, %s26
        %p385 = scmp.lt.s32.totalorder %s384, 31
        %s386 = scalar_select %p385, %s384, 31
        %s387 = smul.addr %s386, 4
        %s388 = scalar_lea.vmem %s5, %s387
        %p389 = pneg %p174
        %p390 = pneg %p171
        %p391 = pneg %p195
        %p392 = pneg %p192
        %p393 = pneg %p221
        %p394 = pneg %p218
        %s395 = sand.u32 %s208, 1
        %s396 = scalar_lea.sflag [#allocation6], %s395
        %s397 = sand.u32 %s208, 1
        %s398 = smul.addr %s397, 16
        %s399 = scalar_lea.vmem [#allocation5], %s398
        %p400 = scmp.lt.s32.totalorder %s25, 1
        %s401 = scalar_select %p400, %s25, 1
        %s402 = smul.addr %s401, 2
        %s403 = smul.addr %s402, 4
        %s404 = scalar_lea.vmem %s0, %s403
        %p405 = scmp.lt.s32.totalorder %s26, 1
        %s406 = scalar_select %p405, %s26, 1
        %s407 = scalar_lea.vmem %s4, %s406
        %s408 = smul.u32 16, %s26
        %p409 = scmp.lt.s32.totalorder %s408, 31
        %s410 = scalar_select %p409, %s408, 31
        %s411 = smul.addr %s410, 4
        %s412 = scalar_lea.vmem %s5, %s411
        %s413 = smul.u32 16, %s26
        %p415 = scmp.eq.s32.totalorder %s26, 0
        // Predicated region
        $region90: #{vision_encoder.11} parent=84 // pred_check
          %p416 = pneg %p415
        $region91: #{vision_encoder.11} parent=84 // pred_check_branch
          %418 = sbr.rel (%p416) target = $region93
        $region92: #{vision_encoder.11} parent=84 // pred_region
          %v419 = vld [vmem:[%s404] sm:$0xf]
          %v420 = vld [vmem:[%s404 + $0x4] sm:$0xf]
          %v421 = vunpack.c.l.bf16 %v419
          %v422 = vunpack.c.l.bf16 %v420
          %v423 = vld [vmem:[%s1] sm:$0x1]
          %v424 = vld [vmem:[%s2] sm:$0x1]
          %vm425 = vcmask 523264
          %v426 = vsel %vm425, %v421, 0.0
          %427 = vadd.xlane.f32.xlu0 %v426
          %v428 = vpop.xlane.xlu0 %427
          %v429 = vsel %vm425, %v422, 0.0
          %430 = vadd.xlane.f32.xlu0 %v429
          %v431 = vpop.xlane.xlu0 %430
          %v432 = vrcp.pop 64.0
          %v433 = vmul.f32 %v428, %v432
          %v434 = vmul.f32 %v431, %v432
          %v435 = vsub.f32 %v421, %v433
          %v436 = vsub.f32 %v422, %v434
          %v437 = vmul.f32 %v435, %v435
          %v438 = vmul.f32 %v436, %v436
          %v439 = vsel %vm425, %v437, 0.0
          %440 = vadd.xlane.f32.xlu0 %v439
          %v441 = vpop.xlane.xlu0 %440
          %v442 = vsel %vm425, %v438, 0.0
          %443 = vadd.xlane.f32.xlu0 %v442
          %v444 = vpop.xlane.xlu0 %443
          %v445 = vmul.f32 %v441, %v432
          %v446 = vmul.f32 %v444, %v432
          %v447 = vadd.f32 %v445, 1e-05
          %v448 = vadd.f32 %v446, 1e-05
          %v449 = vrsqrt.pop %v447
          %v450 = vrsqrt.pop %v448
          %v451 = vmul.f32 %v435, %v449
          %v452 = vmul.f32 %v436, %v450
          %v454 = vlaneseq
          %v455 = vshrl.u32 %v454, 7
          %v456 = vsub.s32 0, %v455
          %v457 = vrot.slane %v423, %v456
          %v459 = vmul.f32 %v451, %v457
          %v460 = vmul.f32 %v452, %v457
          %v462 = vlaneseq
          %v463 = vshrl.u32 %v462, 7
          %v464 = vsub.s32 0, %v463
          %v465 = vrot.slane %v424, %v464
          %v467 = vadd.f32 %v459, %v465
          %v468 = vadd.f32 %v460, %v465
          %469 = vst.msk [vmem:[#allocation2] sm:$0xff] %vm425, %v467
          %470 = vst.msk [vmem:[#allocation2 + $0x8] sm:$0xff] %vm425, %v468
          %v471 = vld [vmem:[%s6] sm:$0x1]
          %v473 = vlaneseq
          %v474 = vshrl.u32 %v473, 7
          %v475 = vsub.s32 0, %v474
          %v476 = vrot.slane %v471, %v475
          %v478 = vadd.f32 %v476, 0.0
          %479 = vst.msk [vmem:[#allocation3] sm:$0xff] %vm425, %v478
          %480 = vst.msk [vmem:[#allocation3 + $0x8] sm:$0xff] %vm425, %v478
        $region93: #{vision_encoder.11} parent=84 // pred_fallthru
          _
        %v481 = vld [vmem:[#allocation2] sm:$0xff]
        %v482 = vld [vmem:[#allocation2 + $0x8] sm:$0xff]
        %v483 = vpack.c.bf16 %v482, %v481
        %v484 = vld [vmem:[%s358] sm:$0xf]
        %v485 = vld [vmem:[%s358 + $0x4] sm:$0xf]
        %v486 = vld [vmem:[%s358 + $0x8] sm:$0xf]
        %v487 = vld [vmem:[%s358 + $0xc] sm:$0xf]
        %v488 = vld [vmem:[%s358 + $0x10] sm:$0xf]
        %v489 = vld [vmem:[%s358 + $0x14] sm:$0xf]
        %v490 = vld [vmem:[%s358 + $0x18] sm:$0xf]
        %v491 = vld [vmem:[%s358 + $0x1c] sm:$0xf]
        %v492 = vld [vmem:[%s407] sm:$0x1]
        %v494 = vlaneseq
        %v495 = vshrl.u32 %v494, 7
        %v496 = vsub.s32 0, %v495
        %v497 = vrot.slane %v492, %v496
        %v507 = vunpack.c.l.b16 %v484
        %v508 = vunpack.c.l.b16 %v485
        %v509 = vunpack.c.l.b16 %v486
        %v510 = vunpack.c.l.b16 %v487
        %v511 = vunpack.c.l.b16 %v488
        %v512 = vunpack.c.l.b16 %v489
        %v513 = vunpack.c.l.b16 %v490
        %v514 = vunpack.c.l.b16 %v491
        %v515 = vpack.c.b16 %v508, %v507
        %v516 = vpack.c.b16 %v510, %v509
        %v517 = vpack.c.b16 %v512, %v511
        %v518 = vpack.c.b16 %v514, %v513
        %vm523 = vcmask 523264
        %v525 = vsel %vm523, %v483, 0
        %527 = vmatprep.subr.bf16.mxu0 0
        %528 = vmatpush1.bf16.msra.mxu0 %v515
        %529 = vmatprep.subr.bf16.mxu0 0
        %530 = vmatpush1.bf16.msra.mxu0 %v516
        %531 = vmatprep.subr.bf16.mxu0 0
        %532 = vmatpush1.bf16.msra.mxu0 %v517
        %533 = vmatprep.subr.bf16.mxu0 0
        %534 = vmatpush1.bf16.msra.mxu0 %v518
        %535 = vmatprep.subr.bf16.mxu0 0
        %536 = vmatpush1.bf16.msra.mxu0 0
        %537 = vmatprep.subr.bf16.mxu0 0
        %538 = vmatpush1.bf16.msra.mxu0 0
        %539 = vmatprep.subr.bf16.mxu0 0
        %540 = vmatpush1.bf16.msra.mxu0 0
        %541 = vmatprep.subr.bf16.mxu0 0
        %542 = vmatpush1.bf16.msra.mxu0 0
        %543 = vmatprep.subr.bf16.mxu0 0
        %544 = vmatpush1.bf16.msra.mxu0 0
        %545 = vmatprep.subr.bf16.mxu0 0
        %546 = vmatpush1.bf16.msra.mxu0 0
        %547 = vmatprep.subr.bf16.mxu0 0
        %548 = vmatpush1.bf16.msra.mxu0 0
        %549 = vmatprep.subr.bf16.mxu0 0
        %550 = vmatpush1.bf16.msra.mxu0 0
        %551 = vmatprep.subr.bf16.mxu0 0
        %552 = vmatpush1.bf16.msra.mxu0 0
        %553 = vmatprep.subr.bf16.mxu0 0
        %554 = vmatpush1.bf16.msra.mxu0 0
        %555 = vmatprep.subr.bf16.mxu0 0
        %556 = vmatpush1.bf16.msra.mxu0 0
        %557 = vmatprep.subr.bf16.mxu0 0
        %558 = vmatpush1.bf16.msra.mxu0 0
        %559 = vmatprep.mubr.bf16.mxu0 0
        %560 = vmatmul.mubr.bf16.gmra.mrb[0].mxu0 %v525
        %v561 = vpop.f32.mrb[0].mxu0
        %v562 = vadd.f32 %v497, %v561
        %v563 = vpop.f32.mrb[0].mxu0
        %v564 = vpop.f32.mrb[0].mxu0
        %v565 = vadd.f32 %v497, %v564
        %v566 = vpop.f32.mrb[0].mxu0
        %567 = vdwg.mxu0
        %v568 = vmul.f32 %v562, 0.5
        %v569 = vmul.f32 %v565, 0.5
        %v570 = vmul.f32 %v562, 0.044715
        %v571 = vmul.f32 %v565, 0.044715
        %v572 = vmul.f32 %v570, %v562
        %v573 = vmul.f32 %v571, %v565
        %v574 = vmul.f32 %v572, %v562
        %v575 = vmul.f32 %v573, %v565
        %v576 = vadd.f32 %v562, %v574
        %v577 = vadd.f32 %v565, %v575
        %v578 = vmul.f32 %v576, 0.7978846
        %v579 = vmul.f32 %v577, 0.7978846
        %v580 = vtanh.pop %v578
        %v581 = vtanh.pop %v579
        %v582 = vadd.f32 %v580, 1.0
        %v583 = vadd.f32 %v581, 1.0
        %v584 = vmul.f32 %v568, %v582
        %v585 = vmul.f32 %v569, %v583
        %v586 = vld [vmem:[#allocation3] sm:$0xff]
        %v587 = vld [vmem:[#allocation3 + $0x8] sm:$0xff]
        %v588 = vpack.c.bf16 %v585, %v584
        %v589 = vld [vmem:[%s412] sm:$0xf]
        %v590 = vld [vmem:[%s412 + $0x4] sm:$0xf]
        %v591 = vld [vmem:[%s412 + $0x8] sm:$0xf]
        %v592 = vld [vmem:[%s412 + $0xc] sm:$0xf]
        %v593 = vld [vmem:[%s412 + $0x10] sm:$0xf]
        %v594 = vld [vmem:[%s412 + $0x14] sm:$0xf]
        %v595 = vld [vmem:[%s412 + $0x18] sm:$0xf]
        %v596 = vld [vmem:[%s412 + $0x1c] sm:$0xf]
        %v597 = vld [vmem:[%s412 + $0x20] sm:$0xf]
        %v598 = vld [vmem:[%s412 + $0x24] sm:$0xf]
        %v599 = vld [vmem:[%s412 + $0x28] sm:$0xf]
        %v600 = vld [vmem:[%s412 + $0x2c] sm:$0xf]
        %v601 = vld [vmem:[%s412 + $0x30] sm:$0xf]
        %v602 = vld [vmem:[%s412 + $0x34] sm:$0xf]
        %v603 = vld [vmem:[%s412 + $0x38] sm:$0xf]
        %v604 = vld [vmem:[%s412 + $0x3c] sm:$0xf]
        %v621 = vunpack.c.l.b16 %v589
        %v622 = vunpack.c.l.b16 %v590
        %v623 = vunpack.c.l.b16 %v591
        %v624 = vunpack.c.l.b16 %v592
        %v625 = vunpack.c.l.b16 %v593
        %v626 = vunpack.c.l.b16 %v594
        %v627 = vunpack.c.l.b16 %v595
        %v628 = vunpack.c.l.b16 %v596
        %v629 = vunpack.c.l.b16 %v597
        %v630 = vunpack.c.l.b16 %v598
        %v631 = vunpack.c.l.b16 %v599
        %v632 = vunpack.c.l.b16 %v600
        %v633 = vunpack.c.l.b16 %v601
        %v634 = vunpack.c.l.b16 %v602
        %v635 = vunpack.c.l.b16 %v603
        %v636 = vunpack.c.l.b16 %v604
        %v637 = vpack.c.b16 %v622, %v621
        %v638 = vpack.c.b16 %v624, %v623
        %v639 = vpack.c.b16 %v626, %v625
        %v640 = vpack.c.b16 %v628, %v627
        %v641 = vpack.c.b16 %v630, %v629
        %v642 = vpack.c.b16 %v632, %v631
        %v643 = vpack.c.b16 %v634, %v633
        %v644 = vpack.c.b16 %v636, %v635
        %653 = vmatprep.subr.bf16.mxu0 0
        %654 = vmatpush1.bf16.msra.mxu0 %v637
        %655 = vmatprep.subr.bf16.mxu0 0
        %656 = vmatpush1.bf16.msra.mxu0 %v638
        %657 = vmatprep.subr.bf16.mxu0 0
        %658 = vmatpush1.bf16.msra.mxu0 %v639
        %659 = vmatprep.subr.bf16.mxu0 0
        %660 = vmatpush1.bf16.msra.mxu0 %v640
        %661 = vmatprep.subr.bf16.mxu0 0
        %662 = vmatpush1.bf16.msra.mxu0 %v641
        %663 = vmatprep.subr.bf16.mxu0 0
        %664 = vmatpush1.bf16.msra.mxu0 %v642
        %665 = vmatprep.subr.bf16.mxu0 0
        %666 = vmatpush1.bf16.msra.mxu0 %v643
        %667 = vmatprep.subr.bf16.mxu0 0
        %668 = vmatpush1.bf16.msra.mxu0 %v644
        %669 = vmatprep.subr.bf16.mxu0 0
        %670 = vmatpush1.bf16.msra.mxu0 0
        %671 = vmatprep.subr.bf16.mxu0 0
        %672 = vmatpush1.bf16.msra.mxu0 0
        %673 = vmatprep.subr.bf16.mxu0 0
        %674 = vmatpush1.bf16.msra.mxu0 0
        %675 = vmatprep.subr.bf16.mxu0 0
        %676 = vmatpush1.bf16.msra.mxu0 0
        %677 = vmatprep.subr.bf16.mxu0 0
        %678 = vmatpush1.bf16.msra.mxu0 0
        %679 = vmatprep.subr.bf16.mxu0 0
        %680 = vmatpush1.bf16.msra.mxu0 0
        %681 = vmatprep.subr.bf16.mxu0 0
        %682 = vmatpush1.bf16.msra.mxu0 0
        %683 = vmatprep.subr.bf16.mxu0 0
        %684 = vmatpush1.bf16.msra.mxu0 0
        %685 = vmatprep.mubr.bf16.mxu0 0
        %686 = vmatmul.mubr.bf16.gmra.mrb[0].mxu0 %v588
        %v687 = vpop.f32.mrb[0].mxu0
        %v688 = vadd.f32 0.0, %v687
        %v689 = vpop.f32.mrb[0].mxu0
        %v690 = vpop.f32.mrb[0].mxu0
        %v691 = vadd.f32 0.0, %v690
        %v692 = vpop.f32.mrb[0].mxu0
        %693 = vdwg.mxu0
        %v694 = vadd.f32 %v586, %v688
        %v695 = vadd.f32 %v587, %v691
        %696 = vst.msk [vmem:[#allocation3] sm:$0xff] %vm523, %v694
        %697 = vst.msk [vmem:[#allocation3 + $0x8] sm:$0xff] %vm523, %v695
        %p698 = scmp.eq.s32.totalorder %s26, 1
        // Predicated region
        $region94: #{vision_encoder.11} parent=84 // pred_check
          %p699 = pneg %p698
        $region95: #{vision_encoder.11} parent=84 // pred_check_branch
          %701 = sbr.rel (%p699) target = $region97
        $region96: #{vision_encoder.11} parent=84 // pred_region
          %v702 = vld [vmem:[#allocation3] sm:$0xff]
          %v703 = vld [vmem:[#allocation3 + $0x8] sm:$0xff]
          %704 = vst.msk [vmem:[%s399] sm:$0xff] %vm523, %v702
          %705 = vst.msk [vmem:[%s399 + $0x8] sm:$0xff] %vm523, %v703
        $region97: #{vision_encoder.11} parent=84 // pred_fallthru
          _
        %s706 = sand.u32 %s208, 1
        %s707 = scalar_lea.sflag [#allocation6], %s706
        %s708 = sand.u32 %s208, 1
        %s709 = smul.addr %s708, 16
        %s710 = scalar_lea.vmem [#allocation5], %s709
        // Predicated region
        $region98: #{vision_encoder.11} parent=84 // pred_check
          %p711 = pneg %p218
        $region99: #{vision_encoder.11} parent=84 // pred_check_branch
          %713 = sbr.rel (%p711) target = $region101
        $region100: #{vision_encoder.11} parent=84 // pred_region
          %s715 = ssub.s32 256, 256
          %716 = vsyncadd %s707, %s715
          %s717 = smul.addr %s25, 2
          %s718 = smul.addr %s717, 128
          %s719 = scalar_lea.hbm %s7, %s718
          %s720 = sshll.u32 %s710, 4
          %s721 = int_to_ptr.vmem [resolvable:$true] %s720
          %726 = dma.vmem_to_hbm [thread:$0]  %s721, 256, %s719, %s707, 128, 128, 8
        $region101: #{vision_encoder.11} parent=84 // pred_fallthru
          _
      $region85: #{vision_encoder.11} parent=5 // pred_fallthru
        _
      %p727 = scmp.le.s32.totalorder 2, %s16
      // Predicated region
      $region102: #{vision_encoder.11} parent=5 // pred_check
        %p728 = pneg %p727
      $region103: #{vision_encoder.11} parent=5 // pred_check_branch
        %730 = sbr.rel (%p728) target = $region105
      $region104: #{vision_encoder.11} parent=5 // pred_region
        %s731 = ssub.s32 %s16, 2
        // Predicated region
        $region106: #{vision_encoder.11} parent=104 // pred_check
          %p732 = pneg %p224
        $region107: #{vision_encoder.11} parent=104 // pred_check_branch
          %734 = sbr.rel (%p732) target = $region109
        $region108: #{vision_encoder.11} parent=104 // pred_region
          %s735 = sand.u32 %s209, 1
          %s736 = scalar_lea.sflag [#allocation6], %s735
          %s737 = sand.u32 %s209, 1
          %s738 = smul.addr %s737, 16
          %s739 = scalar_lea.vmem [#allocation5], %s738
          %740 = dma.done %s736, 256
        $region109: #{vision_encoder.11} parent=104 // pred_fallthru
          _
      $region105: #{vision_encoder.11} parent=5 // pred_fallthru
        _
    $region6: #{vision_encoder.11} parent=1 // loop_footer
      %s20 = sadd.s32 1, %s16
    $region7: #{vision_encoder.11} parent=1 // loop_footer_branch
      %15 = sbr.rel target = $region3
    $region8: #{vision_encoder.11} parent=1 // loop_exit
      _
    %741 = vsyncpa [#allocation6], 1
    %s742 = scalar_lea.sflag [#allocation6], 1
    %743 = vsyncpa %s742, 1

// kernel: vision_encoder.7
$region0: #{vision_encoder.7}
  #allocation0 [shape = 'u32[]', space=smem, size = 0x4, offset = 0x4, fixed_abs, tag = 'smem constant byte address 0x4 - core index']
  #allocation1 [shape = 'u32[144,128]{1,0:T(1,128)}', space=vmem, size = 0x12000, scoped, tag = 'internal scratch']
  %s0 = inlined_call_operand.vmem [shape: bf16[2,16,64], index: 0, kind: input, shape index: {}]
  %s1 = inlined_call_operand.vmem [shape: f32[1,64], index: 1, kind: input, shape index: {}]
  %s2 = inlined_call_operand.vmem [shape: f32[1,64], index: 2, kind: input, shape index: {}]
  %s3 = inlined_call_operand.vmem [shape: bf16[64,64], index: 3, kind: input, shape index: {}]
  %s4 = inlined_call_operand.vmem [shape: bf16[64,64], index: 4, kind: input, shape index: {}]
  %s5 = inlined_call_operand.vmem [shape: bf16[64,64], index: 5, kind: input, shape index: {}]
  %s6 = inlined_call_operand.vmem [shape: f32[1,64], index: 6, kind: input, shape index: {}]
  %s7 = inlined_call_operand.vmem [shape: f32[1,64], index: 7, kind: input, shape index: {}]
  %s8 = inlined_call_operand.vmem [shape: f32[1,64], index: 8, kind: input, shape index: {}]
  %s9 = inlined_call_operand.vmem [shape: bf16[64,64], index: 9, kind: input, shape index: {}]
  %s10 = inlined_call_operand.vmem [shape: f32[1,64], index: 10, kind: input, shape index: {}]
  %s11 = inlined_call_operand.vmem [shape: bf16[2,16,64], index: 11, kind: output, shape index: {}]
  %s12 = sld [smem:[#allocation0]]
  $region77: #{vision_encoder.7} parent=0
    _
  %s14 = ssub.s32 1, %s12
  %s15 = scalar_select 0, %s14, %s12
  loop: start=0, step=1, limit=4
  $region2: #{vision_encoder.7} parent=0 // loop_pre_header
    _
  $region3: #{vision_encoder.7} parent=0 // loop_header
    %s17 = sphi 0, %s21
    %p18 = scmp.ge.s32.totalorder %s17, 4
    %s27 = sphi 0, %s29
    %s30 = sphi 0, %s27
    %s31 = sphi 0, %s30
    %s47 = sphi 0, %s31
    %s51 = sphi 0, %s51
    %s53 = sphi 0, %s51
    %s54 = sphi 0, %s53
    %s68 = sphi 0, %s54
    %s72 = sphi 0, %s72
    %s74 = sphi 0, %s72
    %s75 = sphi 0, %s74
    %s89 = sphi 0, %s75
    %s93 = sphi 0, %s93
    %s95 = sphi 0, %s93
    %s96 = sphi 0, %s95
    %s110 = sphi 0, %s96
    %s114 = sphi 0, %s114
    %s116 = sphi 0, %s114
    %s117 = sphi 0, %s116
    %s131 = sphi 0, %s117
    %s135 = sphi 0, %s135
    %s137 = sphi 0, %s135
    %s138 = sphi 0, %s137
    %s152 = sphi 0, %s138
    %s156 = sphi 0, %s156
    %s158 = sphi 0, %s156
    %s159 = sphi 0, %s158
    %s173 = sphi 0, %s159
    %s177 = sphi 0, %s177
    %s179 = sphi 0, %s177
    %s180 = sphi 0, %s179
    %s194 = sphi 0, %s180
    %s198 = sphi 0, %s198
    %s200 = sphi 0, %s198
    %s201 = sphi 0, %s200
    %s215 = sphi 0, %s201
    %s219 = sphi 0, %s219
    %s221 = sphi 0, %s219
    %s222 = sphi 0, %s221
    %s236 = sphi 0, %s222
    %s240 = sphi 0, %s240
    %s242 = sphi 0, %s240
    %s243 = sphi 0, %s242
    %s257 = sphi 0, %s243
    %s263 = sphi 0, %s265
    %s266 = sphi 0, %s263
    %s267 = sphi 0, %s266
    %s283 = sphi 0, %s267
  $region4: #{vision_encoder.7} parent=0 // loop_header_branch
    %20 = sbr.rel (%p18) target = $region8
  $region5: #{vision_encoder.7} parent=0 // loop_body
    %s22 = ssub.s32 %s17, 1
    %s23 = ssub.s32 %s17, 2
    %s24 = sadd.s32 %s17, 1
    %s25 = ssub.s32 %s17, %s24
    %p26 = scmp.eq.s32.totalorder %s25, 0
    %s28 = sadd.s32 %s27, 1
    %s29 = scalar_select %p26, %s27, %s28
    %p32 = pneg %p26
    %p33 = scmp.eq.s32.totalorder %s17, 1
    %p34 = por %p32, %p33
    %p35 = scmp.ne.s32.totalorder %s27, %s30
    %p36 = scmp.eq.s32.totalorder %s17, 0
    %p37 = por %p35, %p36
    %p38 = scmp.ne.s32.totalorder %s27, %s30
    %p39 = scmp.eq.s32.totalorder %s22, 1
    %p40 = por %p38, %p39
    %p41 = scmp.ne.s32.totalorder %s30, %s31
    %p42 = scmp.eq.s32.totalorder %s22, 0
    %p43 = por %p41, %p42
    %p44 = scmp.ne.s32.totalorder %s30, %s31
    %p45 = scmp.eq.s32.totalorder %s23, 1
    %p46 = por %p44, %p45
    %p48 = scmp.ne.s32.totalorder %s31, %s47
    %p49 = scmp.eq.s32.totalorder %s23, 0
    %p50 = por %p48, %p49
    %s52 = sadd.s32 %s51, 1
    %p55 = scmp.eq.s32.totalorder %s17, 1
    %p56 = scmp.ne.s32.totalorder %s51, %s53
    %p57 = scmp.eq.s32.totalorder %s17, 0
    %p58 = por %p56, %p57
    %p59 = scmp.ne.s32.totalorder %s51, %s53
    %p60 = scmp.eq.s32.totalorder %s22, 1
    %p61 = por %p59, %p60
    %p62 = scmp.ne.s32.totalorder %s53, %s54
    %p63 = scmp.eq.s32.totalorder %s22, 0
    %p64 = por %p62, %p63
    %p65 = scmp.ne.s32.totalorder %s53, %s54
    %p66 = scmp.eq.s32.totalorder %s23, 1
    %p67 = por %p65, %p66
    %p69 = scmp.ne.s32.totalorder %s54, %s68
    %p70 = scmp.eq.s32.totalorder %s23, 0
    %p71 = por %p69, %p70
    %s73 = sadd.s32 %s72, 1
    %p76 = scmp.eq.s32.totalorder %s17, 1
    %p77 = scmp.ne.s32.totalorder %s72, %s74
    %p78 = scmp.eq.s32.totalorder %s17, 0
    %p79 = por %p77, %p78
    %p80 = scmp.ne.s32.totalorder %s72, %s74
    %p81 = scmp.eq.s32.totalorder %s22, 1
    %p82 = por %p80, %p81
    %p83 = scmp.ne.s32.totalorder %s74, %s75
    %p84 = scmp.eq.s32.totalorder %s22, 0
    %p85 = por %p83, %p84
    %p86 = scmp.ne.s32.totalorder %s74, %s75
    %p87 = scmp.eq.s32.totalorder %s23, 1
    %p88 = por %p86, %p87
    %p90 = scmp.ne.s32.totalorder %s75, %s89
    %p91 = scmp.eq.s32.totalorder %s23, 0
    %p92 = por %p90, %p91
    %s94 = sadd.s32 %s93, 1
    %p97 = scmp.eq.s32.totalorder %s17, 1
    %p98 = scmp.ne.s32.totalorder %s93, %s95
    %p99 = scmp.eq.s32.totalorder %s17, 0
    %p100 = por %p98, %p99
    %p101 = scmp.ne.s32.totalorder %s93, %s95
    %p102 = scmp.eq.s32.totalorder %s22, 1
    %p103 = por %p101, %p102
    %p104 = scmp.ne.s32.totalorder %s95, %s96
    %p105 = scmp.eq.s32.totalorder %s22, 0
    %p106 = por %p104, %p105
    %p107 = scmp.ne.s32.totalorder %s95, %s96
    %p108 = scmp.eq.s32.totalorder %s23, 1
    %p109 = por %p107, %p108
    %p111 = scmp.ne.s32.totalorder %s96, %s110
    %p112 = scmp.eq.s32.totalorder %s23, 0
    %p113 = por %p111, %p112
    %s115 = sadd.s32 %s114, 1
    %p118 = scmp.eq.s32.totalorder %s17, 1
    %p119 = scmp.ne.s32.totalorder %s114, %s116
    %p120 = scmp.eq.s32.totalorder %s17, 0
    %p121 = por %p119, %p120
    %p122 = scmp.ne.s32.totalorder %s114, %s116
    %p123 = scmp.eq.s32.totalorder %s22, 1
    %p124 = por %p122, %p123
    %p125 = scmp.ne.s32.totalorder %s116, %s117
    %p126 = scmp.eq.s32.totalorder %s22, 0
    %p127 = por %p125, %p126
    %p128 = scmp.ne.s32.totalorder %s116, %s117
    %p129 = scmp.eq.s32.totalorder %s23, 1
    %p130 = por %p128, %p129
    %p132 = scmp.ne.s32.totalorder %s117, %s131
    %p133 = scmp.eq.s32.totalorder %s23, 0
    %p134 = por %p132, %p133
    %s136 = sadd.s32 %s135, 1
    %p139 = scmp.eq.s32.totalorder %s17, 1
    %p140 = scmp.ne.s32.totalorder %s135, %s137
    %p141 = scmp.eq.s32.totalorder %s17, 0
    %p142 = por %p140, %p141
    %p143 = scmp.ne.s32.totalorder %s135, %s137
    %p144 = scmp.eq.s32.totalorder %s22, 1
    %p145 = por %p143, %p144
    %p146 = scmp.ne.s32.totalorder %s137, %s138
    %p147 = scmp.eq.s32.totalorder %s22, 0
    %p148 = por %p146, %p147
    %p149 = scmp.ne.s32.totalorder %s137, %s138
    %p150 = scmp.eq.s32.totalorder %s23, 1
    %p151 = por %p149, %p150
    %p153 = scmp.ne.s32.totalorder %s138, %s152
    %p154 = scmp.eq.s32.totalorder %s23, 0
    %p155 = por %p153, %p154
    %s157 = sadd.s32 %s156, 1
    %p160 = scmp.eq.s32.totalorder %s17, 1
    %p161 = scmp.ne.s32.totalorder %s156, %s158
    %p162 = scmp.eq.s32.totalorder %s17, 0
    %p163 = por %p161, %p162
    %p164 = scmp.ne.s32.totalorder %s156, %s158
    %p165 = scmp.eq.s32.totalorder %s22, 1
    %p166 = por %p164, %p165
    %p167 = scmp.ne.s32.totalorder %s158, %s159
    %p168 = scmp.eq.s32.totalorder %s22, 0
    %p169 = por %p167, %p168
    %p170 = scmp.ne.s32.totalorder %s158, %s159
    %p171 = scmp.eq.s32.totalorder %s23, 1
    %p172 = por %p170, %p171
    %p174 = scmp.ne.s32.totalorder %s159, %s173
    %p175 = scmp.eq.s32.totalorder %s23, 0
    %p176 = por %p174, %p175
    %s178 = sadd.s32 %s177, 1
    %p181 = scmp.eq.s32.totalorder %s17, 1
    %p182 = scmp.ne.s32.totalorder %s177, %s179
    %p183 = scmp.eq.s32.totalorder %s17, 0
    %p184 = por %p182, %p183
    %p185 = scmp.ne.s32.totalorder %s177, %s179
    %p186 = scmp.eq.s32.totalorder %s22, 1
    %p187 = por %p185, %p186
    %p188 = scmp.ne.s32.totalorder %s179, %s180
    %p189 = scmp.eq.s32.totalorder %s22, 0
    %p190 = por %p188, %p189
    %p191 = scmp.ne.s32.totalorder %s179, %s180
    %p192 = scmp.eq.s32.totalorder %s23, 1
    %p193 = por %p191, %p192
    %p195 = scmp.ne.s32.totalorder %s180, %s194
    %p196 = scmp.eq.s32.totalorder %s23, 0
    %p197 = por %p195, %p196
    %s199 = sadd.s32 %s198, 1
    %p202 = scmp.eq.s32.totalorder %s17, 1
    %p203 = scmp.ne.s32.totalorder %s198, %s200
    %p204 = scmp.eq.s32.totalorder %s17, 0
    %p205 = por %p203, %p204
    %p206 = scmp.ne.s32.totalorder %s198, %s200
    %p207 = scmp.eq.s32.totalorder %s22, 1
    %p208 = por %p206, %p207
    %p209 = scmp.ne.s32.totalorder %s200, %s201
    %p210 = scmp.eq.s32.totalorder %s22, 0
    %p211 = por %p209, %p210
    %p212 = scmp.ne.s32.totalorder %s200, %s201
    %p213 = scmp.eq.s32.totalorder %s23, 1
    %p214 = por %p212, %p213
    %p216 = scmp.ne.s32.totalorder %s201, %s215
    %p217 = scmp.eq.s32.totalorder %s23, 0
    %p218 = por %p216, %p217
    %s220 = sadd.s32 %s219, 1
    %p223 = scmp.eq.s32.totalorder %s17, 1
    %p224 = scmp.ne.s32.totalorder %s219, %s221
    %p225 = scmp.eq.s32.totalorder %s17, 0
    %p226 = por %p224, %p225
    %p227 = scmp.ne.s32.totalorder %s219, %s221
    %p228 = scmp.eq.s32.totalorder %s22, 1
    %p229 = por %p227, %p228
    %p230 = scmp.ne.s32.totalorder %s221, %s222
    %p231 = scmp.eq.s32.totalorder %s22, 0
    %p232 = por %p230, %p231
    %p233 = scmp.ne.s32.totalorder %s221, %s222
    %p234 = scmp.eq.s32.totalorder %s23, 1
    %p235 = por %p233, %p234
    %p237 = scmp.ne.s32.totalorder %s222, %s236
    %p238 = scmp.eq.s32.totalorder %s23, 0
    %p239 = por %p237, %p238
    %s241 = sadd.s32 %s240, 1
    %p244 = scmp.eq.s32.totalorder %s17, 1
    %p245 = scmp.ne.s32.totalorder %s240, %s242
    %p246 = scmp.eq.s32.totalorder %s17, 0
    %p247 = por %p245, %p246
    %p248 = scmp.ne.s32.totalorder %s240, %s242
    %p249 = scmp.eq.s32.totalorder %s22, 1
    %p250 = por %p248, %p249
    %p251 = scmp.ne.s32.totalorder %s242, %s243
    %p252 = scmp.eq.s32.totalorder %s22, 0
    %p253 = por %p251, %p252
    %p254 = scmp.ne.s32.totalorder %s242, %s243
    %p255 = scmp.eq.s32.totalorder %s23, 1
    %p256 = por %p254, %p255
    %p258 = scmp.ne.s32.totalorder %s243, %s257
    %p259 = scmp.eq.s32.totalorder %s23, 0
    %p260 = por %p258, %p259
    %s261 = ssub.s32 %s17, %s24
    %p262 = scmp.eq.s32.totalorder %s261, 0
    %s264 = sadd.s32 %s263, 1
    %s265 = scalar_select %p262, %s263, %s264
    %p268 = pneg %p262
    %p269 = scmp.eq.s32.totalorder %s17, 1
    %p270 = por %p268, %p269
    %p271 = scmp.ne.s32.totalorder %s263, %s266
    %p272 = scmp.eq.s32.totalorder %s17, 0
    %p273 = por %p271, %p272
    %p274 = scmp.ne.s32.totalorder %s263, %s266
    %p275 = scmp.eq.s32.totalorder %s22, 1
    %p276 = por %p274, %p275
    %p277 = scmp.ne.s32.totalorder %s266, %s267
    %p278 = scmp.eq.s32.totalorder %s22, 0
    %p279 = por %p277, %p278
    %p280 = scmp.ne.s32.totalorder %s266, %s267
    %p281 = scmp.eq.s32.totalorder %s23, 1
    %p282 = por %p280, %p281
    %p284 = scmp.ne.s32.totalorder %s267, %s283
    %p285 = scmp.eq.s32.totalorder %s23, 0
    %p286 = por %p284, %p285
    %p287 = scmp.le.s32.totalorder 1, %s17
    %p288 = scmp.lt.s32.totalorder %s17, 3
    %p289 = pnand %p287, %p288
    %p290 = pneg %p289
    // Predicated region
    $region9: #{vision_encoder.7} parent=5 // pred_check
      _
    $region10: #{vision_encoder.7} parent=5 // pred_check_branch
      %292 = sbr.rel (%p289) target = $region12
    $region11: #{vision_encoder.7} parent=5 // pred_region
      %s293 = ssub.s32 %s17, 1
      // Predicated region
      $region13: #{vision_encoder.7} parent=11 // pred_check
        %p294 = pneg %p64
      $region14: #{vision_encoder.7} parent=11 // pred_check_branch
        %296 = sbr.rel (%p294) target = $region16
      $region15: #{vision_encoder.7} parent=11 // pred_region
        _
      $region16: #{vision_encoder.7} parent=11 // pred_fallthru
        _
      // Predicated region
      $region17: #{vision_encoder.7} parent=11 // pred_check
        %p297 = pneg %p85
      $region18: #{vision_encoder.7} parent=11 // pred_check_branch
        %299 = sbr.rel (%p297) target = $region20
      $region19: #{vision_encoder.7} parent=11 // pred_region
        _
      $region20: #{vision_encoder.7} parent=11 // pred_fallthru
        _
      // Predicated region
      $region21: #{vision_encoder.7} parent=11 // pred_check
        %p300 = pneg %p106
      $region22: #{vision_encoder.7} parent=11 // pred_check_branch
        %302 = sbr.rel (%p300) target = $region24
      $region23: #{vision_encoder.7} parent=11 // pred_region
        _
      $region24: #{vision_encoder.7} parent=11 // pred_fallthru
        _
      // Predicated region
      $region25: #{vision_encoder.7} parent=11 // pred_check
        %p303 = pneg %p127
      $region26: #{vision_encoder.7} parent=11 // pred_check_branch
        %305 = sbr.rel (%p303) target = $region28
      $region27: #{vision_encoder.7} parent=11 // pred_region
        _
      $region28: #{vision_encoder.7} parent=11 // pred_fallthru
        _
      // Predicated region
      $region29: #{vision_encoder.7} parent=11 // pred_check
        %p306 = pneg %p148
      $region30: #{vision_encoder.7} parent=11 // pred_check_branch
        %308 = sbr.rel (%p306) target = $region32
      $region31: #{vision_encoder.7} parent=11 // pred_region
        _
      $region32: #{vision_encoder.7} parent=11 // pred_fallthru
        _
      // Predicated region
      $region33: #{vision_encoder.7} parent=11 // pred_check
        %p309 = pneg %p169
      $region34: #{vision_encoder.7} parent=11 // pred_check_branch
        %311 = sbr.rel (%p309) target = $region36
      $region35: #{vision_encoder.7} parent=11 // pred_region
        _
      $region36: #{vision_encoder.7} parent=11 // pred_fallthru
        _
      // Predicated region
      $region37: #{vision_encoder.7} parent=11 // pred_check
        %p312 = pneg %p190
      $region38: #{vision_encoder.7} parent=11 // pred_check_branch
        %314 = sbr.rel (%p312) target = $region40
      $region39: #{vision_encoder.7} parent=11 // pred_region
        _
      $region40: #{vision_encoder.7} parent=11 // pred_fallthru
        _
      // Predicated region
      $region41: #{vision_encoder.7} parent=11 // pred_check
        %p315 = pneg %p211
      $region42: #{vision_encoder.7} parent=11 // pred_check_branch
        %317 = sbr.rel (%p315) target = $region44
      $region43: #{vision_encoder.7} parent=11 // pred_region
        _
      $region44: #{vision_encoder.7} parent=11 // pred_fallthru
        _
      // Predicated region
      $region45: #{vision_encoder.7} parent=11 // pred_check
        %p318 = pneg %p232
      $region46: #{vision_encoder.7} parent=11 // pred_check_branch
        %320 = sbr.rel (%p318) target = $region48
      $region47: #{vision_encoder.7} parent=11 // pred_region
        _
      $region48: #{vision_encoder.7} parent=11 // pred_fallthru
        _
      // Predicated region
      $region49: #{vision_encoder.7} parent=11 // pred_check
        %p321 = pneg %p253
      $region50: #{vision_encoder.7} parent=11 // pred_check_branch
        %323 = sbr.rel (%p321) target = $region52
      $region51: #{vision_encoder.7} parent=11 // pred_region
        _
      $region52: #{vision_encoder.7} parent=11 // pred_fallthru
        _
    $region12: #{vision_encoder.7} parent=5 // pred_fallthru
      _
    %p324 = scmp.lt.s32.totalorder %s17, 2
    // Predicated region
    $region53: #{vision_encoder.7} parent=5 // pred_check
      %p325 = pneg %p324
    $region54: #{vision_encoder.7} parent=5 // pred_check_branch
      %327 = sbr.rel (%p325) target = $region56
    $region55: #{vision_encoder.7} parent=5 // pred_region
      // Predicated region
      $region57: #{vision_encoder.7} parent=55 // pred_check
        %p328 = pneg %p37
      $region58: #{vision_encoder.7} parent=55 // pred_check_branch
        %330 = sbr.rel (%p328) target = $region60
      $region59: #{vision_encoder.7} parent=55 // pred_region
        %p331 = scmp.lt.s32.totalorder %s17, 1
        %s332 = scalar_select %p331, %s17, 1
        %s333 = smul.addr %s332, 2
        %s334 = smul.addr %s333, 4
        %s335 = scalar_lea.vmem %s0, %s334
      $region60: #{vision_encoder.7} parent=55 // pred_fallthru
        _
    $region56: #{vision_encoder.7} parent=5 // pred_fallthru
      _
    %p336 = scmp.le.s32.totalorder 1, %s17
    %p337 = scmp.lt.s32.totalorder %s17, 3
    %p338 = pnand %p336, %p337
    %p339 = pneg %p338
    // Predicated region
    $region61: #{vision_encoder.7} parent=5 // pred_check
      _
    $region62: #{vision_encoder.7} parent=5 // pred_check_branch
      %341 = sbr.rel (%p338) target = $region64
    $region63: #{vision_encoder.7} parent=5 // pred_region
      %s342 = ssub.s32 %s17, 1
      %p343 = scmp.lt.s32.totalorder %s22, 1
      %s344 = scalar_select %p343, %s22, 1
      %s345 = smul.addr %s344, 2
      %s346 = smul.addr %s345, 4
      %s347 = scalar_lea.vmem %s0, %s346
      %p348 = pneg %p43
      %p349 = pneg %p40
      %p350 = pneg %p64
      %p351 = pneg %p61
      %p352 = pneg %p85
      %p353 = pneg %p82
      %p354 = pneg %p106
      %p355 = pneg %p103
      %p356 = pneg %p127
      %p357 = pneg %p124
      %p358 = pneg %p148
      %p359 = pneg %p145
      %p360 = pneg %p169
      %p361 = pneg %p166
      %p362 = pneg %p190
      %p363 = pneg %p187
      %p364 = pneg %p211
      %p365 = pneg %p208
      %p366 = pneg %p232
      %p367 = pneg %p229
      %p368 = pneg %p253
      %p369 = pneg %p250
      %p370 = pneg %p279
      %p371 = pneg %p276
      %p372 = scmp.lt.s32.totalorder %s22, 1
      %s373 = scalar_select %p372, %s22, 1
      %s374 = smul.addr %s373, 2
      %s375 = smul.addr %s374, 4
      %s376 = scalar_lea.vmem %s11, %s375
      %p377 = scmp.lt.s32.totalorder %s22, 1
      %s378 = scalar_select %p377, %s22, 1
      %s379 = smul.addr %s378, 2
      %s380 = smul.addr %s379, 4
      %s381 = scalar_lea.vmem %s0, %s380
      %p382 = scmp.lt.s32.totalorder %s22, 1
      %s383 = scalar_select %p382, %s22, 1
      %s384 = smul.addr %s383, 2
      %s385 = smul.addr %s384, 4
      %s386 = scalar_lea.vmem %s11, %s385
      %v388 = vld [vmem:[%s381] sm:$0xf]
      %v389 = vld [vmem:[%s381 + $0x4] sm:$0xf]
      %v390 = vunpack.c.l.bf16 %v388
      %v391 = vunpack.c.l.bf16 %v389
      %v392 = vld [vmem:[%s1] sm:$0x1]
      %v393 = vld [vmem:[%s2] sm:$0x1]
      %vm394 = vcmask 523264
      %v395 = vsel %vm394, %v390, 0.0
      %396 = vadd.xlane.f32.xlu0 %v395
      %v397 = vpop.xlane.xlu0 %396
      %v398 = vsel %vm394, %v391, 0.0
      %399 = vadd.xlane.f32.xlu0 %v398
      %v400 = vpop.xlane.xlu0 %399
      %v401 = vrcp.pop 64.0
      %v402 = vmul.f32 %v397, %v401
      %v403 = vmul.f32 %v400, %v401
      %v404 = vsub.f32 %v390, %v402
      %v405 = vsub.f32 %v391, %v403
      %v406 = vmul.f32 %v404, %v404
      %v407 = vmul.f32 %v405, %v405
      %v408 = vsel %vm394, %v406, 0.0
      %409 = vadd.xlane.f32.xlu0 %v408
      %v410 = vpop.xlane.xlu0 %409
      %v411 = vsel %vm394, %v407, 0.0
      %412 = vadd.xlane.f32.xlu0 %v411
      %v413 = vpop.xlane.xlu0 %412
      %v414 = vmul.f32 %v410, %v401
      %v415 = vmul.f32 %v413, %v401
      %v416 = vadd.f32 %v414, 1e-05
      %v417 = vadd.f32 %v415, 1e-05
      %v418 = vrsqrt.pop %v416
      %v419 = vrsqrt.pop %v417
      %v420 = vmul.f32 %v404, %v418
      %v421 = vmul.f32 %v405, %v419
      %v423 = vlaneseq
      %v424 = vshrl.u32 %v423, 7
      %v425 = vsub.s32 0, %v424
      %v426 = vrot.slane %v392, %v425
      %v428 = vmul.f32 %v420, %v426
      %v429 = vmul.f32 %v421, %v426
      %v431 = vlaneseq
      %v432 = vshrl.u32 %v431, 7
      %v433 = vsub.s32 0, %v432
      %v434 = vrot.slane %v393, %v433
      %v436 = vadd.f32 %v428, %v434
      %v437 = vadd.f32 %v429, %v434
      %v438 = vpack.c.bf16 %v437, %v436
      %v439 = vld [vmem:[%s3] sm:$0xf]
      %v440 = vld [vmem:[%s3 + $0x4] sm:$0xf]
      %v441 = vld [vmem:[%s3 + $0x8] sm:$0xf]
      %v442 = vld [vmem:[%s3 + $0xc] sm:$0xf]
      %v443 = vld [vmem:[%s3 + $0x10] sm:$0xf]
      %v444 = vld [vmem:[%s3 + $0x14] sm:$0xf]
      %v445 = vld [vmem:[%s3 + $0x18] sm:$0xf]
      %v446 = vld [vmem:[%s3 + $0x1c] sm:$0xf]
      %v447 = vld [vmem:[%s6] sm:$0x1]
      %v449 = vlaneseq
      %v450 = vshrl.u32 %v449, 7
      %v451 = vsub.s32 0, %v450
      %v452 = vrot.slane %v447, %v451
      %v462 = vunpack.c.l.b16 %v439
      %v463 = vunpack.c.l.b16 %v440
      %v464 = vunpack.c.l.b16 %v441
      %v465 = vunpack.c.l.b16 %v442
      %v466 = vunpack.c.l.b16 %v443
      %v467 = vunpack.c.l.b16 %v444
      %v468 = vunpack.c.l.b16 %v445
      %v469 = vunpack.c.l.b16 %v446
      %v470 = vpack.c.b16 %v463, %v462
      %v471 = vpack.c.b16 %v465, %v464
      %v472 = vpack.c.b16 %v467, %v466
      %v473 = vpack.c.b16 %v469, %v468
      %v479 = vsel %vm394, %v438, 0
      %481 = vmatprep.subr.bf16.mxu0 0
      %482 = vmatpush1.bf16.msra.mxu0 %v470
      %483 = vmatprep.subr.bf16.mxu0 0
      %484 = vmatpush1.bf16.msra.mxu0 %v471
      %485 = vmatprep.subr.bf16.mxu0 0
      %486 = vmatpush1.bf16.msra.mxu0 %v472
      %487 = vmatprep.subr.bf16.mxu0 0
      %488 = vmatpush1.bf16.msra.mxu0 %v473
      %489 = vmatprep.subr.bf16.mxu0 0
      %490 = vmatpush1.bf16.msra.mxu0 0
      %491 = vmatprep.subr.bf16.mxu0 0
      %492 = vmatpush1.bf16.msra.mxu0 0
      %493 = vmatprep.subr.bf16.mxu0 0
      %494 = vmatpush1.bf16.msra.mxu0 0
      %495 = vmatprep.subr.bf16.mxu0 0
      %496 = vmatpush1.bf16.msra.mxu0 0
      %497 = vmatprep.subr.bf16.mxu0 0
      %498 = vmatpush1.bf16.msra.mxu0 0
      %499 = vmatprep.subr.bf16.mxu0 0
      %500 = vmatpush1.bf16.msra.mxu0 0
      %501 = vmatprep.subr.bf16.mxu0 0
      %502 = vmatpush1.bf16.msra.mxu0 0
      %503 = vmatprep.subr.bf16.mxu0 0
      %504 = vmatpush1.bf16.msra.mxu0 0
      %505 = vmatprep.subr.bf16.mxu0 0
      %506 = vmatpush1.bf16.msra.mxu0 0
      %507 = vmatprep.subr.bf16.mxu0 0
      %508 = vmatpush1.bf16.msra.mxu0 0
      %509 = vmatprep.subr.bf16.mxu0 0
      %510 = vmatpush1.bf16.msra.mxu0 0
      %511 = vmatprep.subr.bf16.mxu0 0
      %512 = vmatpush1.bf16.msra.mxu0 0
      %513 = vmatprep.mubr.bf16.mxu0 0
      %514 = vmatmul.mubr.bf16.gmra.mrb[0].mxu0 %v479
      %v515 = vpop.f32.mrb[0].mxu0
      %v516 = vadd.f32 %v452, %v515
      %v517 = vpop.f32.mrb[0].mxu0
      %v518 = vpop.f32.mrb[0].mxu0
      %v519 = vadd.f32 %v452, %v518
      %v520 = vpop.f32.mrb[0].mxu0
      %521 = vdwg.mxu0
      %v522 = vpack.c.bf16 %v519, %v516
      %524 = vrot.lane.b32.xlu0 %v522, 112
      %v525 = vpop.permute.xlu0 %524
      %526 = vrot.lane.b32.xlu0 %v522, 96
      %v527 = vpop.permute.xlu0 %526
      %528 = vrot.lane.b32.xlu0 %v522, 80
      %v529 = vpop.permute.xlu0 %528
      %v532 = vpack.i.b16 %v525, %v522
      %v534 = vshrl.u32 %v522, 16
      %v535 = vshrl.u32 %v525, 16
      %v536 = vpack.i.b16 %v535, %v534
      %v540 = vpack.i.b16 %v529, %v527
      %v542 = vshrl.u32 %v527, 16
      %v543 = vshrl.u32 %v529, 16
      %v544 = vpack.i.b16 %v543, %v542
      %v547 = vpack.i.b16 0, 0
      %v549 = vshrl.u32 0, 16
      %v550 = vpack.i.b16 %v549, %v549
      %v552 = vcombine.high %v532, %v547
      %v554 = vunpack.c.l.s4 1983009808
      %v555 = vunpack.c.0.s8 %v554
      %v556 = vlaneseq
      %v557 = vshrl.u32 %v556, 7
      %v558 = vsub.s32 %v555, %v557
      %v559 = vrot.slane %v532, %v558
      %v561 = vunpack.c.l.s4 1983009808
      %v562 = vunpack.c.0.s8 %v561
      %v563 = vlaneseq
      %v564 = vshrl.u32 %v563, 7
      %v565 = vsub.s32 %v562, %v564
      %v566 = vrot.slane %v552, %v565
      %v567 = vcombine.high %v540, %v547
      %v569 = vunpack.c.l.s4 1983009808
      %v570 = vunpack.c.0.s8 %v569
      %v571 = vlaneseq
      %v572 = vshrl.u32 %v571, 7
      %v573 = vsub.s32 %v570, %v572
      %v574 = vrot.slane %v540, %v573
      %v576 = vunpack.c.l.s4 1983009808
      %v577 = vunpack.c.0.s8 %v576
      %v578 = vlaneseq
      %v579 = vshrl.u32 %v578, 7
      %v580 = vsub.s32 %v577, %v579
      %v581 = vrot.slane %v567, %v580
      %v582 = vcombine.low %v559, %v574
      %v583 = vcombine.high %v559, %v574
      %v585 = vunpack.c.l.s4 1934713408
      %v586 = vunpack.c.0.s8 %v585
      %v587 = vlaneseq
      %v588 = vshrl.u32 %v587, 7
      %v589 = vsub.s32 %v586, %v588
      %v590 = vrot.slane %v582, %v589
      %v592 = vunpack.c.l.s4 1934713408
      %v593 = vunpack.c.0.s8 %v592
      %v594 = vlaneseq
      %v595 = vshrl.u32 %v594, 7
      %v596 = vsub.s32 %v593, %v595
      %v597 = vrot.slane %v583, %v596
      %v598 = vcombine.low %v566, %v581
      %v599 = vcombine.high %v566, %v581
      %v601 = vunpack.c.l.s4 1934713408
      %v602 = vunpack.c.0.s8 %v601
      %v603 = vlaneseq
      %v604 = vshrl.u32 %v603, 7
      %v605 = vsub.s32 %v602, %v604
      %v606 = vrot.slane %v598, %v605
      %v608 = vunpack.c.l.s4 1934713408
      %v609 = vunpack.c.0.s8 %v608
      %v610 = vlaneseq
      %v611 = vshrl.u32 %v610, 7
      %v612 = vsub.s32 %v609, %v611
      %v613 = vrot.slane %v599, %v612
      %v614 = vcombine.high %v590, 0
      %v615 = vcombine.high %v597, 0
      %v616 = vcombine.high %v606, 0
      %v617 = vcombine.high %v613, 0
      %v618 = vcombine.high %v536, %v550
      %v620 = vunpack.c.l.s4 1983009808
      %v621 = vunpack.c.0.s8 %v620
      %v622 = vlaneseq
      %v623 = vshrl.u32 %v622, 7
      %v624 = vsub.s32 %v621, %v623
      %v625 = vrot.slane %v536, %v624
      %v627 = vunpack.c.l.s4 1983009808
      %v628 = vunpack.c.0.s8 %v627
      %v629 = vlaneseq
      %v630 = vshrl.u32 %v629, 7
      %v631 = vsub.s32 %v628, %v630
      %v632 = vrot.slane %v618, %v631
      %v633 = vcombine.high %v544, %v550
      %v635 = vunpack.c.l.s4 1983009808
      %v636 = vunpack.c.0.s8 %v635
      %v637 = vlaneseq
      %v638 = vshrl.u32 %v637, 7
      %v639 = vsub.s32 %v636, %v638
      %v640 = vrot.slane %v544, %v639
      %v642 = vunpack.c.l.s4 1983009808
      %v643 = vunpack.c.0.s8 %v642
      %v644 = vlaneseq
      %v645 = vshrl.u32 %v644, 7
      %v646 = vsub.s32 %v643, %v645
      %v647 = vrot.slane %v633, %v646
      %v648 = vcombine.low %v625, %v640
      %v649 = vcombine.high %v625, %v640
      %v651 = vunpack.c.l.s4 1934713408
      %v652 = vunpack.c.0.s8 %v651
      %v653 = vlaneseq
      %v654 = vshrl.u32 %v653, 7
      %v655 = vsub.s32 %v652, %v654
      %v656 = vrot.slane %v648, %v655
      %v658 = vunpack.c.l.s4 1934713408
      %v659 = vunpack.c.0.s8 %v658
      %v660 = vlaneseq
      %v661 = vshrl.u32 %v660, 7
      %v662 = vsub.s32 %v659, %v661
      %v663 = vrot.slane %v649, %v662
      %v664 = vcombine.low %v632, %v647
      %v665 = vcombine.high %v632, %v647
      %v667 = vunpack.c.l.s4 1934713408
      %v668 = vunpack.c.0.s8 %v667
      %v669 = vlaneseq
      %v670 = vshrl.u32 %v669, 7
      %v671 = vsub.s32 %v668, %v670
      %v672 = vrot.slane %v664, %v671
      %v674 = vunpack.c.l.s4 1934713408
      %v675 = vunpack.c.0.s8 %v674
      %v676 = vlaneseq
      %v677 = vshrl.u32 %v676, 7
      %v678 = vsub.s32 %v675, %v677
      %v679 = vrot.slane %v665, %v678
      %v680 = vcombine.high %v656, 0
      %v681 = vcombine.high %v663, 0
      %v682 = vcombine.high %v672, 0
      %v683 = vcombine.high %v679, 0
      %v684 = vcombine.low %v590, %v597
      %v686 = vunpack.c.l.s4 1983009808
      %v687 = vunpack.c.0.s8 %v686
      %v688 = vlaneseq
      %v689 = vshrl.u32 %v688, 7
      %v690 = vsub.s32 %v687, %v689
      %v691 = vrot.slane %v684, %v690
      %v692 = vcombine.low %v614, %v615
      %v694 = vunpack.c.l.s4 1983009808
      %v695 = vunpack.c.0.s8 %v694
      %v696 = vlaneseq
      %v697 = vshrl.u32 %v696, 7
      %v698 = vsub.s32 %v695, %v697
      %v699 = vrot.slane %v692, %v698
      %v700 = vcombine.low %v606, %v613
      %v702 = vunpack.c.l.s4 1983009808
      %v703 = vunpack.c.0.s8 %v702
      %v704 = vlaneseq
      %v705 = vshrl.u32 %v704, 7
      %v706 = vsub.s32 %v703, %v705
      %v707 = vrot.slane %v700, %v706
      %v708 = vcombine.low %v616, %v617
      %v710 = vunpack.c.l.s4 1983009808
      %v711 = vunpack.c.0.s8 %v710
      %v712 = vlaneseq
      %v713 = vshrl.u32 %v712, 7
      %v714 = vsub.s32 %v711, %v713
      %v715 = vrot.slane %v708, %v714
      %v716 = vcombine.low %v691, %v699
      %v718 = vunpack.c.l.s4 1934713408
      %v719 = vunpack.c.0.s8 %v718
      %v720 = vlaneseq
      %v721 = vshrl.u32 %v720, 7
      %v722 = vsub.s32 %v719, %v721
      %v723 = vrot.slane %v716, %v722
      %v724 = vcombine.low %v707, %v715
      %v726 = vunpack.c.l.s4 1934713408
      %v727 = vunpack.c.0.s8 %v726
      %v728 = vlaneseq
      %v729 = vshrl.u32 %v728, 7
      %v730 = vsub.s32 %v727, %v729
      %v731 = vrot.slane %v724, %v730
      %v732 = vcombine.low %v723, %v731
      %v733 = vcombine.high %v723, %v731
      %v734 = vcombine.low %v656, %v663
      %v736 = vunpack.c.l.s4 1983009808
      %v737 = vunpack.c.0.s8 %v736
      %v738 = vlaneseq
      %v739 = vshrl.u32 %v738, 7
      %v740 = vsub.s32 %v737, %v739
      %v741 = vrot.slane %v734, %v740
      %v742 = vcombine.low %v680, %v681
      %v744 = vunpack.c.l.s4 1983009808
      %v745 = vunpack.c.0.s8 %v744
      %v746 = vlaneseq
      %v747 = vshrl.u32 %v746, 7
      %v748 = vsub.s32 %v745, %v747
      %v749 = vrot.slane %v742, %v748
      %v750 = vcombine.low %v672, %v679
      %v752 = vunpack.c.l.s4 1983009808
      %v753 = vunpack.c.0.s8 %v752
      %v754 = vlaneseq
      %v755 = vshrl.u32 %v754, 7
      %v756 = vsub.s32 %v753, %v755
      %v757 = vrot.slane %v750, %v756
      %v758 = vcombine.low %v682, %v683
      %v760 = vunpack.c.l.s4 1983009808
      %v761 = vunpack.c.0.s8 %v760
      %v762 = vlaneseq
      %v763 = vshrl.u32 %v762, 7
      %v764 = vsub.s32 %v761, %v763
      %v765 = vrot.slane %v758, %v764
      %v766 = vcombine.low %v741, %v749
      %v768 = vunpack.c.l.s4 1934713408
      %v769 = vunpack.c.0.s8 %v768
      %v770 = vlaneseq
      %v771 = vshrl.u32 %v770, 7
      %v772 = vsub.s32 %v769, %v771
      %v773 = vrot.slane %v766, %v772
      %v774 = vcombine.low %v757, %v765
      %v776 = vunpack.c.l.s4 1934713408
      %v777 = vunpack.c.0.s8 %v776
      %v778 = vlaneseq
      %v779 = vshrl.u32 %v778, 7
      %v780 = vsub.s32 %v777, %v779
      %v781 = vrot.slane %v774, %v780
      %v782 = vcombine.low %v773, %v781
      %v783 = vcombine.high %v773, %v781
      %v786 = vpack.i.b16 %v782, %v732
      %v787 = vshrl.u32 %v732, 16
      %v788 = vshrl.u32 %v782, 16
      %v789 = vpack.i.b16 %v788, %v787
      %v792 = vpack.i.b16 %v783, %v733
      %v793 = vshrl.u32 %v733, 16
      %v794 = vshrl.u32 %v783, 16
      %v795 = vpack.i.b16 %v794, %v793
      %v796 = vld [vmem:[%s4] sm:$0xf]
      %v797 = vld [vmem:[%s4 + $0x4] sm:$0xf]
      %v798 = vld [vmem:[%s4 + $0x8] sm:$0xf]
      %v799 = vld [vmem:[%s4 + $0xc] sm:$0xf]
      %v800 = vld [vmem:[%s4 + $0x10] sm:$0xf]
      %v801 = vld [vmem:[%s4 + $0x14] sm:$0xf]
      %v802 = vld [vmem:[%s4 + $0x18] sm:$0xf]
      %v803 = vld [vmem:[%s4 + $0x1c] sm:$0xf]
      %v804 = vld [vmem:[%s7] sm:$0x1]
      %v806 = vlaneseq
      %v807 = vshrl.u32 %v806, 7
      %v808 = vsub.s32 0, %v807
      %v809 = vrot.slane %v804, %v808
      %v819 = vunpack.c.l.b16 %v796
      %v820 = vunpack.c.l.b16 %v797
      %v821 = vunpack.c.l.b16 %v798
      %v822 = vunpack.c.l.b16 %v799
      %v823 = vunpack.c.l.b16 %v800
      %v824 = vunpack.c.l.b16 %v801
      %v825 = vunpack.c.l.b16 %v802
      %v826 = vunpack.c.l.b16 %v803
      %v827 = vpack.c.b16 %v820, %v819
      %v828 = vpack.c.b16 %v822, %v821
      %v829 = vpack.c.b16 %v824, %v823
      %v830 = vpack.c.b16 %v826, %v825
      %835 = vmatprep.subr.bf16.mxu0 0
      %836 = vmatpush1.bf16.msra.mxu0 %v827
      %837 = vmatprep.subr.bf16.mxu0 0
      %838 = vmatpush1.bf16.msra.mxu0 %v828
      %839 = vmatprep.subr.bf16.mxu0 0
      %840 = vmatpush1.bf16.msra.mxu0 %v829
      %841 = vmatprep.subr.bf16.mxu0 0
      %842 = vmatpush1.bf16.msra.mxu0 %v830
      %843 = vmatprep.subr.bf16.mxu0 0
      %844 = vmatpush1.bf16.msra.mxu0 0
      %845 = vmatprep.subr.bf16.mxu0 0
      %846 = vmatpush1.bf16.msra.mxu0 0
      %847 = vmatprep.subr.bf16.mxu0 0
      %848 = vmatpush1.bf16.msra.mxu0 0
      %849 = vmatprep.subr.bf16.mxu0 0
      %850 = vmatpush1.bf16.msra.mxu0 0
      %851 = vmatprep.subr.bf16.mxu0 0
      %852 = vmatpush1.bf16.msra.mxu0 0
      %853 = vmatprep.subr.bf16.mxu0 0
      %854 = vmatpush1.bf16.msra.mxu0 0
      %855 = vmatprep.subr.bf16.mxu0 0
      %856 = vmatpush1.bf16.msra.mxu0 0
      %857 = vmatprep.subr.bf16.mxu0 0
      %858 = vmatpush1.bf16.msra.mxu0 0
      %859 = vmatprep.subr.bf16.mxu0 0
      %860 = vmatpush1.bf16.msra.mxu0 0
      %861 = vmatprep.subr.bf16.mxu0 0
      %862 = vmatpush1.bf16.msra.mxu0 0
      %863 = vmatprep.subr.bf16.mxu0 0
      %864 = vmatpush1.bf16.msra.mxu0 0
      %865 = vmatprep.subr.bf16.mxu0 0
      %866 = vmatpush1.bf16.msra.mxu0 0
      %867 = vmatprep.mubr.bf16.mxu0 0
      %868 = vmatmul.mubr.bf16.gmra.mrb[0].mxu0 %v479
      %v869 = vpop.f32.mrb[0].mxu0
      %v870 = vadd.f32 %v809, %v869
      %v871 = vpop.f32.mrb[0].mxu0
      %v872 = vpop.f32.mrb[0].mxu0
      %v873 = vadd.f32 %v809, %v872
      %v874 = vpop.f32.mrb[0].mxu0
      %875 = vdwg.mxu0
      %v876 = vpack.c.bf16 %v873, %v870
      %878 = vrot.lane.b32.xlu0 %v876, 112
      %v879 = vpop.permute.xlu0 %878
      %880 = vrot.lane.b32.xlu0 %v876, 96
      %v881 = vpop.permute.xlu0 %880
      %882 = vrot.lane.b32.xlu0 %v876, 80
      %v883 = vpop.permute.xlu0 %882
      %v886 = vpack.i.b16 %v879, %v876
      %v888 = vshrl.u32 %v876, 16
      %v889 = vshrl.u32 %v879, 16
      %v890 = vpack.i.b16 %v889, %v888
      %v894 = vpack.i.b16 %v883, %v881
      %v896 = vshrl.u32 %v881, 16
      %v897 = vshrl.u32 %v883, 16
      %v898 = vpack.i.b16 %v897, %v896
      %v900 = vcombine.high %v886, %v547
      %v902 = vunpack.c.l.s4 1983009808
      %v903 = vunpack.c.0.s8 %v902
      %v904 = vlaneseq
      %v905 = vshrl.u32 %v904, 7
      %v906 = vsub.s32 %v903, %v905
      %v907 = vrot.slane %v886, %v906
      %v909 = vunpack.c.l.s4 1983009808
      %v910 = vunpack.c.0.s8 %v909
      %v911 = vlaneseq
      %v912 = vshrl.u32 %v911, 7
      %v913 = vsub.s32 %v910, %v912
      %v914 = vrot.slane %v900, %v913
      %v915 = vcombine.high %v894, %v547
      %v917 = vunpack.c.l.s4 1983009808
      %v918 = vunpack.c.0.s8 %v917
      %v919 = vlaneseq
      %v920 = vshrl.u32 %v919, 7
      %v921 = vsub.s32 %v918, %v920
      %v922 = vrot.slane %v894, %v921
      %v924 = vunpack.c.l.s4 1983009808
      %v925 = vunpack.c.0.s8 %v924
      %v926 = vlaneseq
      %v927 = vshrl.u32 %v926, 7
      %v928 = vsub.s32 %v925, %v927
      %v929 = vrot.slane %v915, %v928
      %v930 = vcombine.low %v907, %v922
      %v931 = vcombine.high %v907, %v922
      %v933 = vunpack.c.l.s4 1934713408
      %v934 = vunpack.c.0.s8 %v933
      %v935 = vlaneseq
      %v936 = vshrl.u32 %v935, 7
      %v937 = vsub.s32 %v934, %v936
      %v938 = vrot.slane %v930, %v937
      %v940 = vunpack.c.l.s4 1934713408
      %v941 = vunpack.c.0.s8 %v940
      %v942 = vlaneseq
      %v943 = vshrl.u32 %v942, 7
      %v944 = vsub.s32 %v941, %v943
      %v945 = vrot.slane %v931, %v944
      %v946 = vcombine.low %v914, %v929
      %v947 = vcombine.high %v914, %v929
      %v949 = vunpack.c.l.s4 1934713408
      %v950 = vunpack.c.0.s8 %v949
      %v951 = vlaneseq
      %v952 = vshrl.u32 %v951, 7
      %v953 = vsub.s32 %v950, %v952
      %v954 = vrot.slane %v946, %v953
      %v956 = vunpack.c.l.s4 1934713408
      %v957 = vunpack.c.0.s8 %v956
      %v958 = vlaneseq
      %v959 = vshrl.u32 %v958, 7
      %v960 = vsub.s32 %v957, %v959
      %v961 = vrot.slane %v947, %v960
      %v962 = vcombine.high %v938, 0
      %v963 = vcombine.high %v945, 0
      %v964 = vcombine.high %v954, 0
      %v965 = vcombine.high %v961, 0
      %v966 = vcombine.high %v890, %v550
      %v968 = vunpack.c.l.s4 1983009808
      %v969 = vunpack.c.0.s8 %v968
      %v970 = vlaneseq
      %v971 = vshrl.u32 %v970, 7
      %v972 = vsub.s32 %v969, %v971
      %v973 = vrot.slane %v890, %v972
      %v975 = vunpack.c.l.s4 1983009808
      %v976 = vunpack.c.0.s8 %v975
      %v977 = vlaneseq
      %v978 = vshrl.u32 %v977, 7
      %v979 = vsub.s32 %v976, %v978
      %v980 = vrot.slane %v966, %v979
      %v981 = vcombine.high %v898, %v550
      %v983 = vunpack.c.l.s4 1983009808
      %v984 = vunpack.c.0.s8 %v983
      %v985 = vlaneseq
      %v986 = vshrl.u32 %v985, 7
      %v987 = vsub.s32 %v984, %v986
      %v988 = vrot.slane %v898, %v987
      %v990 = vunpack.c.l.s4 1983009808
      %v991 = vunpack.c.0.s8 %v990
      %v992 = vlaneseq
      %v993 = vshrl.u32 %v992, 7
      %v994 = vsub.s32 %v991, %v993
      %v995 = vrot.slane %v981, %v994
      %v996 = vcombine.low %v973, %v988
      %v997 = vcombine.high %v973, %v988
      %v999 = vunpack.c.l.s4 1934713408
      %v1000 = vunpack.c.0.s8 %v999
      %v1001 = vlaneseq
      %v1002 = vshrl.u32 %v1001, 7
      %v1003 = vsub.s32 %v1000, %v1002
      %v1004 = vrot.slane %v996, %v1003
      %v1006 = vunpack.c.l.s4 1934713408
      %v1007 = vunpack.c.0.s8 %v1006
      %v1008 = vlaneseq
      %v1009 = vshrl.u32 %v1008, 7
      %v1010 = vsub.s32 %v1007, %v1009
      %v1011 = vrot.slane %v997, %v1010
      %v1012 = vcombine.low %v980, %v995
      %v1013 = vcombine.high %v980, %v995
      %v1015 = vunpack.c.l.s4 1934713408
      %v1016 = vunpack.c.0.s8 %v1015
      %v1017 = vlaneseq
      %v1018 = vshrl.u32 %v1017, 7
      %v1019 = vsub.s32 %v1016, %v1018
      %v1020 = vrot.slane %v1012, %v1019
      %v1022 = vunpack.c.l.s4 1934713408
      %v1023 = vunpack.c.0.s8 %v1022
      %v1024 = vlaneseq
      %v1025 = vshrl.u32 %v1024, 7
      %v1026 = vsub.s32 %v1023, %v1025
      %v1027 = vrot.slane %v1013, %v1026
      %v1028 = vcombine.high %v1004, 0
      %v1029 = vcombine.high %v1011, 0
      %v1030 = vcombine.high %v1020, 0
      %v1031 = vcombine.high %v1027, 0
      %v1032 = vcombine.low %v938, %v945
      %v1034 = vunpack.c.l.s4 1983009808
      %v1035 = vunpack.c.0.s8 %v1034
      %v1036 = vlaneseq
      %v1037 = vshrl.u32 %v1036, 7
      %v1038 = vsub.s32 %v1035, %v1037
      %v1039 = vrot.slane %v1032, %v1038
      %v1040 = vcombine.low %v962, %v963
      %v1042 = vunpack.c.l.s4 1983009808
      %v1043 = vunpack.c.0.s8 %v1042
      %v1044 = vlaneseq
      %v1045 = vshrl.u32 %v1044, 7
      %v1046 = vsub.s32 %v1043, %v1045
      %v1047 = vrot.slane %v1040, %v1046
      %v1048 = vcombine.low %v954, %v961
      %v1050 = vunpack.c.l.s4 1983009808
      %v1051 = vunpack.c.0.s8 %v1050
      %v1052 = vlaneseq
      %v1053 = vshrl.u32 %v1052, 7
      %v1054 = vsub.s32 %v1051, %v1053
      %v1055 = vrot.slane %v1048, %v1054
      %v1056 = vcombine.low %v964, %v965
      %v1058 = vunpack.c.l.s4 1983009808
      %v1059 = vunpack.c.0.s8 %v1058
      %v1060 = vlaneseq
      %v1061 = vshrl.u32 %v1060, 7
      %v1062 = vsub.s32 %v1059, %v1061
      %v1063 = vrot.slane %v1056, %v1062
      %v1064 = vcombine.low %v1039, %v1047
      %v1066 = vunpack.c.l.s4 1934713408
      %v1067 = vunpack.c.0.s8 %v1066
      %v1068 = vlaneseq
      %v1069 = vshrl.u32 %v1068, 7
      %v1070 = vsub.s32 %v1067, %v1069
      %v1071 = vrot.slane %v1064, %v1070
      %v1072 = vcombine.low %v1055, %v1063
      %v1074 = vunpack.c.l.s4 1934713408
      %v1075 = vunpack.c.0.s8 %v1074
      %v1076 = vlaneseq
      %v1077 = vshrl.u32 %v1076, 7
      %v1078 = vsub.s32 %v1075, %v1077
      %v1079 = vrot.slane %v1072, %v1078
      %v1080 = vcombine.low %v1071, %v1079
      %v1081 = vcombine.high %v1071, %v1079
      %v1082 = vcombine.low %v1004, %v1011
      %v1084 = vunpack.c.l.s4 1983009808
      %v1085 = vunpack.c.0.s8 %v1084
      %v1086 = vlaneseq
      %v1087 = vshrl.u32 %v1086, 7
      %v1088 = vsub.s32 %v1085, %v1087
      %v1089 = vrot.slane %v1082, %v1088
      %v1090 = vcombine.low %v1028, %v1029
      %v1092 = vunpack.c.l.s4 1983009808
      %v1093 = vunpack.c.0.s8 %v1092
      %v1094 = vlaneseq
      %v1095 = vshrl.u32 %v1094, 7
      %v1096 = vsub.s32 %v1093, %v1095
      %v1097 = vrot.slane %v1090, %v1096
      %v1098 = vcombine.low %v1020, %v1027
      %v1100 = vunpack.c.l.s4 1983009808
      %v1101 = vunpack.c.0.s8 %v1100
      %v1102 = vlaneseq
      %v1103 = vshrl.u32 %v1102, 7
      %v1104 = vsub.s32 %v1101, %v1103
      %v1105 = vrot.slane %v1098, %v1104
      %v1106 = vcombine.low %v1030, %v1031
      %v1108 = vunpack.c.l.s4 1983009808
      %v1109 = vunpack.c.0.s8 %v1108
      %v1110 = vlaneseq
      %v1111 = vshrl.u32 %v1110, 7
      %v1112 = vsub.s32 %v1109, %v1111
      %v1113 = vrot.slane %v1106, %v1112
      %v1114 = vcombine.low %v1089, %v1097
      %v1116 = vunpack.c.l.s4 1934713408
      %v1117 = vunpack.c.0.s8 %v1116
      %v1118 = vlaneseq
      %v1119 = vshrl.u32 %v1118, 7
      %v1120 = vsub.s32 %v1117, %v1119
      %v1121 = vrot.slane %v1114, %v1120
      %v1122 = vcombine.low %v1105, %v1113
      %v1124 = vunpack.c.l.s4 1934713408
      %v1125 = vunpack.c.0.s8 %v1124
      %v1126 = vlaneseq
      %v1127 = vshrl.u32 %v1126, 7
      %v1128 = vsub.s32 %v1125, %v1127
      %v1129 = vrot.slane %v1122, %v1128
      %v1130 = vcombine.low %v1121, %v1129
      %v1131 = vcombine.high %v1121, %v1129
      %v1134 = vpack.i.b16 %v1130, %v1080
      %v1135 = vshrl.u32 %v1080, 16
      %v1136 = vshrl.u32 %v1130, 16
      %v1137 = vpack.i.b16 %v1136, %v1135
      %v1140 = vpack.i.b16 %v1131, %v1081
      %v1141 = vshrl.u32 %v1081, 16
      %v1142 = vshrl.u32 %v1131, 16
      %v1143 = vpack.i.b16 %v1142, %v1141
      %v1144 = vld [vmem:[%s5] sm:$0xf]
      %v1145 = vld [vmem:[%s5 + $0x4] sm:$0xf]
      %v1146 = vld [vmem:[%s5 + $0x8] sm:$0xf]
      %v1147 = vld [vmem:[%s5 + $0xc] sm:$0xf]
      %v1148 = vld [vmem:[%s5 + $0x10] sm:$0xf]
      %v1149 = vld [vmem:[%s5 + $0x14] sm:$0xf]
      %v1150 = vld [vmem:[%s5 + $0x18] sm:$0xf]
      %v1151 = vld [vmem:[%s5 + $0x1c] sm:$0xf]
      %v1152 = vld [vmem:[%s8] sm:$0x1]
      %v1154 = vlaneseq
      %v1155 = vshrl.u32 %v1154, 7
      %v1156 = vsub.s32 0, %v1155
      %v1157 = vrot.slane %v1152, %v1156
      %v1167 = vunpack.c.l.b16 %v1144
      %v1168 = vunpack.c.l.b16 %v1145
      %v1169 = vunpack.c.l.b16 %v1146
      %v1170 = vunpack.c.l.b16 %v1147
      %v1171 = vunpack.c.l.b16 %v1148
      %v1172 = vunpack.c.l.b16 %v1149
      %v1173 = vunpack.c.l.b16 %v1150
      %v1174 = vunpack.c.l.b16 %v1151
      %v1175 = vpack.c.b16 %v1168, %v1167
      %v1176 = vpack.c.b16 %v1170, %v1169
      %v1177 = vpack.c.b16 %v1172, %v1171
      %v1178 = vpack.c.b16 %v1174, %v1173
      %1183 = vmatprep.subr.bf16.mxu0 0
      %1184 = vmatpush1.bf16.msra.mxu0 %v1175
      %1185 = vmatprep.subr.bf16.mxu0 0
      %1186 = vmatpush1.bf16.msra.mxu0 %v1176
      %1187 = vmatprep.subr.bf16.mxu0 0
      %1188 = vmatpush1.bf16.msra.mxu0 %v1177
      %1189 = vmatprep.subr.bf16.mxu0 0
      %1190 = vmatpush1.bf16.msra.mxu0 %v1178
      %1191 = vmatprep.subr.bf16.mxu0 0
      %1192 = vmatpush1.bf16.msra.mxu0 0
      %1193 = vmatprep.subr.bf16.mxu0 0
      %1194 = vmatpush1.bf16.msra.mxu0 0
      %1195 = vmatprep.subr.bf16.mxu0 0
      %1196 = vmatpush1.bf16.msra.mxu0 0
      %1197 = vmatprep.subr.bf16.mxu0 0
      %1198 = vmatpush1.bf16.msra.mxu0 0
      %1199 = vmatprep.subr.bf16.mxu0 0
      %1200 = vmatpush1.bf16.msra.mxu0 0
      %1201 = vmatprep.subr.bf16.mxu0 0
      %1202 = vmatpush1.bf16.msra.mxu0 0
      %1203 = vmatprep.subr.bf16.mxu0 0
      %1204 = vmatpush1.bf16.msra.mxu0 0
      %1205 = vmatprep.subr.bf16.mxu0 0
      %1206 = vmatpush1.bf16.msra.mxu0 0
      %1207 = vmatprep.subr.bf16.mxu0 0
      %1208 = vmatpush1.bf16.msra.mxu0 0
      %1209 = vmatprep.subr.bf16.mxu0 0
      %1210 = vmatpush1.bf16.msra.mxu0 0
      %1211 = vmatprep.subr.bf16.mxu0 0
      %1212 = vmatpush1.bf16.msra.mxu0 0
      %1213 = vmatprep.subr.bf16.mxu0 0
      %1214 = vmatpush1.bf16.msra.mxu0 0
      %1215 = vmatprep.mubr.bf16.mxu0 0
      %1216 = vmatmul.mubr.bf16.gmra.mrb[0].mxu0 %v479
      %v1217 = vpop.f32.mrb[0].mxu0
      %v1218 = vadd.f32 %v1157, %v1217
      %v1219 = vpop.f32.mrb[0].mxu0
      %v1220 = vpop.f32.mrb[0].mxu0
      %v1221 = vadd.f32 %v1157, %v1220
      %v1222 = vpop.f32.mrb[0].mxu0
      %1223 = vdwg.mxu0
      %v1224 = vpack.c.bf16 %v1221, %v1218
      %1226 = vrot.lane.b32.xlu0 %v1224, 112
      %v1227 = vpop.permute.xlu0 %1226
      %1228 = vrot.lane.b32.xlu0 %v1224, 96
      %v1229 = vpop.permute.xlu0 %1228
      %1230 = vrot.lane.b32.xlu0 %v1224, 80
      %v1231 = vpop.permute.xlu0 %1230
      %v1234 = vpack.i.b16 %v1227, %v1224
      %v1236 = vshrl.u32 %v1224, 16
      %v1237 = vshrl.u32 %v1227, 16
      %v1238 = vpack.i.b16 %v1237, %v1236
      %v1242 = vpack.i.b16 %v1231, %v1229
      %v1244 = vshrl.u32 %v1229, 16
      %v1245 = vshrl.u32 %v1231, 16
      %v1246 = vpack.i.b16 %v1245, %v1244
      %v1248 = vcombine.high %v1234, %v547
      %v1250 = vunpack.c.l.s4 1983009808
      %v1251 = vunpack.c.0.s8 %v1250
      %v1252 = vlaneseq
      %v1253 = vshrl.u32 %v1252, 7
      %v1254 = vsub.s32 %v1251, %v1253
      %v1255 = vrot.slane %v1234, %v1254
      %v1257 = vunpack.c.l.s4 1983009808
      %v1258 = vunpack.c.0.s8 %v1257
      %v1259 = vlaneseq
      %v1260 = vshrl.u32 %v1259, 7
      %v1261 = vsub.s32 %v1258, %v1260
      %v1262 = vrot.slane %v1248, %v1261
      %v1263 = vcombine.high %v1242, %v547
      %v1265 = vunpack.c.l.s4 1983009808
      %v1266 = vunpack.c.0.s8 %v1265
      %v1267 = vlaneseq
      %v1268 = vshrl.u32 %v1267, 7
      %v1269 = vsub.s32 %v1266, %v1268
      %v1270 = vrot.slane %v1242, %v1269
      %v1272 = vunpack.c.l.s4 1983009808
      %v1273 = vunpack.c.0.s8 %v1272
      %v1274 = vlaneseq
      %v1275 = vshrl.u32 %v1274, 7
      %v1276 = vsub.s32 %v1273, %v1275
      %v1277 = vrot.slane %v1263, %v1276
      %v1278 = vcombine.low %v1255, %v1270
      %v1279 = vcombine.high %v1255, %v1270
      %v1281 = vunpack.c.l.s4 1934713408
      %v1282 = vunpack.c.0.s8 %v1281
      %v1283 = vlaneseq
      %v1284 = vshrl.u32 %v1283, 7
      %v1285 = vsub.s32 %v1282, %v1284
      %v1286 = vrot.slane %v1278, %v1285
      %v1288 = vunpack.c.l.s4 1934713408
      %v1289 = vunpack.c.0.s8 %v1288
      %v1290 = vlaneseq
      %v1291 = vshrl.u32 %v1290, 7
      %v1292 = vsub.s32 %v1289, %v1291
      %v1293 = vrot.slane %v1279, %v1292
      %v1294 = vcombine.low %v1262, %v1277
      %v1295 = vcombine.high %v1262, %v1277
      %v1297 = vunpack.c.l.s4 1934713408
      %v1298 = vunpack.c.0.s8 %v1297
      %v1299 = vlaneseq
      %v1300 = vshrl.u32 %v1299, 7
      %v1301 = vsub.s32 %v1298, %v1300
      %v1302 = vrot.slane %v1294, %v1301
      %v1304 = vunpack.c.l.s4 1934713408
      %v1305 = vunpack.c.0.s8 %v1304
      %v1306 = vlaneseq
      %v1307 = vshrl.u32 %v1306, 7
      %v1308 = vsub.s32 %v1305, %v1307
      %v1309 = vrot.slane %v1295, %v1308
      %v1310 = vcombine.high %v1286, 0
      %v1311 = vcombine.high %v1293, 0
      %v1312 = vcombine.high %v1302, 0
      %v1313 = vcombine.high %v1309, 0
      %v1314 = vcombine.high %v1238, %v550
      %v1316 = vunpack.c.l.s4 1983009808
      %v1317 = vunpack.c.0.s8 %v1316
      %v1318 = vlaneseq
      %v1319 = vshrl.u32 %v1318, 7
      %v1320 = vsub.s32 %v1317, %v1319
      %v1321 = vrot.slane %v1238, %v1320
      %v1323 = vunpack.c.l.s4 1983009808
      %v1324 = vunpack.c.0.s8 %v1323
      %v1325 = vlaneseq
      %v1326 = vshrl.u32 %v1325, 7
      %v1327 = vsub.s32 %v1324, %v1326
      %v1328 = vrot.slane %v1314, %v1327
      %v1329 = vcombine.high %v1246, %v550
      %v1331 = vunpack.c.l.s4 1983009808
      %v1332 = vunpack.c.0.s8 %v1331
      %v1333 = vlaneseq
      %v1334 = vshrl.u32 %v1333, 7
      %v1335 = vsub.s32 %v1332, %v1334
      %v1336 = vrot.slane %v1246, %v1335
      %v1338 = vunpack.c.l.s4 1983009808
      %v1339 = vunpack.c.0.s8 %v1338
      %v1340 = vlaneseq
      %v1341 = vshrl.u32 %v1340, 7
      %v1342 = vsub.s32 %v1339, %v1341
      %v1343 = vrot.slane %v1329, %v1342
      %v1344 = vcombine.low %v1321, %v1336
      %v1345 = vcombine.high %v1321, %v1336
      %v1347 = vunpack.c.l.s4 1934713408
      %v1348 = vunpack.c.0.s8 %v1347
      %v1349 = vlaneseq
      %v1350 = vshrl.u32 %v1349, 7
      %v1351 = vsub.s32 %v1348, %v1350
      %v1352 = vrot.slane %v1344, %v1351
      %v1354 = vunpack.c.l.s4 1934713408
      %v1355 = vunpack.c.0.s8 %v1354
      %v1356 = vlaneseq
      %v1357 = vshrl.u32 %v1356, 7
      %v1358 = vsub.s32 %v1355, %v1357
      %v1359 = vrot.slane %v1345, %v1358
      %v1360 = vcombine.low %v1328, %v1343
      %v1361 = vcombine.high %v1328, %v1343
      %v1363 = vunpack.c.l.s4 1934713408
      %v1364 = vunpack.c.0.s8 %v1363
      %v1365 = vlaneseq
      %v1366 = vshrl.u32 %v1365, 7
      %v1367 = vsub.s32 %v1364, %v1366
      %v1368 = vrot.slane %v1360, %v1367
      %v1370 = vunpack.c.l.s4 1934713408
      %v1371 = vunpack.c.0.s8 %v1370
      %v1372 = vlaneseq
      %v1373 = vshrl.u32 %v1372, 7
      %v1374 = vsub.s32 %v1371, %v1373
      %v1375 = vrot.slane %v1361, %v1374
      %v1376 = vcombine.high %v1352, 0
      %v1377 = vcombine.high %v1359, 0
      %v1378 = vcombine.high %v1368, 0
      %v1379 = vcombine.high %v1375, 0
      %v1380 = vcombine.low %v1286, %v1293
      %v1382 = vunpack.c.l.s4 1983009808
      %v1383 = vunpack.c.0.s8 %v1382
      %v1384 = vlaneseq
      %v1385 = vshrl.u32 %v1384, 7
      %v1386 = vsub.s32 %v1383, %v1385
      %v1387 = vrot.slane %v1380, %v1386
      %v1388 = vcombine.low %v1310, %v1311
      %v1390 = vunpack.c.l.s4 1983009808
      %v1391 = vunpack.c.0.s8 %v1390
      %v1392 = vlaneseq
      %v1393 = vshrl.u32 %v1392, 7
      %v1394 = vsub.s32 %v1391, %v1393
      %v1395 = vrot.slane %v1388, %v1394
      %v1396 = vcombine.low %v1302, %v1309
      %v1398 = vunpack.c.l.s4 1983009808
      %v1399 = vunpack.c.0.s8 %v1398
      %v1400 = vlaneseq
      %v1401 = vshrl.u32 %v1400, 7
      %v1402 = vsub.s32 %v1399, %v1401
      %v1403 = vrot.slane %v1396, %v1402
      %v1404 = vcombine.low %v1312, %v1313
      %v1406 = vunpack.c.l.s4 1983009808
      %v1407 = vunpack.c.0.s8 %v1406
      %v1408 = vlaneseq
      %v1409 = vshrl.u32 %v1408, 7
      %v1410 = vsub.s32 %v1407, %v1409
      %v1411 = vrot.slane %v1404, %v1410
      %v1412 = vcombine.low %v1387, %v1395
      %v1414 = vunpack.c.l.s4 1934713408
      %v1415 = vunpack.c.0.s8 %v1414
      %v1416 = vlaneseq
      %v1417 = vshrl.u32 %v1416, 7
      %v1418 = vsub.s32 %v1415, %v1417
      %v1419 = vrot.slane %v1412, %v1418
      %v1420 = vcombine.low %v1403, %v1411
      %v1422 = vunpack.c.l.s4 1934713408
      %v1423 = vunpack.c.0.s8 %v1422
      %v1424 = vlaneseq
      %v1425 = vshrl.u32 %v1424, 7
      %v1426 = vsub.s32 %v1423, %v1425
      %v1427 = vrot.slane %v1420, %v1426
      %v1428 = vcombine.low %v1419, %v1427
      %v1429 = vcombine.high %v1419, %v1427
      %v1430 = vcombine.low %v1352, %v1359
      %v1432 = vunpack.c.l.s4 1983009808
      %v1433 = vunpack.c.0.s8 %v1432
      %v1434 = vlaneseq
      %v1435 = vshrl.u32 %v1434, 7
      %v1436 = vsub.s32 %v1433, %v1435
      %v1437 = vrot.slane %v1430, %v1436
      %v1438 = vcombine.low %v1376, %v1377
      %v1440 = vunpack.c.l.s4 1983009808
      %v1441 = vunpack.c.0.s8 %v1440
      %v1442 = vlaneseq
      %v1443 = vshrl.u32 %v1442, 7
      %v1444 = vsub.s32 %v1441, %v1443
      %v1445 = vrot.slane %v1438, %v1444
      %v1446 = vcombine.low %v1368, %v1375
      %v1448 = vunpack.c.l.s4 1983009808
      %v1449 = vunpack.c.0.s8 %v1448
      %v1450 = vlaneseq
      %v1451 = vshrl.u32 %v1450, 7
      %v1452 = vsub.s32 %v1449, %v1451
      %v1453 = vrot.slane %v1446, %v1452
      %v1454 = vcombine.low %v1378, %v1379
      %v1456 = vunpack.c.l.s4 1983009808
      %v1457 = vunpack.c.0.s8 %v1456
      %v1458 = vlaneseq
      %v1459 = vshrl.u32 %v1458, 7
      %v1460 = vsub.s32 %v1457, %v1459
      %v1461 = vrot.slane %v1454, %v1460
      %v1462 = vcombine.low %v1437, %v1445
      %v1464 = vunpack.c.l.s4 1934713408
      %v1465 = vunpack.c.0.s8 %v1464
      %v1466 = vlaneseq
      %v1467 = vshrl.u32 %v1466, 7
      %v1468 = vsub.s32 %v1465, %v1467
      %v1469 = vrot.slane %v1462, %v1468
      %v1470 = vcombine.low %v1453, %v1461
      %v1472 = vunpack.c.l.s4 1934713408
      %v1473 = vunpack.c.0.s8 %v1472
      %v1474 = vlaneseq
      %v1475 = vshrl.u32 %v1474, 7
      %v1476 = vsub.s32 %v1473, %v1475
      %v1477 = vrot.slane %v1470, %v1476
      %v1478 = vcombine.low %v1469, %v1477
      %v1479 = vcombine.high %v1469, %v1477
      %v1482 = vpack.i.b16 %v1478, %v1428
      %v1484 = vshrl.u32 %v1428, 16
      %v1485 = vshrl.u32 %v1478, 16
      %v1486 = vpack.i.b16 %v1485, %v1484
      %v1490 = vpack.i.b16 %v1479, %v1429
      %v1492 = vshrl.u32 %v1429, 16
      %v1493 = vshrl.u32 %v1479, 16
      %v1494 = vpack.i.b16 %v1493, %v1492
      %vm1496 = vcmask 130048
      %v1498 = vsel %vm1496, %v786, 0
      %v1501 = vsel %vm1496, %v1134, 0
      %1503 = vmatprep.subr.bf16.mxu0 0
      %1504 = vmatpush1.bf16.xpose.msra.mxu0 %v1501
      %1505 = vmatprep.subr.bf16.mxu0 0
      %1506 = vmatpush1.bf16.xpose.msra.mxu0 0
      %1507 = vmatprep.subr.bf16.mxu0 0
      %1508 = vmatpush1.bf16.xpose.msra.mxu0 0
      %1509 = vmatprep.subr.bf16.mxu0 0
      %1510 = vmatpush1.bf16.xpose.msra.mxu0 0
      %1511 = vmatprep.subr.bf16.mxu0 0
      %1512 = vmatpush1.bf16.xpose.msra.mxu0 0
      %1513 = vmatprep.subr.bf16.mxu0 0
      %1514 = vmatpush1.bf16.xpose.msra.mxu0 0
      %1515 = vmatprep.subr.bf16.mxu0 0
      %1516 = vmatpush1.bf16.xpose.msra.mxu0 0
      %1517 = vmatprep.subr.bf16.mxu0 0
      %1518 = vmatpush1.bf16.xpose.msra.mxu0 0
      %1519 = vmatprep.subr.bf16.mxu0 0
      %1520 = vmatpush1.bf16.xpose.msra.mxu0 0
      %1521 = vmatprep.subr.bf16.mxu0 0
      %1522 = vmatpush1.bf16.xpose.msra.mxu0 0
      %1523 = vmatprep.subr.bf16.mxu0 0
      %1524 = vmatpush1.bf16.xpose.msra.mxu0 0
      %1525 = vmatprep.subr.bf16.mxu0 0
      %1526 = vmatpush1.bf16.xpose.msra.mxu0 0
      %1527 = vmatprep.subr.bf16.mxu0 0
      %1528 = vmatpush1.bf16.xpose.msra.mxu0 0
      %1529 = vmatprep.subr.bf16.mxu0 0
      %1530 = vmatpush1.bf16.xpose.msra.mxu0 0
      %1531 = vmatprep.subr.bf16.mxu0 0
      %1532 = vmatpush1.bf16.xpose.msra.mxu0 0
      %1533 = vmatprep.subr.bf16.mxu0 0
      %1534 = vmatpush1.bf16.xpose.msra.mxu0 0
      %1535 = vmatprep.mubr.bf16.mxu0 0
      %1536 = vmatmul.mubr.bf16.gmra.mrb[0].mxu0 %v1498
      %v1537 = vpop.f32.mrb[0].mxu0
      %v1538 = vadd.f32 0.0, %v1537
      %v1539 = vpop.f32.mrb[0].mxu0
      %v1540 = vpop.f32.mrb[0].mxu0
      %v1541 = vadd.f32 0.0, %v1540
      %v1542 = vpop.f32.mrb[0].mxu0
      %1543 = vdwg.mxu0
      %v1545 = vsel %vm1496, %v789, 0
      %v1548 = vsel %vm1496, %v1137, 0
      %1550 = vmatprep.subr.bf16.mxu0 0
      %1551 = vmatpush1.bf16.xpose.msra.mxu0 %v1548
      %1552 = vmatprep.subr.bf16.mxu0 0
      %1553 = vmatpush1.bf16.xpose.msra.mxu0 0
      %1554 = vmatprep.subr.bf16.mxu0 0
      %1555 = vmatpush1.bf16.xpose.msra.mxu0 0
      %1556 = vmatprep.subr.bf16.mxu0 0
      %1557 = vmatpush1.bf16.xpose.msra.mxu0 0
      %1558 = vmatprep.subr.bf16.mxu0 0
      %1559 = vmatpush1.bf16.xpose.msra.mxu0 0
      %1560 = vmatprep.subr.bf16.mxu0 0
      %1561 = vmatpush1.bf16.xpose.msra.mxu0 0
      %1562 = vmatprep.subr.bf16.mxu0 0
      %1563 = vmatpush1.bf16.xpose.msra.mxu0 0
      %1564 = vmatprep.subr.bf16.mxu0 0
      %1565 = vmatpush1.bf16.xpose.msra.mxu0 0
      %1566 = vmatprep.subr.bf16.mxu0 0
      %1567 = vmatpush1.bf16.xpose.msra.mxu0 0
      %1568 = vmatprep.subr.bf16.mxu0 0
      %1569 = vmatpush1.bf16.xpose.msra.mxu0 0
      %1570 = vmatprep.subr.bf16.mxu0 0
      %1571 = vmatpush1.bf16.xpose.msra.mxu0 0
      %1572 = vmatprep.subr.bf16.mxu0 0
      %1573 = vmatpush1.bf16.xpose.msra.mxu0 0
      %1574 = vmatprep.subr.bf16.mxu0 0
      %1575 = vmatpush1.bf16.xpose.msra.mxu0 0
      %1576 = vmatprep.subr.bf16.mxu0 0
      %1577 = vmatpush1.bf16.xpose.msra.mxu0 0
      %1578 = vmatprep.subr.bf16.mxu0 0
      %1579 = vmatpush1.bf16.xpose.msra.mxu0 0
      %1580 = vmatprep.subr.bf16.mxu0 0
      %1581 = vmatpush1.bf16.xpose.msra.mxu0 0
      %1582 = vmatprep.mubr.bf16.mxu0 0
      %1583 = vmatmul.mubr.bf16.gmra.mrb[0].mxu0 %v1545
      %v1584 = vpop.f32.mrb[0].mxu0
      %v1585 = vadd.f32 0.0, %v1584
      %v1586 = vpop.f32.mrb[0].mxu0
      %v1587 = vpop.f32.mrb[0].mxu0
      %v1588 = vadd.f32 0.0, %v1587
      %v1589 = vpop.f32.mrb[0].mxu0
      %1590 = vdwg.mxu0
      %v1592 = vsel %vm1496, %v792, 0
      %v1595 = vsel %vm1496, %v1140, 0
      %1597 = vmatprep.subr.bf16.mxu0 0
      %1598 = vmatpush1.bf16.xpose.msra.mxu0 %v1595
      %1599 = vmatprep.subr.bf16.mxu0 0
      %1600 = vmatpush1.bf16.xpose.msra.mxu0 0
      %1601 = vmatprep.subr.bf16.mxu0 0
      %1602 = vmatpush1.bf16.xpose.msra.mxu0 0
      %1603 = vmatprep.subr.bf16.mxu0 0
      %1604 = vmatpush1.bf16.xpose.msra.mxu0 0
      %1605 = vmatprep.subr.bf16.mxu0 0
      %1606 = vmatpush1.bf16.xpose.msra.mxu0 0
      %1607 = vmatprep.subr.bf16.mxu0 0
      %1608 = vmatpush1.bf16.xpose.msra.mxu0 0
      %1609 = vmatprep.subr.bf16.mxu0 0
      %1610 = vmatpush1.bf16.xpose.msra.mxu0 0
      %1611 = vmatprep.subr.bf16.mxu0 0
      %1612 = vmatpush1.bf16.xpose.msra.mxu0 0
      %1613 = vmatprep.subr.bf16.mxu0 0
      %1614 = vmatpush1.bf16.xpose.msra.mxu0 0
      %1615 = vmatprep.subr.bf16.mxu0 0
      %1616 = vmatpush1.bf16.xpose.msra.mxu0 0
      %1617 = vmatprep.subr.bf16.mxu0 0
      %1618 = vmatpush1.bf16.xpose.msra.mxu0 0
      %1619 = vmatprep.subr.bf16.mxu0 0
      %1620 = vmatpush1.bf16.xpose.msra.mxu0 0
      %1621 = vmatprep.subr.bf16.mxu0 0
      %1622 = vmatpush1.bf16.xpose.msra.mxu0 0
      %1623 = vmatprep.subr.bf16.mxu0 0
      %1624 = vmatpush1.bf16.xpose.msra.mxu0 0
      %1625 = vmatprep.subr.bf16.mxu0 0
      %1626 = vmatpush1.bf16.xpose.msra.mxu0 0
      %1627 = vmatprep.subr.bf16.mxu0 0
      %1628 = vmatpush1.bf16.xpose.msra.mxu0 0
      %1629 = vmatprep.mubr.bf16.mxu0 0
      %1630 = vmatmul.mubr.bf16.gmra.mrb[0].mxu0 %v1592
      %v1631 = vpop.f32.mrb[0].mxu0
      %v1632 = vadd.f32 0.0, %v1631
      %v1633 = vpop.f32.mrb[0].mxu0
      %v1634 = vpop.f32.mrb[0].mxu0
      %v1635 = vadd.f32 0.0, %v1634
      %v1636 = vpop.f32.mrb[0].mxu0
      %1637 = vdwg.mxu0
      %v1639 = vsel %vm1496, %v795, 0
      %v1642 = vsel %vm1496, %v1143, 0
      %1644 = vmatprep.subr.bf16.mxu0 0
      %1645 = vmatpush1.bf16.xpose.msra.mxu0 %v1642
      %1646 = vmatprep.subr.bf16.mxu0 0
      %1647 = vmatpush1.bf16.xpose.msra.mxu0 0
      %1648 = vmatprep.subr.bf16.mxu0 0
      %1649 = vmatpush1.bf16.xpose.msra.mxu0 0
      %1650 = vmatprep.subr.bf16.mxu0 0
      %1651 = vmatpush1.bf16.xpose.msra.mxu0 0
      %1652 = vmatprep.subr.bf16.mxu0 0
      %1653 = vmatpush1.bf16.xpose.msra.mxu0 0
      %1654 = vmatprep.subr.bf16.mxu0 0
      %1655 = vmatpush1.bf16.xpose.msra.mxu0 0
      %1656 = vmatprep.subr.bf16.mxu0 0
      %1657 = vmatpush1.bf16.xpose.msra.mxu0 0
      %1658 = vmatprep.subr.bf16.mxu0 0
      %1659 = vmatpush1.bf16.xpose.msra.mxu0 0
      %1660 = vmatprep.subr.bf16.mxu0 0
      %1661 = vmatpush1.bf16.xpose.msra.mxu0 0
      %1662 = vmatprep.subr.bf16.mxu0 0
      %1663 = vmatpush1.bf16.xpose.msra.mxu0 0
      %1664 = vmatprep.subr.bf16.mxu0 0
      %1665 = vmatpush1.bf16.xpose.msra.mxu0 0
      %1666 = vmatprep.subr.bf16.mxu0 0
      %1667 = vmatpush1.bf16.xpose.msra.mxu0 0
      %1668 = vmatprep.subr.bf16.mxu0 0
      %1669 = vmatpush1.bf16.xpose.msra.mxu0 0
      %1670 = vmatprep.subr.bf16.mxu0 0
      %1671 = vmatpush1.bf16.xpose.msra.mxu0 0
      %1672 = vmatprep.subr.bf16.mxu0 0
      %1673 = vmatpush1.bf16.xpose.msra.mxu0 0
      %1674 = vmatprep.subr.bf16.mxu0 0
      %1675 = vmatpush1.bf16.xpose.msra.mxu0 0
      %1676 = vmatprep.mubr.bf16.mxu0 0
      %1677 = vmatmul.mubr.bf16.gmra.mrb[0].mxu0 %v1639
      %v1678 = vpop.f32.mrb[0].mxu0
      %v1679 = vadd.f32 0.0, %v1678
      %v1680 = vpop.f32.mrb[0].mxu0
      %v1681 = vpop.f32.mrb[0].mxu0
      %v1682 = vadd.f32 0.0, %v1681
      %v1683 = vpop.f32.mrb[0].mxu0
      %1684 = vdwg.mxu0
      %v1685 = vsel %vm1496, %v1538, -inf
      %1686 = vmax.xlane.f32.xlu0 %v1685
      %v1687 = vpop.xlane.xlu0 %1686
      %v1688 = vsel %vm1496, %v1541, -inf
      %1689 = vmax.xlane.f32.xlu0 %v1688
      %v1690 = vpop.xlane.xlu0 %1689
      %v1691 = vsel %vm1496, %v1585, -inf
      %1692 = vmax.xlane.f32.xlu0 %v1691
      %v1693 = vpop.xlane.xlu0 %1692
      %v1694 = vsel %vm1496, %v1588, -inf
      %1695 = vmax.xlane.f32.xlu0 %v1694
      %v1696 = vpop.xlane.xlu0 %1695
      %v1697 = vsel %vm1496, %v1632, -inf
      %1698 = vmax.xlane.f32.xlu0 %v1697
      %v1699 = vpop.xlane.xlu0 %1698
      %v1700 = vsel %vm1496, %v1635, -inf
      %1701 = vmax.xlane.f32.xlu0 %v1700
      %v1702 = vpop.xlane.xlu0 %1701
      %v1703 = vsel %vm1496, %v1679, -inf
      %1704 = vmax.xlane.f32.xlu0 %v1703
      %v1705 = vpop.xlane.xlu0 %1704
      %v1706 = vsel %vm1496, %v1682, -inf
      %1707 = vmax.xlane.f32.xlu0 %v1706
      %v1708 = vpop.xlane.xlu0 %1707
      %v1709 = vsub.f32 %v1538, %v1687
      %v1710 = vsub.f32 %v1541, %v1690
      %v1711 = vsub.f32 %v1585, %v1693
      %v1712 = vsub.f32 %v1588, %v1696
      %v1713 = vsub.f32 %v1632, %v1699
      %v1714 = vsub.f32 %v1635, %v1702
      %v1715 = vsub.f32 %v1679, %v1705
      %v1716 = vsub.f32 %v1682, %v1708
      %v1717 = vmul.f32 %v1709, 1.442695
      %v1718 = vpow.pop %v1717
      %v1719 = vmul.f32 %v1710, 1.442695
      %v1720 = vpow.pop %v1719
      %v1721 = vmul.f32 %v1711, 1.442695
      %v1722 = vpow.pop %v1721
      %v1723 = vmul.f32 %v1712, 1.442695
      %v1724 = vpow.pop %v1723
      %v1725 = vmul.f32 %v1713, 1.442695
      %v1726 = vpow.pop %v1725
      %v1727 = vmul.f32 %v1714, 1.442695
      %v1728 = vpow.pop %v1727
      %v1729 = vmul.f32 %v1715, 1.442695
      %v1730 = vpow.pop %v1729
      %v1731 = vmul.f32 %v1716, 1.442695
      %v1732 = vpow.pop %v1731
      %v1733 = vsel %vm1496, %v1718, 0.0
      %1734 = vadd.xlane.f32.xlu0 %v1733
      %v1735 = vpop.xlane.xlu0 %1734
      %v1736 = vsel %vm1496, %v1720, 0.0
      %1737 = vadd.xlane.f32.xlu0 %v1736
      %v1738 = vpop.xlane.xlu0 %1737
      %v1739 = vsel %vm1496, %v1722, 0.0
      %1740 = vadd.xlane.f32.xlu0 %v1739
      %v1741 = vpop.xlane.xlu0 %1740
      %v1742 = vsel %vm1496, %v1724, 0.0
      %1743 = vadd.xlane.f32.xlu0 %v1742
      %v1744 = vpop.xlane.xlu0 %1743
      %v1745 = vsel %vm1496, %v1726, 0.0
      %1746 = vadd.xlane.f32.xlu0 %v1745
      %v1747 = vpop.xlane.xlu0 %1746
      %v1748 = vsel %vm1496, %v1728, 0.0
      %1749 = vadd.xlane.f32.xlu0 %v1748
      %v1750 = vpop.xlane.xlu0 %1749
      %v1751 = vsel %vm1496, %v1730, 0.0
      %1752 = vadd.xlane.f32.xlu0 %v1751
      %v1753 = vpop.xlane.xlu0 %1752
      %v1754 = vsel %vm1496, %v1732, 0.0
      %1755 = vadd.xlane.f32.xlu0 %v1754
      %v1756 = vpop.xlane.xlu0 %1755
      %v1757 = vrcp.pop %v1735
      %v1758 = vrcp.pop %v1738
      %v1759 = vrcp.pop %v1741
      %v1760 = vrcp.pop %v1744
      %v1761 = vrcp.pop %v1747
      %v1762 = vrcp.pop %v1750
      %v1763 = vrcp.pop %v1753
      %v1764 = vrcp.pop %v1756
      %v1765 = vmul.f32 %v1718, %v1757
      %v1766 = vmul.f32 %v1720, %v1758
      %v1767 = vmul.f32 %v1722, %v1759
      %v1768 = vmul.f32 %v1724, %v1760
      %v1769 = vmul.f32 %v1726, %v1761
      %v1770 = vmul.f32 %v1728, %v1762
      %v1771 = vmul.f32 %v1730, %v1763
      %v1772 = vmul.f32 %v1732, %v1764
      %v1773 = vpack.c.bf16 %v1766, %v1765
      %v1774 = vpack.c.bf16 %v1768, %v1767
      %v1775 = vpack.c.bf16 %v1770, %v1769
      %v1776 = vpack.c.bf16 %v1772, %v1771
      %v1778 = vsel %vm1496, %v1773, 0
      %1780 = vmatprep.subr.bf16.mxu0 0
      %1781 = vmatpush1.bf16.msra.mxu0 %v1482
      %1782 = vmatprep.subr.bf16.mxu0 0
      %1783 = vmatpush1.bf16.msra.mxu0 0
      %1784 = vmatprep.subr.bf16.mxu0 0
      %1785 = vmatpush1.bf16.msra.mxu0 0
      %1786 = vmatprep.subr.bf16.mxu0 0
      %1787 = vmatpush1.bf16.msra.mxu0 0
      %1788 = vmatprep.subr.bf16.mxu0 0
      %1789 = vmatpush1.bf16.msra.mxu0 0
      %1790 = vmatprep.subr.bf16.mxu0 0
      %1791 = vmatpush1.bf16.msra.mxu0 0
      %1792 = vmatprep.subr.bf16.mxu0 0
      %1793 = vmatpush1.bf16.msra.mxu0 0
      %1794 = vmatprep.subr.bf16.mxu0 0
      %1795 = vmatpush1.bf16.msra.mxu0 0
      %1796 = vmatprep.subr.bf16.mxu0 0
      %1797 = vmatpush1.bf16.msra.mxu0 0
      %1798 = vmatprep.subr.bf16.mxu0 0
      %1799 = vmatpush1.bf16.msra.mxu0 0
      %1800 = vmatprep.subr.bf16.mxu0 0
      %1801 = vmatpush1.bf16.msra.mxu0 0
      %1802 = vmatprep.subr.bf16.mxu0 0
      %1803 = vmatpush1.bf16.msra.mxu0 0
      %1804 = vmatprep.subr.bf16.mxu0 0
      %1805 = vmatpush1.bf16.msra.mxu0 0
      %1806 = vmatprep.subr.bf16.mxu0 0
      %1807 = vmatpush1.bf16.msra.mxu0 0
      %1808 = vmatprep.subr.bf16.mxu0 0
      %1809 = vmatpush1.bf16.msra.mxu0 0
      %1810 = vmatprep.subr.bf16.mxu0 0
      %1811 = vmatpush1.bf16.msra.mxu0 0
      %1812 = vmatprep.mubr.bf16.mxu0 0
      %1813 = vmatmul.mubr.bf16.gmra.mrb[0].mxu0 %v1778
      %v1814 = vpop.f32.mrb[0].mxu0
      %v1815 = vadd.f32 0.0, %v1814
      %v1816 = vpop.f32.mrb[0].mxu0
      %v1817 = vpop.f32.mrb[0].mxu0
      %v1818 = vadd.f32 0.0, %v1817
      %v1819 = vpop.f32.mrb[0].mxu0
      %1820 = vdwg.mxu0
      %v1822 = vsel %vm1496, %v1774, 0
      %1824 = vmatprep.subr.bf16.mxu0 0
      %1825 = vmatpush1.bf16.msra.mxu0 %v1486
      %1826 = vmatprep.subr.bf16.mxu0 0
      %1827 = vmatpush1.bf16.msra.mxu0 0
      %1828 = vmatprep.subr.bf16.mxu0 0
      %1829 = vmatpush1.bf16.msra.mxu0 0
      %1830 = vmatprep.subr.bf16.mxu0 0
      %1831 = vmatpush1.bf16.msra.mxu0 0
      %1832 = vmatprep.subr.bf16.mxu0 0
      %1833 = vmatpush1.bf16.msra.mxu0 0
      %1834 = vmatprep.subr.bf16.mxu0 0
      %1835 = vmatpush1.bf16.msra.mxu0 0
      %1836 = vmatprep.subr.bf16.mxu0 0
      %1837 = vmatpush1.bf16.msra.mxu0 0
      %1838 = vmatprep.subr.bf16.mxu0 0
      %1839 = vmatpush1.bf16.msra.mxu0 0
      %1840 = vmatprep.subr.bf16.mxu0 0
      %1841 = vmatpush1.bf16.msra.mxu0 0
      %1842 = vmatprep.subr.bf16.mxu0 0
      %1843 = vmatpush1.bf16.msra.mxu0 0
      %1844 = vmatprep.subr.bf16.mxu0 0
      %1845 = vmatpush1.bf16.msra.mxu0 0
      %1846 = vmatprep.subr.bf16.mxu0 0
      %1847 = vmatpush1.bf16.msra.mxu0 0
      %1848 = vmatprep.subr.bf16.mxu0 0
      %1849 = vmatpush1.bf16.msra.mxu0 0
      %1850 = vmatprep.subr.bf16.mxu0 0
      %1851 = vmatpush1.bf16.msra.mxu0 0
      %1852 = vmatprep.subr.bf16.mxu0 0
      %1853 = vmatpush1.bf16.msra.mxu0 0
      %1854 = vmatprep.subr.bf16.mxu0 0
      %1855 = vmatpush1.bf16.msra.mxu0 0
      %1856 = vmatprep.mubr.bf16.mxu0 0
      %1857 = vmatmul.mubr.bf16.gmra.mrb[0].mxu0 %v1822
      %v1858 = vpop.f32.mrb[0].mxu0
      %v1859 = vadd.f32 0.0, %v1858
      %v1860 = vpop.f32.mrb[0].mxu0
      %v1861 = vpop.f32.mrb[0].mxu0
      %v1862 = vadd.f32 0.0, %v1861
      %v1863 = vpop.f32.mrb[0].mxu0
      %1864 = vdwg.mxu0
      %v1866 = vsel %vm1496, %v1775, 0
      %1868 = vmatprep.subr.bf16.mxu0 0
      %1869 = vmatpush1.bf16.msra.mxu0 %v1490
      %1870 = vmatprep.subr.bf16.mxu0 0
      %1871 = vmatpush1.bf16.msra.mxu0 0
      %1872 = vmatprep.subr.bf16.mxu0 0
      %1873 = vmatpush1.bf16.msra.mxu0 0
      %1874 = vmatprep.subr.bf16.mxu0 0
      %1875 = vmatpush1.bf16.msra.mxu0 0
      %1876 = vmatprep.subr.bf16.mxu0 0
      %1877 = vmatpush1.bf16.msra.mxu0 0
      %1878 = vmatprep.subr.bf16.mxu0 0
      %1879 = vmatpush1.bf16.msra.mxu0 0
      %1880 = vmatprep.subr.bf16.mxu0 0
      %1881 = vmatpush1.bf16.msra.mxu0 0
      %1882 = vmatprep.subr.bf16.mxu0 0
      %1883 = vmatpush1.bf16.msra.mxu0 0
      %1884 = vmatprep.subr.bf16.mxu0 0
      %1885 = vmatpush1.bf16.msra.mxu0 0
      %1886 = vmatprep.subr.bf16.mxu0 0
      %1887 = vmatpush1.bf16.msra.mxu0 0
      %1888 = vmatprep.subr.bf16.mxu0 0
      %1889 = vmatpush1.bf16.msra.mxu0 0
      %1890 = vmatprep.subr.bf16.mxu0 0
      %1891 = vmatpush1.bf16.msra.mxu0 0
      %1892 = vmatprep.subr.bf16.mxu0 0
      %1893 = vmatpush1.bf16.msra.mxu0 0
      %1894 = vmatprep.subr.bf16.mxu0 0
      %1895 = vmatpush1.bf16.msra.mxu0 0
      %1896 = vmatprep.subr.bf16.mxu0 0
      %1897 = vmatpush1.bf16.msra.mxu0 0
      %1898 = vmatprep.subr.bf16.mxu0 0
      %1899 = vmatpush1.bf16.msra.mxu0 0
      %1900 = vmatprep.mubr.bf16.mxu0 0
      %1901 = vmatmul.mubr.bf16.gmra.mrb[0].mxu0 %v1866
      %v1902 = vpop.f32.mrb[0].mxu0
      %v1903 = vadd.f32 0.0, %v1902
      %v1904 = vpop.f32.mrb[0].mxu0
      %v1905 = vpop.f32.mrb[0].mxu0
      %v1906 = vadd.f32 0.0, %v1905
      %v1907 = vpop.f32.mrb[0].mxu0
      %1908 = vdwg.mxu0
      %v1910 = vsel %vm1496, %v1776, 0
      %1912 = vmatprep.subr.bf16.mxu0 0
      %1913 = vmatpush1.bf16.msra.mxu0 %v1494
      %1914 = vmatprep.subr.bf16.mxu0 0
      %1915 = vmatpush1.bf16.msra.mxu0 0
      %1916 = vmatprep.subr.bf16.mxu0 0
      %1917 = vmatpush1.bf16.msra.mxu0 0
      %1918 = vmatprep.subr.bf16.mxu0 0
      %1919 = vmatpush1.bf16.msra.mxu0 0
      %1920 = vmatprep.subr.bf16.mxu0 0
      %1921 = vmatpush1.bf16.msra.mxu0 0
      %1922 = vmatprep.subr.bf16.mxu0 0
      %1923 = vmatpush1.bf16.msra.mxu0 0
      %1924 = vmatprep.subr.bf16.mxu0 0
      %1925 = vmatpush1.bf16.msra.mxu0 0
      %1926 = vmatprep.subr.bf16.mxu0 0
      %1927 = vmatpush1.bf16.msra.mxu0 0
      %1928 = vmatprep.subr.bf16.mxu0 0
      %1929 = vmatpush1.bf16.msra.mxu0 0
      %1930 = vmatprep.subr.bf16.mxu0 0
      %1931 = vmatpush1.bf16.msra.mxu0 0
      %1932 = vmatprep.subr.bf16.mxu0 0
      %1933 = vmatpush1.bf16.msra.mxu0 0
      %1934 = vmatprep.subr.bf16.mxu0 0
      %1935 = vmatpush1.bf16.msra.mxu0 0
      %1936 = vmatprep.subr.bf16.mxu0 0
      %1937 = vmatpush1.bf16.msra.mxu0 0
      %1938 = vmatprep.subr.bf16.mxu0 0
      %1939 = vmatpush1.bf16.msra.mxu0 0
      %1940 = vmatprep.subr.bf16.mxu0 0
      %1941 = vmatpush1.bf16.msra.mxu0 0
      %1942 = vmatprep.subr.bf16.mxu0 0
      %1943 = vmatpush1.bf16.msra.mxu0 0
      %1944 = vmatprep.mubr.bf16.mxu0 0
      %1945 = vmatmul.mubr.bf16.gmra.mrb[0].mxu0 %v1910
      %v1946 = vpop.f32.mrb[0].mxu0
      %v1947 = vadd.f32 0.0, %v1946
      %v1948 = vpop.f32.mrb[0].mxu0
      %v1949 = vpop.f32.mrb[0].mxu0
      %v1950 = vadd.f32 0.0, %v1949
      %v1951 = vpop.f32.mrb[0].mxu0
      %1952 = vdwg.mxu0
      %v1953 = vcombine.low %v1815, %v1903
      %v1954 = vcombine.high %v1815, %v1903
      %v1956 = vunpack.c.l.s4 1983009808
      %v1957 = vunpack.c.0.s8 %v1956
      %v1958 = vlaneseq
      %v1959 = vshrl.u32 %v1958, 7
      %v1960 = vsub.s32 %v1957, %v1959
      %v1961 = vrot.slane %v1953, %v1960
      %v1963 = vunpack.c.l.s4 1983009808
      %v1964 = vunpack.c.0.s8 %v1963
      %v1965 = vlaneseq
      %v1966 = vshrl.u32 %v1965, 7
      %v1967 = vsub.s32 %v1964, %v1966
      %v1968 = vrot.slane %v1954, %v1967
      %v1969 = vcombine.low %v1859, %v1947
      %v1970 = vcombine.high %v1859, %v1947
      %v1972 = vunpack.c.l.s4 1983009808
      %v1973 = vunpack.c.0.s8 %v1972
      %v1974 = vlaneseq
      %v1975 = vshrl.u32 %v1974, 7
      %v1976 = vsub.s32 %v1973, %v1975
      %v1977 = vrot.slane %v1969, %v1976
      %v1979 = vunpack.c.l.s4 1983009808
      %v1980 = vunpack.c.0.s8 %v1979
      %v1981 = vlaneseq
      %v1982 = vshrl.u32 %v1981, 7
      %v1983 = vsub.s32 %v1980, %v1982
      %v1984 = vrot.slane %v1970, %v1983
      %v1985 = vcombine.low %v1961, %v1977
      %v1986 = vcombine.high %v1961, %v1977
      %v1988 = vunpack.c.l.s4 1934713408
      %v1989 = vunpack.c.0.s8 %v1988
      %v1990 = vlaneseq
      %v1991 = vshrl.u32 %v1990, 7
      %v1992 = vsub.s32 %v1989, %v1991
      %v1993 = vrot.slane %v1985, %v1992
      %v1995 = vunpack.c.l.s4 1934713408
      %v1996 = vunpack.c.0.s8 %v1995
      %v1997 = vlaneseq
      %v1998 = vshrl.u32 %v1997, 7
      %v1999 = vsub.s32 %v1996, %v1998
      %v2000 = vrot.slane %v1986, %v1999
      %v2001 = vcombine.low %v1968, %v1984
      %v2002 = vcombine.high %v1968, %v1984
      %v2004 = vunpack.c.l.s4 1934713408
      %v2005 = vunpack.c.0.s8 %v2004
      %v2006 = vlaneseq
      %v2007 = vshrl.u32 %v2006, 7
      %v2008 = vsub.s32 %v2005, %v2007
      %v2009 = vrot.slane %v2001, %v2008
      %v2011 = vunpack.c.l.s4 1934713408
      %v2012 = vunpack.c.0.s8 %v2011
      %v2013 = vlaneseq
      %v2014 = vshrl.u32 %v2013, 7
      %v2015 = vsub.s32 %v2012, %v2014
      %v2016 = vrot.slane %v2002, %v2015
      %v2017 = vcombine.high %v1993, 0.0
      %v2018 = vcombine.high %v2000, 0.0
      %v2019 = vcombine.high %v2009, 0.0
      %v2020 = vcombine.high %v2016, 0.0
      %v2021 = vcombine.low %v1818, %v1906
      %v2022 = vcombine.high %v1818, %v1906
      %v2024 = vunpack.c.l.s4 1983009808
      %v2025 = vunpack.c.0.s8 %v2024
      %v2026 = vlaneseq
      %v2027 = vshrl.u32 %v2026, 7
      %v2028 = vsub.s32 %v2025, %v2027
      %v2029 = vrot.slane %v2021, %v2028
      %v2031 = vunpack.c.l.s4 1983009808
      %v2032 = vunpack.c.0.s8 %v2031
      %v2033 = vlaneseq
      %v2034 = vshrl.u32 %v2033, 7
      %v2035 = vsub.s32 %v2032, %v2034
      %v2036 = vrot.slane %v2022, %v2035
      %v2037 = vcombine.low %v1862, %v1950
      %v2038 = vcombine.high %v1862, %v1950
      %v2040 = vunpack.c.l.s4 1983009808
      %v2041 = vunpack.c.0.s8 %v2040
      %v2042 = vlaneseq
      %v2043 = vshrl.u32 %v2042, 7
      %v2044 = vsub.s32 %v2041, %v2043
      %v2045 = vrot.slane %v2037, %v2044
      %v2047 = vunpack.c.l.s4 1983009808
      %v2048 = vunpack.c.0.s8 %v2047
      %v2049 = vlaneseq
      %v2050 = vshrl.u32 %v2049, 7
      %v2051 = vsub.s32 %v2048, %v2050
      %v2052 = vrot.slane %v2038, %v2051
      %v2053 = vcombine.low %v2029, %v2045
      %v2054 = vcombine.high %v2029, %v2045
      %v2056 = vunpack.c.l.s4 1934713408
      %v2057 = vunpack.c.0.s8 %v2056
      %v2058 = vlaneseq
      %v2059 = vshrl.u32 %v2058, 7
      %v2060 = vsub.s32 %v2057, %v2059
      %v2061 = vrot.slane %v2053, %v2060
      %v2063 = vunpack.c.l.s4 1934713408
      %v2064 = vunpack.c.0.s8 %v2063
      %v2065 = vlaneseq
      %v2066 = vshrl.u32 %v2065, 7
      %v2067 = vsub.s32 %v2064, %v2066
      %v2068 = vrot.slane %v2054, %v2067
      %v2069 = vcombine.low %v2036, %v2052
      %v2070 = vcombine.high %v2036, %v2052
      %v2072 = vunpack.c.l.s4 1934713408
      %v2073 = vunpack.c.0.s8 %v2072
      %v2074 = vlaneseq
      %v2075 = vshrl.u32 %v2074, 7
      %v2076 = vsub.s32 %v2073, %v2075
      %v2077 = vrot.slane %v2069, %v2076
      %v2079 = vunpack.c.l.s4 1934713408
      %v2080 = vunpack.c.0.s8 %v2079
      %v2081 = vlaneseq
      %v2082 = vshrl.u32 %v2081, 7
      %v2083 = vsub.s32 %v2080, %v2082
      %v2084 = vrot.slane %v2070, %v2083
      %v2085 = vcombine.high %v2061, 0.0
      %v2086 = vcombine.high %v2068, 0.0
      %v2087 = vcombine.high %v2077, 0.0
      %v2088 = vcombine.high %v2084, 0.0
      %v2089 = vcombine.low %v1993, %v2000
      %v2091 = vunpack.c.l.s4 1983009808
      %v2092 = vunpack.c.0.s8 %v2091
      %v2093 = vlaneseq
      %v2094 = vshrl.u32 %v2093, 7
      %v2095 = vsub.s32 %v2092, %v2094
      %v2096 = vrot.slane %v2089, %v2095
      %v2097 = vcombine.low %v2017, %v2018
      %v2099 = vunpack.c.l.s4 1983009808
      %v2100 = vunpack.c.0.s8 %v2099
      %v2101 = vlaneseq
      %v2102 = vshrl.u32 %v2101, 7
      %v2103 = vsub.s32 %v2100, %v2102
      %v2104 = vrot.slane %v2097, %v2103
      %v2105 = vcombine.low %v2009, %v2016
      %v2107 = vunpack.c.l.s4 1983009808
      %v2108 = vunpack.c.0.s8 %v2107
      %v2109 = vlaneseq
      %v2110 = vshrl.u32 %v2109, 7
      %v2111 = vsub.s32 %v2108, %v2110
      %v2112 = vrot.slane %v2105, %v2111
      %v2113 = vcombine.low %v2019, %v2020
      %v2115 = vunpack.c.l.s4 1983009808
      %v2116 = vunpack.c.0.s8 %v2115
      %v2117 = vlaneseq
      %v2118 = vshrl.u32 %v2117, 7
      %v2119 = vsub.s32 %v2116, %v2118
      %v2120 = vrot.slane %v2113, %v2119
      %v2121 = vcombine.low %v2096, %v2104
      %v2122 = vcombine.high %v2096, %v2104
      %v2124 = vunpack.c.l.s4 1934713408
      %v2125 = vunpack.c.0.s8 %v2124
      %v2126 = vlaneseq
      %v2127 = vshrl.u32 %v2126, 7
      %v2128 = vsub.s32 %v2125, %v2127
      %v2129 = vrot.slane %v2121, %v2128
      %v2131 = vunpack.c.l.s4 1934713408
      %v2132 = vunpack.c.0.s8 %v2131
      %v2133 = vlaneseq
      %v2134 = vshrl.u32 %v2133, 7
      %v2135 = vsub.s32 %v2132, %v2134
      %v2136 = vrot.slane %v2122, %v2135
      %v2137 = vcombine.low %v2112, %v2120
      %v2138 = vcombine.high %v2112, %v2120
      %v2140 = vunpack.c.l.s4 1934713408
      %v2141 = vunpack.c.0.s8 %v2140
      %v2142 = vlaneseq
      %v2143 = vshrl.u32 %v2142, 7
      %v2144 = vsub.s32 %v2141, %v2143
      %v2145 = vrot.slane %v2137, %v2144
      %v2147 = vunpack.c.l.s4 1934713408
      %v2148 = vunpack.c.0.s8 %v2147
      %v2149 = vlaneseq
      %v2150 = vshrl.u32 %v2149, 7
      %v2151 = vsub.s32 %v2148, %v2150
      %v2152 = vrot.slane %v2138, %v2151
      %v2153 = vcombine.low %v2129, %v2145
      %v2154 = vcombine.high %v2129, %v2145
      %v2155 = vcombine.low %v2136, %v2152
      %v2156 = vcombine.high %v2136, %v2152
      %v2157 = vcombine.low %v2061, %v2068
      %v2159 = vunpack.c.l.s4 1983009808
      %v2160 = vunpack.c.0.s8 %v2159
      %v2161 = vlaneseq
      %v2162 = vshrl.u32 %v2161, 7
      %v2163 = vsub.s32 %v2160, %v2162
      %v2164 = vrot.slane %v2157, %v2163
      %v2165 = vcombine.low %v2085, %v2086
      %v2167 = vunpack.c.l.s4 1983009808
      %v2168 = vunpack.c.0.s8 %v2167
      %v2169 = vlaneseq
      %v2170 = vshrl.u32 %v2169, 7
      %v2171 = vsub.s32 %v2168, %v2170
      %v2172 = vrot.slane %v2165, %v2171
      %v2173 = vcombine.low %v2077, %v2084
      %v2175 = vunpack.c.l.s4 1983009808
      %v2176 = vunpack.c.0.s8 %v2175
      %v2177 = vlaneseq
      %v2178 = vshrl.u32 %v2177, 7
      %v2179 = vsub.s32 %v2176, %v2178
      %v2180 = vrot.slane %v2173, %v2179
      %v2181 = vcombine.low %v2087, %v2088
      %v2183 = vunpack.c.l.s4 1983009808
      %v2184 = vunpack.c.0.s8 %v2183
      %v2185 = vlaneseq
      %v2186 = vshrl.u32 %v2185, 7
      %v2187 = vsub.s32 %v2184, %v2186
      %v2188 = vrot.slane %v2181, %v2187
      %v2189 = vcombine.low %v2164, %v2172
      %v2190 = vcombine.high %v2164, %v2172
      %v2192 = vunpack.c.l.s4 1934713408
      %v2193 = vunpack.c.0.s8 %v2192
      %v2194 = vlaneseq
      %v2195 = vshrl.u32 %v2194, 7
      %v2196 = vsub.s32 %v2193, %v2195
      %v2197 = vrot.slane %v2189, %v2196
      %v2199 = vunpack.c.l.s4 1934713408
      %v2200 = vunpack.c.0.s8 %v2199
      %v2201 = vlaneseq
      %v2202 = vshrl.u32 %v2201, 7
      %v2203 = vsub.s32 %v2200, %v2202
      %v2204 = vrot.slane %v2190, %v2203
      %v2205 = vcombine.low %v2180, %v2188
      %v2206 = vcombine.high %v2180, %v2188
      %v2208 = vunpack.c.l.s4 1934713408
      %v2209 = vunpack.c.0.s8 %v2208
      %v2210 = vlaneseq
      %v2211 = vshrl.u32 %v2210, 7
      %v2212 = vsub.s32 %v2209, %v2211
      %v2213 = vrot.slane %v2205, %v2212
      %v2215 = vunpack.c.l.s4 1934713408
      %v2216 = vunpack.c.0.s8 %v2215
      %v2217 = vlaneseq
      %v2218 = vshrl.u32 %v2217, 7
      %v2219 = vsub.s32 %v2216, %v2218
      %v2220 = vrot.slane %v2206, %v2219
      %v2221 = vcombine.low %v2197, %v2213
      %v2222 = vcombine.high %v2197, %v2213
      %v2223 = vcombine.low %v2204, %v2220
      %v2224 = vcombine.high %v2204, %v2220
      %2227 = vrot.lane.b32.xlu0 %v2154, 16
      %v2228 = vpop.permute.xlu0 %2227
      %2229 = vrot.lane.b32.xlu0 %v2222, 16
      %v2230 = vpop.permute.xlu0 %2229
      %2235 = vrot.lane.b32.xlu0 %v2155, 32
      %v2236 = vpop.permute.xlu0 %2235
      %2237 = vrot.lane.b32.xlu0 %v2223, 32
      %v2238 = vpop.permute.xlu0 %2237
      %2243 = vrot.lane.b32.xlu0 %v2156, 48
      %v2244 = vpop.permute.xlu0 %2243
      %2245 = vrot.lane.b32.xlu0 %v2224, 48
      %v2246 = vpop.permute.xlu0 %2245
      %v2249 = vsel %vm1496, %v2153, %v2228
      %v2250 = vsel %vm1496, %v2221, %v2230
      %vm2251 = vcmask 261120
      %v2252 = vsel %vm2251, %v2249, %v2236
      %v2253 = vsel %vm2251, %v2250, %v2238
      %vm2254 = vcmask 392192
      %v2255 = vsel %vm2254, %v2252, %v2244
      %v2256 = vsel %vm2254, %v2253, %v2246
      %v2257 = vld [vmem:[%s10] sm:$0x1]
      %v2259 = vlaneseq
      %v2260 = vshrl.u32 %v2259, 7
      %v2261 = vsub.s32 0, %v2260
      %v2262 = vrot.slane %v2257, %v2261
      %v2264 = vadd.f32 %v390, %v2262
      %v2265 = vadd.f32 %v391, %v2262
      %v2266 = vpack.c.bf16 %v2256, %v2255
      %v2267 = vld [vmem:[%s9] sm:$0xf]
      %v2268 = vld [vmem:[%s9 + $0x4] sm:$0xf]
      %v2269 = vld [vmem:[%s9 + $0x8] sm:$0xf]
      %v2270 = vld [vmem:[%s9 + $0xc] sm:$0xf]
      %v2271 = vld [vmem:[%s9 + $0x10] sm:$0xf]
      %v2272 = vld [vmem:[%s9 + $0x14] sm:$0xf]
      %v2273 = vld [vmem:[%s9 + $0x18] sm:$0xf]
      %v2274 = vld [vmem:[%s9 + $0x1c] sm:$0xf]
      %v2283 = vunpack.c.l.b16 %v2267
      %v2284 = vunpack.c.l.b16 %v2268
      %v2285 = vunpack.c.l.b16 %v2269
      %v2286 = vunpack.c.l.b16 %v2270
      %v2287 = vunpack.c.l.b16 %v2271
      %v2288 = vunpack.c.l.b16 %v2272
      %v2289 = vunpack.c.l.b16 %v2273
      %v2290 = vunpack.c.l.b16 %v2274
      %v2291 = vpack.c.b16 %v2284, %v2283
      %v2292 = vpack.c.b16 %v2286, %v2285
      %v2293 = vpack.c.b16 %v2288, %v2287
      %v2294 = vpack.c.b16 %v2290, %v2289
      %v2300 = vsel %vm394, %v2266, 0
      %2302 = vmatprep.subr.bf16.mxu0 0
      %2303 = vmatpush1.bf16.msra.mxu0 %v2291
      %2304 = vmatprep.subr.bf16.mxu0 0
      %2305 = vmatpush1.bf16.msra.mxu0 %v2292
      %2306 = vmatprep.subr.bf16.mxu0 0
      %2307 = vmatpush1.bf16.msra.mxu0 %v2293
      %2308 = vmatprep.subr.bf16.mxu0 0
      %2309 = vmatpush1.bf16.msra.mxu0 %v2294
      %2310 = vmatprep.subr.bf16.mxu0 0
      %2311 = vmatpush1.bf16.msra.mxu0 0
      %2312 = vmatprep.subr.bf16.mxu0 0
      %2313 = vmatpush1.bf16.msra.mxu0 0
      %2314 = vmatprep.subr.bf16.mxu0 0
      %2315 = vmatpush1.bf16.msra.mxu0 0
      %2316 = vmatprep.subr.bf16.mxu0 0
      %2317 = vmatpush1.bf16.msra.mxu0 0
      %2318 = vmatprep.subr.bf16.mxu0 0
      %2319 = vmatpush1.bf16.msra.mxu0 0
      %2320 = vmatprep.subr.bf16.mxu0 0
      %2321 = vmatpush1.bf16.msra.mxu0 0
      %2322 = vmatprep.subr.bf16.mxu0 0
      %2323 = vmatpush1.bf16.msra.mxu0 0
      %2324 = vmatprep.subr.bf16.mxu0 0
      %2325 = vmatpush1.bf16.msra.mxu0 0
      %2326 = vmatprep.subr.bf16.mxu0 0
      %2327 = vmatpush1.bf16.msra.mxu0 0
      %2328 = vmatprep.subr.bf16.mxu0 0
      %2329 = vmatpush1.bf16.msra.mxu0 0
      %2330 = vmatprep.subr.bf16.mxu0 0
      %2331 = vmatpush1.bf16.msra.mxu0 0
      %2332 = vmatprep.subr.bf16.mxu0 0
      %2333 = vmatpush1.bf16.msra.mxu0 0
      %2334 = vmatprep.mubr.bf16.mxu0 0
      %2335 = vmatmul.mubr.bf16.gmra.mrb[0].mxu0 %v2300
      %v2336 = vpop.f32.mrb[0].mxu0
      %v2337 = vadd.f32 0.0, %v2336
      %v2338 = vpop.f32.mrb[0].mxu0
      %v2339 = vpop.f32.mrb[0].mxu0
      %v2340 = vadd.f32 0.0, %v2339
      %v2341 = vpop.f32.mrb[0].mxu0
      %2342 = vdwg.mxu0
      %v2343 = vadd.f32 %v2264, %v2337
      %v2344 = vadd.f32 %v2265, %v2340
      %v2345 = vpack.c.bf16 %v2344, %v2343
      %v2347 = vunpack.c.l.b16 %v2345
      %v2348 = vunpack.c.h.b16 %v2345
      %v2349 = vpack.c.b16 %v2347, %v2347
      %v2350 = vpack.c.b16 %v2348, %v2348
      %vm2353 = vcmask 519168
      %2354 = vst.msk [vmem:[%s386] sm:$0xf] %vm2353, %v2349
      %2355 = vst.msk [vmem:[%s386 + $0x4] sm:$0xf] %vm2353, %v2350
      %p2356 = scmp.lt.s32.totalorder %s22, 1
      %s2357 = scalar_select %p2356, %s22, 1
      %s2358 = smul.addr %s2357, 2
      %s2359 = smul.addr %s2358, 4
      %s2360 = scalar_lea.vmem %s11, %s2359
      // Predicated region
      $region65: #{vision_encoder.7} parent=63 // pred_check
        %p2361 = pneg %p276
      $region66: #{vision_encoder.7} parent=63 // pred_check_branch
        %2363 = sbr.rel (%p2361) target = $region68
      $region67: #{vision_encoder.7} parent=63 // pred_region
        _
      $region68: #{vision_encoder.7} parent=63 // pred_fallthru
        _
    $region64: #{vision_encoder.7} parent=5 // pred_fallthru
      _
    %p2364 = scmp.le.s32.totalorder 2, %s17
    // Predicated region
    $region69: #{vision_encoder.7} parent=5 // pred_check
      %p2365 = pneg %p2364
    $region70: #{vision_encoder.7} parent=5 // pred_check_branch
      %2367 = sbr.rel (%p2365) target = $region72
    $region71: #{vision_encoder.7} parent=5 // pred_region
      %s2368 = ssub.s32 %s17, 2
      // Predicated region
      $region73: #{vision_encoder.7} parent=71 // pred_check
        %p2369 = pneg %p282
      $region74: #{vision_encoder.7} parent=71 // pred_check_branch
        %2371 = sbr.rel (%p2369) target = $region76
      $region75: #{vision_encoder.7} parent=71 // pred_region
        %p2372 = scmp.lt.s32.totalorder %s23, 1
        %s2373 = scalar_select %p2372, %s23, 1
        %s2374 = smul.addr %s2373, 2
        %s2375 = smul.addr %s2374, 4
        %s2376 = scalar_lea.vmem %s11, %s2375
      $region76: #{vision_encoder.7} parent=71 // pred_fallthru
        _
    $region72: #{vision_encoder.7} parent=5 // pred_fallthru
      _
  $region6: #{vision_encoder.7} parent=0 // loop_footer
    %s21 = sadd.s32 1, %s17
  $region7: #{vision_encoder.7} parent=0 // loop_footer_branch
    %16 = sbr.rel target = $region3
  $region8: #{vision_encoder.7} parent=0 // loop_exit
    _

</llo_original>
